<compile_context>
chip_gen: v7x
topology: tpu7x:2x2x1
jax: 0.10.0
libtpu: 0.0.40
codegen_flags: <defaults>
</compile_context>

<pallas_src>
import math

import jax
import jax.numpy as jnp
from jax import lax
from jax.experimental import pallas as pl
from jax.experimental.pallas import tpu as pltpu

SCALE = 1.0 / math.sqrt(2048.0)  # hard-coded in the source, independent of feats_size


# ----------------------------------------------------------------------------
# Fused kernel: QKV projection + attention + LSTM, one batch tile per grid step
# ----------------------------------------------------------------------------
def _nsa_fused_kernel(x_ref, wqkv_ref, bqkv_ref, wih_ref, whh_ref, bl_ref,
                      o_ref, gx_ref):
    bt, n, f = x_ref.shape
    h_dim = whh_ref.shape[0]

    # ---- fused QKV projection: one (bt*n, F) x (F, 3F) MXU matmul ----------
    x = x_ref[...].reshape(bt * n, f).astype(jnp.bfloat16)
    qkv = (jnp.dot(x, wqkv_ref[...], preferred_element_type=jnp.float32)
           + bqkv_ref[...])                                    # (bt*n, 3F) f32
    q = qkv[:, 0 * f:1 * f].reshape(bt, n, f)   # 1/sqrt(2048) already folded into Wq/bq
    k = qkv[:, 1 * f:2 * f].reshape(bt, n, f)
    v = qkv[:, 2 * f:3 * f].reshape(bt, n, f)

    # ---- scaled dot-product attention (batched; contraction on lane axis,
    # ---- so no explicit k transpose is materialized) ------------------------
    scores = jnp.einsum("bnd,bmd->bnm",
                        q.astype(jnp.bfloat16), k.astype(jnp.bfloat16),
                        preferred_element_type=jnp.float32)        # (bt, n, n)
    scores = scores - jnp.max(scores, axis=-1, keepdims=True)
    p = jnp.exp(scores)
    w = p * pl.reciprocal(jnp.sum(p, axis=-1, keepdims=True), approx=True)

    attn = jnp.einsum("bnm,bmd->bnd",
                      w.astype(jnp.bfloat16), v.astype(jnp.bfloat16),
                      preferred_element_type=jnp.float32)          # (bt, n, f)

    # ---- LSTM: input projection hoisted out of the recurrence ---------------
    gates_x = (jnp.dot(attn.reshape(bt * n, f).astype(jnp.bfloat16), wih_ref[...],
                       preferred_element_type=jnp.float32)
               + bl_ref[...])                                  # (bt*n, 4H), bias folded in
    gx_ref[...] = gates_x                                      # stash in VMEM scratch

    whh = whh_ref[...]                                         # (H, 4H) bf16 recurrence
    h0 = jnp.zeros((bt, h_dim), jnp.float32)
    c0 = jnp.zeros((bt, h_dim), jnp.float32)

    def step(t, carry):
        hid, cell = carry
        # rows b*n + t for b in [0, bt): per-timestep gates for the whole tile.
        # TODO(synk): a t-major gate layout would turn this strided VMEM read
        # into a contiguous load; kept strided pending a verified-safe
        # in-kernel (bt,n,f)->(n,bt,f) relayout.
        gx = gx_ref[pl.ds(t, bt, stride=n), :]                 # (bt, 4H)
        gates = gx + jnp.dot(hid.astype(jnp.bfloat16), whh,
                             preferred_element_type=jnp.float32)
        i_g = jax.nn.sigmoid(gates[:, 0 * h_dim:1 * h_dim])
        f_g = jax.nn.sigmoid(gates[:, 1 * h_dim:2 * h_dim])
        g_g = jnp.tanh(gates[:, 2 * h_dim:3 * h_dim])
        o_g = jax.nn.sigmoid(gates[:, 3 * h_dim:4 * h_dim])
        cell = f_g * cell + i_g * g_g
        hid = o_g * jnp.tanh(cell)
        return (hid, cell)

    # Partial unroll (max 8) keeps LLO visibility without code-size blowup.
    h_final, _ = lax.fori_loop(0, n, step, (h0, c0), unroll=min(n, 8))
    o_ref[...] = h_final


# ----------------------------------------------------------------------------
# One-time parameter fusion (NOT on the per-call forward path)
# ----------------------------------------------------------------------------
def fuse_params(params):
    """Concat Wq|Wk|Wv into one lane-dense (F, 3F) operand, fold the
    1/sqrt(2048) score scale into the Q columns/bias, and pre-cast the big MXU
    operands (wqkv, wih, whh) to bf16.  Call once at init time."""
    wq = params["wq"] * SCALE
    bq = params["bq"] * SCALE
    wqkv = jnp.concatenate([wq, params["wk"], params["wv"]], axis=1)
    bqkv = jnp.concatenate([bq, params["bk"], params["bv"]], axis=1)
    return {
        "wqkv": wqkv.astype(jnp.bfloat16),
        "bqkv": bqkv.astype(jnp.float32),
        "wih": params["wih"].astype(jnp.bfloat16),
        "whh": params["whh"].astype(jnp.bfloat16),
        "b_lstm": params["b_lstm"].astype(jnp.float32),
    }


# ----------------------------------------------------------------------------
# Tiling / VMEM heuristics
# ----------------------------------------------------------------------------
def _pick_block_b(B, N, target_rows=256):
    """Fill the MXU M dimension (bt*N >= 256 rows covers v6e/v7x; v5e needs
    128) while keeping >= 2 grid steps when possible (megacore sharding), and
    keep the (bt, H) output block legal: bt == B or bt a multiple of 8."""
    cands = [d for d in range(1, B + 1) if B % d == 0 and (d == B or d % 8 == 0)]
    full = [d for d in cands if d * N >= target_rows]
    full_multi = [d for d in full if B // d >= 2]
    if full_multi:
        return min(full_multi)          # MXU full AND >=2 grid steps
    if full:
        return min(full)                # MXU full, single grid step
    multi = [d for d in cands if B // d >= 2]
    if multi and max(multi) * N >= 64:  # under-filled anyway: prefer 2 cores
        return max(multi)
    return max(cands)                   # == B


def _vmem_limit_bytes(bt, N, F, H, fused):
    """Size the scoped VMEM limit from the actual resident footprint."""
    weights = sum(int(v.size) * v.dtype.itemsize for v in fused.values())
    io = 2 * bt * N * F * 4 + 2 * bt * H * 4            # double-buffered x + out
    scratch = bt * N * 4 * H * 4                        # gx_ref
    temps = bt * N * (3 * F + F + 4 * H) * 4 + bt * N * N * 4
    est = int(1.5 * (weights + io + scratch + temps)) + (4 << 20)
    # Never below the cross-generation default; stay under v7x's 64 MiB VMEM.
    return max(min(est, 60 * 1024 * 1024), 32 * 1024 * 1024)


def _build_nsa_call(B, N, F, H, bt, vmem_limit, single_buffer_weights):
    w_kwargs = {}
    if single_buffer_weights:
        # Grid-invariant operands are never re-fetched -> don't double-buffer.
        w_kwargs = dict(pipeline_mode=pl.Buffered(1))

    in_specs = [
        pl.BlockSpec((bt, N, F), lambda i: (i, 0, 0)),
        pl.BlockSpec((F, 3 * F), lambda i: (0, 0), **w_kwargs),
        pl.BlockSpec((1, 3 * F), lambda i: (0, 0), **w_kwargs),
        pl.BlockSpec((F, 4 * H), lambda i: (0, 0), **w_kwargs),
        pl.BlockSpec((H, 4 * H), lambda i: (0, 0), **w_kwargs),
        pl.BlockSpec((1, 4 * H), lambda i: (0, 0), **w_kwargs),
    ]
    return pl.pallas_call(
        _nsa_fused_kernel,
        out_shape=jax.ShapeDtypeStruct((B, H), jnp.float32),
        grid=(B // bt,),
        in_specs=in_specs,
        out_specs=pl.BlockSpec((bt, H), lambda i: (i, 0)),
        scratch_shapes=[pltpu.VMEM((bt * N, 4 * H), jnp.float32)],
        compiler_params=pltpu.CompilerParams(
            dimension_semantics=("parallel",),
            vmem_limit_bytes=vmem_limit,
        ),
    )


# ----------------------------------------------------------------------------
# Wrapper: forward pass (expects pre-fused params)
# ----------------------------------------------------------------------------
def neighboring_self_attention(feats, fused_params, *, block_b=None):
    B, N, F = feats.shape
    H = fused_params["whh"].shape[0]

    bt = block_b if block_b is not None else _pick_block_b(B, N)
    assert B % bt == 0 and (bt == B or bt % 8 == 0), (B, bt)

    vmem_limit = _vmem_limit_bytes(bt, N, F, H, fused_params)
    args = (feats, fused_params["wqkv"], fused_params["bqkv"],
            fused_params["wih"], fused_params["whh"], fused_params["b_lstm"])

    try:
        out = _build_nsa_call(B, N, F, H, bt, vmem_limit, True)(*args)
    except Exception:
        # Fallback: identical kernel without single-buffered weight specs, in
        # case this jax build rejects pipeline_mode=pl.Buffered(1).
        out = _build_nsa_call(B, N, F, H, bt, vmem_limit, False)(*args)

    return out[:, None, :]  # unsqueeze(1) -> (B, 1, H)


# ----------------------------------------------------------------------------
# Pure-JAX reference (f32, unfused params, for correctness checking)
# ----------------------------------------------------------------------------
def reference_forward(feats, params):
    q = feats @ params["wq"] + params["bq"]
    k = feats @ params["wk"] + params["bk"]
    v = feats @ params["wv"] + params["bv"]
    dot = jnp.einsum("bnd,bmd->bnm", q, k) * SCALE
    w = jax.nn.softmax(dot, axis=-1)
    nf = jnp.einsum("bnm,bmd->bnd", w, v)

    H = params["whh"].shape[0]

    def cell(carry, x_t):
        h, c = carry
        gates = x_t @ params["wih"] + h @ params["whh"] + params["b_lstm"][0]
        i_g = jax.nn.sigmoid(gates[:, 0 * H:1 * H])
        f_g = jax.nn.sigmoid(gates[:, 1 * H:2 * H])
        g_g = jnp.tanh(gates[:, 2 * H:3 * H])
        o_g = jax.nn.sigmoid(gates[:, 3 * H:4 * H])
        c_new = f_g * c + i_g * g_g
        h_new = o_g * jnp.tanh(c_new)
        return (h_new, c_new), None

    B = feats.shape[0]
    h0 = jnp.zeros((B, H), jnp.float32)
    c0 = jnp.zeros((B, H), jnp.float32)
    (h_final, _), _ = lax.scan(cell, (h0, c0), jnp.swapaxes(nf, 0, 1))
    return h_final[:, None, :]


# ----------------------------------------------------------------------------
# Parameter construction (deterministic, synthetic)
# ----------------------------------------------------------------------------
def make_params(key, feats_size, hidden_size):
    F, H = feats_size, hidden_size
    keys = jax.random.split(key, 10)
    s_lin = 1.0 / math.sqrt(F)
    s_lstm = 1.0 / math.sqrt(H)
    u = lambda k, shape, s: jax.random.uniform(k, shape, jnp.float32, -s, s)
    return {
        "wq": u(keys[0], (F, F), s_lin), "bq": u(keys[1], (1, F), s_lin),
        "wk": u(keys[2], (F, F), s_lin), "bk": u(keys[3], (1, F), s_lin),
        "wv": u(keys[4], (F, F), s_lin), "bv": u(keys[5], (1, F), s_lin),
        "wih": u(keys[6], (F, 4 * H), s_lstm),
        "whh": u(keys[7], (H, 4 * H), s_lstm),
        "b_lstm": u(keys[8], (1, 4 * H), s_lstm),
    }


if __name__ == "__main__":
    B, N, F, H = 2, 8, 32, 32  # batch, seq, feats_size, lstm hidden

    key = jax.random.PRNGKey(0)
    k_feats, k_params = jax.random.split(key)
    feats = jax.random.normal(k_feats, (B, N, F), jnp.float32)
    params = make_params(k_params, F, H)

    fused = fuse_params(params)            # one-time fusion, off the hot path
    out = neighboring_self_attention(feats, fused)
    out = jax.block_until_ready(out)

    ref = reference_forward(feats, params)
    assert out.shape == (B, 1, H), out.shape
    # bf16 MXU operands (incl. bf16 LSTM recurrence) with f32 accumulation.
    assert jnp.allclose(out, ref, atol=3e-2, rtol=3e-2), "mismatch vs JAX reference"

    print("KERNEL_OK")
</pallas_src>

<mosaic_0001>
module attributes {stable_mosaic.version = 11 : i64} {
  func.func @_nsa_fused_kernel(%arg0: i32, %arg1: memref<2x8x32xf32, #tpu.memory_space<vmem>>, %arg2: memref<32x96xbf16, #tpu.memory_space<vmem>>, %arg3: memref<1x96xf32, #tpu.memory_space<vmem>>, %arg4: memref<32x128xbf16, #tpu.memory_space<vmem>>, %arg5: memref<32x128xbf16, #tpu.memory_space<vmem>>, %arg6: memref<1x128xf32, #tpu.memory_space<vmem>>, %arg7: memref<2x32xf32, #tpu.memory_space<vmem>>, %arg8: memref<16x128xf32, #tpu.memory_space<vmem>>) attributes {dimension_semantics = [#tpu.dimension_semantics<parallel>], iteration_bounds = array<i64: 1>, scalar_prefetch = 0 : i64, scratch_operands = 1 : i64, tpu.core_type = #tpu.core_type<tc>, window_params = [{transform_indices = @transform_0, window_bounds = array<i64: 2, 8, 32>}, {pipeline_mode = #tpu.pipeline_mode<synchronous>, transform_indices = @transform_1, window_bounds = array<i64: 32, 96>}, {pipeline_mode = #tpu.pipeline_mode<synchronous>, transform_indices = @transform_2, window_bounds = array<i64: 1, 96>}, {pipeline_mode = #tpu.pipeline_mode<synchronous>, transform_indices = @transform_3, window_bounds = array<i64: 32, 128>}, {pipeline_mode = #tpu.pipeline_mode<synchronous>, transform_indices = @transform_4, window_bounds = array<i64: 32, 128>}, {pipeline_mode = #tpu.pipeline_mode<synchronous>, transform_indices = @transform_5, window_bounds = array<i64: 1, 128>}, {transform_indices = @transform_6, window_bounds = array<i64: 2, 32>}]} {
    %c0 = arith.constant 0 : index
    %c0_0 = arith.constant 0 : index
    %c0_1 = arith.constant 0 : index
    %0 = vector.load %arg1[%c0, %c0_0, %c0_1] : memref<2x8x32xf32, #tpu.memory_space<vmem>>, vector<2x8x32xf32>
    %1 = vector.shape_cast %0 : vector<2x8x32xf32> to vector<16x32xf32>
    %2 = arith.truncf %1 : vector<16x32xf32> to vector<16x32xbf16>
    %c0_2 = arith.constant 0 : index
    %c0_3 = arith.constant 0 : index
    %3 = vector.load %arg2[%c0_2, %c0_3] : memref<32x96xbf16, #tpu.memory_space<vmem>>, vector<32x96xbf16>
    %cst = arith.constant dense<0.000000e+00> : vector<16x96xf32>
    %4 = tpu.matmul %2, %3, %cst {dimension_numbers = #tpu.dot_dimension_numbers<[1], [0], [0], [1], [0, 0, 1, 1], [], []>} : vector<16x32xbf16>, vector<32x96xbf16>, vector<16x96xf32> -> vector<16x96xf32>
    %c0_4 = arith.constant 0 : index
    %c0_5 = arith.constant 0 : index
    %5 = vector.load %arg3[%c0_4, %c0_5] : memref<1x96xf32, #tpu.memory_space<vmem>>, vector<1x96xf32>
    %6 = vector.broadcast %5 : vector<1x96xf32> to vector<16x96xf32>
    %7 = arith.addf %4, %6 : vector<16x96xf32>
    %8 = vector.extract_strided_slice %7 {offsets = [0, 0], sizes = [16, 32], strides = [1, 1]} : vector<16x96xf32> to vector<16x32xf32>
    %9 = vector.shape_cast %8 : vector<16x32xf32> to vector<2x8x32xf32>
    %10 = vector.extract_strided_slice %7 {offsets = [0, 32], sizes = [16, 32], strides = [1, 1]} : vector<16x96xf32> to vector<16x32xf32>
    %11 = vector.shape_cast %10 : vector<16x32xf32> to vector<2x8x32xf32>
    %12 = vector.extract_strided_slice %7 {offsets = [0, 64], sizes = [16, 32], strides = [1, 1]} : vector<16x96xf32> to vector<16x32xf32>
    %13 = vector.shape_cast %12 : vector<16x32xf32> to vector<2x8x32xf32>
    %14 = arith.truncf %9 : vector<2x8x32xf32> to vector<2x8x32xbf16>
    %15 = arith.truncf %11 : vector<2x8x32xf32> to vector<2x8x32xbf16>
    "tpu.trace_start"() <{level = 10 : i32, message = "bnd,bmd->bnm"}> : () -> ()
    %cst_6 = arith.constant dense<0.000000e+00> : vector<2x8x8xf32>
    %16 = tpu.matmul %14, %15, %cst_6 {dimension_numbers = #tpu.dot_dimension_numbers<[2], [2], [1], [1], [0, 0, 0, 1, 1, 1], [0], [0]>} : vector<2x8x32xbf16>, vector<2x8x32xbf16>, vector<2x8x8xf32> -> vector<2x8x8xf32>
    "tpu.trace_stop"() : () -> ()
    %cst_7 = arith.constant dense<0xFF800000> : vector<2x8xf32>
    %17 = vector.multi_reduction <maximumf>, %16, %cst_7 [2] : vector<2x8x8xf32> to vector<2x8xf32>
    %18 = vector.shape_cast %17 : vector<2x8xf32> to vector<2x8x1xf32>
    %19 = vector.broadcast %18 : vector<2x8x1xf32> to vector<2x8x8xf32>
    %20 = arith.subf %16, %19 : vector<2x8x8xf32>
    %21 = math.exp %20 : vector<2x8x8xf32>
    %cst_8 = arith.constant dense<0.000000e+00> : vector<2x8xf32>
    %22 = vector.multi_reduction <add>, %21, %cst_8 [2] : vector<2x8x8xf32> to vector<2x8xf32>
    %23 = vector.shape_cast %22 : vector<2x8xf32> to vector<2x8x1xf32>
    %24 = tpu.reciprocal %23 {approx = true} : vector<2x8x1xf32> -> vector<2x8x1xf32>
    %25 = vector.broadcast %24 : vector<2x8x1xf32> to vector<2x8x8xf32>
    %26 = arith.mulf %21, %25 : vector<2x8x8xf32>
    %27 = arith.truncf %26 : vector<2x8x8xf32> to vector<2x8x8xbf16>
    %28 = arith.truncf %13 : vector<2x8x32xf32> to vector<2x8x32xbf16>
    "tpu.trace_start"() <{level = 10 : i32, message = "bnm,bmd->bnd"}> : () -> ()
    %cst_9 = arith.constant dense<0.000000e+00> : vector<2x8x32xf32>
    %29 = tpu.matmul %27, %28, %cst_9 {dimension_numbers = #tpu.dot_dimension_numbers<[2], [1], [1], [2], [0, 0, 0, 1, 1, 2], [0], [0]>} : vector<2x8x8xbf16>, vector<2x8x32xbf16>, vector<2x8x32xf32> -> vector<2x8x32xf32>
    "tpu.trace_stop"() : () -> ()
    %30 = vector.shape_cast %29 : vector<2x8x32xf32> to vector<16x32xf32>
    %31 = arith.truncf %30 : vector<16x32xf32> to vector<16x32xbf16>
    %c0_10 = arith.constant 0 : index
    %c0_11 = arith.constant 0 : index
    %32 = vector.load %arg4[%c0_10, %c0_11] : memref<32x128xbf16, #tpu.memory_space<vmem>>, vector<32x128xbf16>
    %cst_12 = arith.constant dense<0.000000e+00> : vector<16x128xf32>
    %33 = tpu.matmul %31, %32, %cst_12 {dimension_numbers = #tpu.dot_dimension_numbers<[1], [0], [0], [1], [0, 0, 1, 1], [], []>} : vector<16x32xbf16>, vector<32x128xbf16>, vector<16x128xf32> -> vector<16x128xf32>
    %c0_13 = arith.constant 0 : index
    %c0_14 = arith.constant 0 : index
    %34 = vector.load %arg6[%c0_13, %c0_14] : memref<1x128xf32, #tpu.memory_space<vmem>>, vector<1x128xf32>
    %35 = vector.broadcast %34 : vector<1x128xf32> to vector<16x128xf32>
    %36 = arith.addf %33, %35 : vector<16x128xf32>
    %c0_15 = arith.constant 0 : index
    %c0_16 = arith.constant 0 : index
    %37 = vector.load %arg8[%c0_15, %c0_16] : memref<16x128xf32, #tpu.memory_space<vmem>>, vector<16x128xf32>
    tpu.vector_store %arg8[%c0_15, %c0_16], %36 {strides = array<i32>} : memref<16x128xf32, #tpu.memory_space<vmem>>, vector<16x128xf32>,
    %c0_17 = arith.constant 0 : index
    %c0_18 = arith.constant 0 : index
    %38 = vector.load %arg5[%c0_17, %c0_18] : memref<32x128xbf16, #tpu.memory_space<vmem>>, vector<32x128xbf16>
    %cst_19 = arith.constant 0.000000e+00 : f32
    %39 = vector.broadcast %cst_19 : f32 to vector<2x32xf32>
    %cst_20 = arith.constant 0.000000e+00 : f32
    %40 = vector.broadcast %cst_20 : f32 to vector<2x32xf32>
    %c0_i32 = arith.constant 0 : i32
    %41 = arith.index_cast %c0_i32 : i32 to index
    %c0_21 = arith.constant 0 : index
    %42 = tpu.strided_load %arg8[%41, %c0_21] {strides = array<i32: 8, 1>} : memref<16x128xf32, #tpu.memory_space<vmem>>, vector<2x128xf32>
    %43 = arith.truncf %39 : vector<2x32xf32> to vector<2x32xbf16>
    %cst_22 = arith.constant dense<0.000000e+00> : vector<2x128xf32>
    %44 = tpu.matmul %43, %38, %cst_22 {dimension_numbers = #tpu.dot_dimension_numbers<[1], [0], [0], [1], [0, 0, 1, 1], [], []>} : vector<2x32xbf16>, vector<32x128xbf16>, vector<2x128xf32> -> vector<2x128xf32>
    %45 = arith.addf %42, %44 : vector<2x128xf32>
    %46 = vector.extract_strided_slice %45 {offsets = [0, 0], sizes = [2, 32], strides = [1, 1]} : vector<2x128xf32> to vector<2x32xf32>
    %47 = arith.negf %46 : vector<2x32xf32>
    %48 = math.exp %47 : vector<2x32xf32>
    %cst_23 = arith.constant 1.000000e+00 : f32
    %49 = vector.broadcast %cst_23 : f32 to vector<2x32xf32>
    %50 = arith.addf %49, %48 : vector<2x32xf32>
    %51 = arith.divf %49, %50 : vector<2x32xf32>
    %52 = vector.extract_strided_slice %45 {offsets = [0, 32], sizes = [2, 32], strides = [1, 1]} : vector<2x128xf32> to vector<2x32xf32>
    %53 = arith.negf %52 : vector<2x32xf32>
    %54 = math.exp %53 : vector<2x32xf32>
    %cst_24 = arith.constant 1.000000e+00 : f32
    %55 = vector.broadcast %cst_24 : f32 to vector<2x32xf32>
    %56 = arith.addf %55, %54 : vector<2x32xf32>
    %57 = arith.divf %55, %56 : vector<2x32xf32>
    %58 = vector.extract_strided_slice %45 {offsets = [0, 64], sizes = [2, 32], strides = [1, 1]} : vector<2x128xf32> to vector<2x32xf32>
    %59 = math.tanh %58 : vector<2x32xf32>
    %60 = vector.extract_strided_slice %45 {offsets = [0, 96], sizes = [2, 32], strides = [1, 1]} : vector<2x128xf32> to vector<2x32xf32>
    %61 = arith.negf %60 : vector<2x32xf32>
    %62 = math.exp %61 : vector<2x32xf32>
    %cst_25 = arith.constant 1.000000e+00 : f32
    %63 = vector.broadcast %cst_25 : f32 to vector<2x32xf32>
    %64 = arith.addf %63, %62 : vector<2x32xf32>
    %65 = arith.divf %63, %64 : vector<2x32xf32>
    %66 = arith.mulf %57, %40 : vector<2x32xf32>
    %67 = arith.mulf %51, %59 : vector<2x32xf32>
    %68 = arith.addf %66, %67 : vector<2x32xf32>
    %69 = math.tanh %68 : vector<2x32xf32>
    %70 = arith.mulf %65, %69 : vector<2x32xf32>
    %c1_i32 = arith.constant 1 : i32
    %71 = arith.index_cast %c1_i32 : i32 to index
    %c0_26 = arith.constant 0 : index
    %72 = tpu.strided_load %arg8[%71, %c0_26] {strides = array<i32: 8, 1>} : memref<16x128xf32, #tpu.memory_space<vmem>>, vector<2x128xf32>
    %73 = arith.truncf %70 : vector<2x32xf32> to vector<2x32xbf16>
    %cst_27 = arith.constant dense<0.000000e+00> : vector<2x128xf32>
    %74 = tpu.matmul %73, %38, %cst_27 {dimension_numbers = #tpu.dot_dimension_numbers<[1], [0], [0], [1], [0, 0, 1, 1], [], []>} : vector<2x32xbf16>, vector<32x128xbf16>, vector<2x128xf32> -> vector<2x128xf32>
    %75 = arith.addf %72, %74 : vector<2x128xf32>
    %76 = vector.extract_strided_slice %75 {offsets = [0, 0], sizes = [2, 32], strides = [1, 1]} : vector<2x128xf32> to vector<2x32xf32>
    %77 = arith.negf %76 : vector<2x32xf32>
    %78 = math.exp %77 : vector<2x32xf32>
    %cst_28 = arith.constant 1.000000e+00 : f32
    %79 = vector.broadcast %cst_28 : f32 to vector<2x32xf32>
    %80 = arith.addf %79, %78 : vector<2x32xf32>
    %81 = arith.divf %79, %80 : vector<2x32xf32>
    %82 = vector.extract_strided_slice %75 {offsets = [0, 32], sizes = [2, 32], strides = [1, 1]} : vector<2x128xf32> to vector<2x32xf32>
    %83 = arith.negf %82 : vector<2x32xf32>
    %84 = math.exp %83 : vector<2x32xf32>
    %cst_29 = arith.constant 1.000000e+00 : f32
    %85 = vector.broadcast %cst_29 : f32 to vector<2x32xf32>
    %86 = arith.addf %85, %84 : vector<2x32xf32>
    %87 = arith.divf %85, %86 : vector<2x32xf32>
    %88 = vector.extract_strided_slice %75 {offsets = [0, 64], sizes = [2, 32], strides = [1, 1]} : vector<2x128xf32> to vector<2x32xf32>
    %89 = math.tanh %88 : vector<2x32xf32>
    %90 = vector.extract_strided_slice %75 {offsets = [0, 96], sizes = [2, 32], strides = [1, 1]} : vector<2x128xf32> to vector<2x32xf32>
    %91 = arith.negf %90 : vector<2x32xf32>
    %92 = math.exp %91 : vector<2x32xf32>
    %cst_30 = arith.constant 1.000000e+00 : f32
    %93 = vector.broadcast %cst_30 : f32 to vector<2x32xf32>
    %94 = arith.addf %93, %92 : vector<2x32xf32>
    %95 = arith.divf %93, %94 : vector<2x32xf32>
    %96 = arith.mulf %87, %68 : vector<2x32xf32>
    %97 = arith.mulf %81, %89 : vector<2x32xf32>
    %98 = arith.addf %96, %97 : vector<2x32xf32>
    %99 = math.tanh %98 : vector<2x32xf32>
    %100 = arith.mulf %95, %99 : vector<2x32xf32>
    %c2_i32 = arith.constant 2 : i32
    %101 = arith.index_cast %c2_i32 : i32 to index
    %c0_31 = arith.constant 0 : index
    %102 = tpu.strided_load %arg8[%101, %c0_31] {strides = array<i32: 8, 1>} : memref<16x128xf32, #tpu.memory_space<vmem>>, vector<2x128xf32>
    %103 = arith.truncf %100 : vector<2x32xf32> to vector<2x32xbf16>
    %cst_32 = arith.constant dense<0.000000e+00> : vector<2x128xf32>
    %104 = tpu.matmul %103, %38, %cst_32 {dimension_numbers = #tpu.dot_dimension_numbers<[1], [0], [0], [1], [0, 0, 1, 1], [], []>} : vector<2x32xbf16>, vector<32x128xbf16>, vector<2x128xf32> -> vector<2x128xf32>
    %105 = arith.addf %102, %104 : vector<2x128xf32>
    %106 = vector.extract_strided_slice %105 {offsets = [0, 0], sizes = [2, 32], strides = [1, 1]} : vector<2x128xf32> to vector<2x32xf32>
    %107 = arith.negf %106 : vector<2x32xf32>
    %108 = math.exp %107 : vector<2x32xf32>
    %cst_33 = arith.constant 1.000000e+00 : f32
    %109 = vector.broadcast %cst_33 : f32 to vector<2x32xf32>
    %110 = arith.addf %109, %108 : vector<2x32xf32>
    %111 = arith.divf %109, %110 : vector<2x32xf32>
    %112 = vector.extract_strided_slice %105 {offsets = [0, 32], sizes = [2, 32], strides = [1, 1]} : vector<2x128xf32> to vector<2x32xf32>
    %113 = arith.negf %112 : vector<2x32xf32>
    %114 = math.exp %113 : vector<2x32xf32>
    %cst_34 = arith.constant 1.000000e+00 : f32
    %115 = vector.broadcast %cst_34 : f32 to vector<2x32xf32>
    %116 = arith.addf %115, %114 : vector<2x32xf32>
    %117 = arith.divf %115, %116 : vector<2x32xf32>
    %118 = vector.extract_strided_slice %105 {offsets = [0, 64], sizes = [2, 32], strides = [1, 1]} : vector<2x128xf32> to vector<2x32xf32>
    %119 = math.tanh %118 : vector<2x32xf32>
    %120 = vector.extract_strided_slice %105 {offsets = [0, 96], sizes = [2, 32], strides = [1, 1]} : vector<2x128xf32> to vector<2x32xf32>
    %121 = arith.negf %120 : vector<2x32xf32>
    %122 = math.exp %121 : vector<2x32xf32>
    %cst_35 = arith.constant 1.000000e+00 : f32
    %123 = vector.broadcast %cst_35 : f32 to vector<2x32xf32>
    %124 = arith.addf %123, %122 : vector<2x32xf32>
    %125 = arith.divf %123, %124 : vector<2x32xf32>
    %126 = arith.mulf %117, %98 : vector<2x32xf32>
    %127 = arith.mulf %111, %119 : vector<2x32xf32>
    %128 = arith.addf %126, %127 : vector<2x32xf32>
    %129 = math.tanh %128 : vector<2x32xf32>
    %130 = arith.mulf %125, %129 : vector<2x32xf32>
    %c3_i32 = arith.constant 3 : i32
    %131 = arith.index_cast %c3_i32 : i32 to index
    %c0_36 = arith.constant 0 : index
    %132 = tpu.strided_load %arg8[%131, %c0_36] {strides = array<i32: 8, 1>} : memref<16x128xf32, #tpu.memory_space<vmem>>, vector<2x128xf32>
    %133 = arith.truncf %130 : vector<2x32xf32> to vector<2x32xbf16>
    %cst_37 = arith.constant dense<0.000000e+00> : vector<2x128xf32>
    %134 = tpu.matmul %133, %38, %cst_37 {dimension_numbers = #tpu.dot_dimension_numbers<[1], [0], [0], [1], [0, 0, 1, 1], [], []>} : vector<2x32xbf16>, vector<32x128xbf16>, vector<2x128xf32> -> vector<2x128xf32>
    %135 = arith.addf %132, %134 : vector<2x128xf32>
    %136 = vector.extract_strided_slice %135 {offsets = [0, 0], sizes = [2, 32], strides = [1, 1]} : vector<2x128xf32> to vector<2x32xf32>
    %137 = arith.negf %136 : vector<2x32xf32>
    %138 = math.exp %137 : vector<2x32xf32>
    %cst_38 = arith.constant 1.000000e+00 : f32
    %139 = vector.broadcast %cst_38 : f32 to vector<2x32xf32>
    %140 = arith.addf %139, %138 : vector<2x32xf32>
    %141 = arith.divf %139, %140 : vector<2x32xf32>
    %142 = vector.extract_strided_slice %135 {offsets = [0, 32], sizes = [2, 32], strides = [1, 1]} : vector<2x128xf32> to vector<2x32xf32>
    %143 = arith.negf %142 : vector<2x32xf32>
    %144 = math.exp %143 : vector<2x32xf32>
    %cst_39 = arith.constant 1.000000e+00 : f32
    %145 = vector.broadcast %cst_39 : f32 to vector<2x32xf32>
    %146 = arith.addf %145, %144 : vector<2x32xf32>
    %147 = arith.divf %145, %146 : vector<2x32xf32>
    %148 = vector.extract_strided_slice %135 {offsets = [0, 64], sizes = [2, 32], strides = [1, 1]} : vector<2x128xf32> to vector<2x32xf32>
    %149 = math.tanh %148 : vector<2x32xf32>
    %150 = vector.extract_strided_slice %135 {offsets = [0, 96], sizes = [2, 32], strides = [1, 1]} : vector<2x128xf32> to vector<2x32xf32>
    %151 = arith.negf %150 : vector<2x32xf32>
    %152 = math.exp %151 : vector<2x32xf32>
    %cst_40 = arith.constant 1.000000e+00 : f32
    %153 = vector.broadcast %cst_40 : f32 to vector<2x32xf32>
    %154 = arith.addf %153, %152 : vector<2x32xf32>
    %155 = arith.divf %153, %154 : vector<2x32xf32>
    %156 = arith.mulf %147, %128 : vector<2x32xf32>
    %157 = arith.mulf %141, %149 : vector<2x32xf32>
    %158 = arith.addf %156, %157 : vector<2x32xf32>
    %159 = math.tanh %158 : vector<2x32xf32>
    %160 = arith.mulf %155, %159 : vector<2x32xf32>
    %c4_i32 = arith.constant 4 : i32
    %161 = arith.index_cast %c4_i32 : i32 to index
    %c0_41 = arith.constant 0 : index
    %162 = tpu.strided_load %arg8[%161, %c0_41] {strides = array<i32: 8, 1>} : memref<16x128xf32, #tpu.memory_space<vmem>>, vector<2x128xf32>
    %163 = arith.truncf %160 : vector<2x32xf32> to vector<2x32xbf16>
    %cst_42 = arith.constant dense<0.000000e+00> : vector<2x128xf32>
    %164 = tpu.matmul %163, %38, %cst_42 {dimension_numbers = #tpu.dot_dimension_numbers<[1], [0], [0], [1], [0, 0, 1, 1], [], []>} : vector<2x32xbf16>, vector<32x128xbf16>, vector<2x128xf32> -> vector<2x128xf32>
    %165 = arith.addf %162, %164 : vector<2x128xf32>
    %166 = vector.extract_strided_slice %165 {offsets = [0, 0], sizes = [2, 32], strides = [1, 1]} : vector<2x128xf32> to vector<2x32xf32>
    %167 = arith.negf %166 : vector<2x32xf32>
    %168 = math.exp %167 : vector<2x32xf32>
    %cst_43 = arith.constant 1.000000e+00 : f32
    %169 = vector.broadcast %cst_43 : f32 to vector<2x32xf32>
    %170 = arith.addf %169, %168 : vector<2x32xf32>
    %171 = arith.divf %169, %170 : vector<2x32xf32>
    %172 = vector.extract_strided_slice %165 {offsets = [0, 32], sizes = [2, 32], strides = [1, 1]} : vector<2x128xf32> to vector<2x32xf32>
    %173 = arith.negf %172 : vector<2x32xf32>
    %174 = math.exp %173 : vector<2x32xf32>
    %cst_44 = arith.constant 1.000000e+00 : f32
    %175 = vector.broadcast %cst_44 : f32 to vector<2x32xf32>
    %176 = arith.addf %175, %174 : vector<2x32xf32>
    %177 = arith.divf %175, %176 : vector<2x32xf32>
    %178 = vector.extract_strided_slice %165 {offsets = [0, 64], sizes = [2, 32], strides = [1, 1]} : vector<2x128xf32> to vector<2x32xf32>
    %179 = math.tanh %178 : vector<2x32xf32>
    %180 = vector.extract_strided_slice %165 {offsets = [0, 96], sizes = [2, 32], strides = [1, 1]} : vector<2x128xf32> to vector<2x32xf32>
    %181 = arith.negf %180 : vector<2x32xf32>
    %182 = math.exp %181 : vector<2x32xf32>
    %cst_45 = arith.constant 1.000000e+00 : f32
    %183 = vector.broadcast %cst_45 : f32 to vector<2x32xf32>
    %184 = arith.addf %183, %182 : vector<2x32xf32>
    %185 = arith.divf %183, %184 : vector<2x32xf32>
    %186 = arith.mulf %177, %158 : vector<2x32xf32>
    %187 = arith.mulf %171, %179 : vector<2x32xf32>
    %188 = arith.addf %186, %187 : vector<2x32xf32>
    %189 = math.tanh %188 : vector<2x32xf32>
    %190 = arith.mulf %185, %189 : vector<2x32xf32>
    %c5_i32 = arith.constant 5 : i32
    %191 = arith.index_cast %c5_i32 : i32 to index
    %c0_46 = arith.constant 0 : index
    %192 = tpu.strided_load %arg8[%191, %c0_46] {strides = array<i32: 8, 1>} : memref<16x128xf32, #tpu.memory_space<vmem>>, vector<2x128xf32>
    %193 = arith.truncf %190 : vector<2x32xf32> to vector<2x32xbf16>
    %cst_47 = arith.constant dense<0.000000e+00> : vector<2x128xf32>
    %194 = tpu.matmul %193, %38, %cst_47 {dimension_numbers = #tpu.dot_dimension_numbers<[1], [0], [0], [1], [0, 0, 1, 1], [], []>} : vector<2x32xbf16>, vector<32x128xbf16>, vector<2x128xf32> -> vector<2x128xf32>
    %195 = arith.addf %192, %194 : vector<2x128xf32>
    %196 = vector.extract_strided_slice %195 {offsets = [0, 0], sizes = [2, 32], strides = [1, 1]} : vector<2x128xf32> to vector<2x32xf32>
    %197 = arith.negf %196 : vector<2x32xf32>
    %198 = math.exp %197 : vector<2x32xf32>
    %cst_48 = arith.constant 1.000000e+00 : f32
    %199 = vector.broadcast %cst_48 : f32 to vector<2x32xf32>
    %200 = arith.addf %199, %198 : vector<2x32xf32>
    %201 = arith.divf %199, %200 : vector<2x32xf32>
    %202 = vector.extract_strided_slice %195 {offsets = [0, 32], sizes = [2, 32], strides = [1, 1]} : vector<2x128xf32> to vector<2x32xf32>
    %203 = arith.negf %202 : vector<2x32xf32>
    %204 = math.exp %203 : vector<2x32xf32>
    %cst_49 = arith.constant 1.000000e+00 : f32
    %205 = vector.broadcast %cst_49 : f32 to vector<2x32xf32>
    %206 = arith.addf %205, %204 : vector<2x32xf32>
    %207 = arith.divf %205, %206 : vector<2x32xf32>
    %208 = vector.extract_strided_slice %195 {offsets = [0, 64], sizes = [2, 32], strides = [1, 1]} : vector<2x128xf32> to vector<2x32xf32>
    %209 = math.tanh %208 : vector<2x32xf32>
    %210 = vector.extract_strided_slice %195 {offsets = [0, 96], sizes = [2, 32], strides = [1, 1]} : vector<2x128xf32> to vector<2x32xf32>
    %211 = arith.negf %210 : vector<2x32xf32>
    %212 = math.exp %211 : vector<2x32xf32>
    %cst_50 = arith.constant 1.000000e+00 : f32
    %213 = vector.broadcast %cst_50 : f32 to vector<2x32xf32>
    %214 = arith.addf %213, %212 : vector<2x32xf32>
    %215 = arith.divf %213, %214 : vector<2x32xf32>
    %216 = arith.mulf %207, %188 : vector<2x32xf32>
    %217 = arith.mulf %201, %209 : vector<2x32xf32>
    %218 = arith.addf %216, %217 : vector<2x32xf32>
    %219 = math.tanh %218 : vector<2x32xf32>
    %220 = arith.mulf %215, %219 : vector<2x32xf32>
    %c6_i32 = arith.constant 6 : i32
    %221 = arith.index_cast %c6_i32 : i32 to index
    %c0_51 = arith.constant 0 : index
    %222 = tpu.strided_load %arg8[%221, %c0_51] {strides = array<i32: 8, 1>} : memref<16x128xf32, #tpu.memory_space<vmem>>, vector<2x128xf32>
    %223 = arith.truncf %220 : vector<2x32xf32> to vector<2x32xbf16>
    %cst_52 = arith.constant dense<0.000000e+00> : vector<2x128xf32>
    %224 = tpu.matmul %223, %38, %cst_52 {dimension_numbers = #tpu.dot_dimension_numbers<[1], [0], [0], [1], [0, 0, 1, 1], [], []>} : vector<2x32xbf16>, vector<32x128xbf16>, vector<2x128xf32> -> vector<2x128xf32>
    %225 = arith.addf %222, %224 : vector<2x128xf32>
    %226 = vector.extract_strided_slice %225 {offsets = [0, 0], sizes = [2, 32], strides = [1, 1]} : vector<2x128xf32> to vector<2x32xf32>
    %227 = arith.negf %226 : vector<2x32xf32>
    %228 = math.exp %227 : vector<2x32xf32>
    %cst_53 = arith.constant 1.000000e+00 : f32
    %229 = vector.broadcast %cst_53 : f32 to vector<2x32xf32>
    %230 = arith.addf %229, %228 : vector<2x32xf32>
    %231 = arith.divf %229, %230 : vector<2x32xf32>
    %232 = vector.extract_strided_slice %225 {offsets = [0, 32], sizes = [2, 32], strides = [1, 1]} : vector<2x128xf32> to vector<2x32xf32>
    %233 = arith.negf %232 : vector<2x32xf32>
    %234 = math.exp %233 : vector<2x32xf32>
    %cst_54 = arith.constant 1.000000e+00 : f32
    %235 = vector.broadcast %cst_54 : f32 to vector<2x32xf32>
    %236 = arith.addf %235, %234 : vector<2x32xf32>
    %237 = arith.divf %235, %236 : vector<2x32xf32>
    %238 = vector.extract_strided_slice %225 {offsets = [0, 64], sizes = [2, 32], strides = [1, 1]} : vector<2x128xf32> to vector<2x32xf32>
    %239 = math.tanh %238 : vector<2x32xf32>
    %240 = vector.extract_strided_slice %225 {offsets = [0, 96], sizes = [2, 32], strides = [1, 1]} : vector<2x128xf32> to vector<2x32xf32>
    %241 = arith.negf %240 : vector<2x32xf32>
    %242 = math.exp %241 : vector<2x32xf32>
    %cst_55 = arith.constant 1.000000e+00 : f32
    %243 = vector.broadcast %cst_55 : f32 to vector<2x32xf32>
    %244 = arith.addf %243, %242 : vector<2x32xf32>
    %245 = arith.divf %243, %244 : vector<2x32xf32>
    %246 = arith.mulf %237, %218 : vector<2x32xf32>
    %247 = arith.mulf %231, %239 : vector<2x32xf32>
    %248 = arith.addf %246, %247 : vector<2x32xf32>
    %249 = math.tanh %248 : vector<2x32xf32>
    %250 = arith.mulf %245, %249 : vector<2x32xf32>
    %c7_i32 = arith.constant 7 : i32
    %251 = arith.index_cast %c7_i32 : i32 to index
    %c0_56 = arith.constant 0 : index
    %252 = tpu.strided_load %arg8[%251, %c0_56] {strides = array<i32: 8, 1>} : memref<16x128xf32, #tpu.memory_space<vmem>>, vector<2x128xf32>
    %253 = arith.truncf %250 : vector<2x32xf32> to vector<2x32xbf16>
    %cst_57 = arith.constant dense<0.000000e+00> : vector<2x128xf32>
    %254 = tpu.matmul %253, %38, %cst_57 {dimension_numbers = #tpu.dot_dimension_numbers<[1], [0], [0], [1], [0, 0, 1, 1], [], []>} : vector<2x32xbf16>, vector<32x128xbf16>, vector<2x128xf32> -> vector<2x128xf32>
    %255 = arith.addf %252, %254 : vector<2x128xf32>
    %256 = vector.extract_strided_slice %255 {offsets = [0, 0], sizes = [2, 32], strides = [1, 1]} : vector<2x128xf32> to vector<2x32xf32>
    %257 = arith.negf %256 : vector<2x32xf32>
    %258 = math.exp %257 : vector<2x32xf32>
    %cst_58 = arith.constant 1.000000e+00 : f32
    %259 = vector.broadcast %cst_58 : f32 to vector<2x32xf32>
    %260 = arith.addf %259, %258 : vector<2x32xf32>
    %261 = arith.divf %259, %260 : vector<2x32xf32>
    %262 = vector.extract_strided_slice %255 {offsets = [0, 32], sizes = [2, 32], strides = [1, 1]} : vector<2x128xf32> to vector<2x32xf32>
    %263 = arith.negf %262 : vector<2x32xf32>
    %264 = math.exp %263 : vector<2x32xf32>
    %cst_59 = arith.constant 1.000000e+00 : f32
    %265 = vector.broadcast %cst_59 : f32 to vector<2x32xf32>
    %266 = arith.addf %265, %264 : vector<2x32xf32>
    %267 = arith.divf %265, %266 : vector<2x32xf32>
    %268 = vector.extract_strided_slice %255 {offsets = [0, 64], sizes = [2, 32], strides = [1, 1]} : vector<2x128xf32> to vector<2x32xf32>
    %269 = math.tanh %268 : vector<2x32xf32>
    %270 = vector.extract_strided_slice %255 {offsets = [0, 96], sizes = [2, 32], strides = [1, 1]} : vector<2x128xf32> to vector<2x32xf32>
    %271 = arith.negf %270 : vector<2x32xf32>
    %272 = math.exp %271 : vector<2x32xf32>
    %cst_60 = arith.constant 1.000000e+00 : f32
    %273 = vector.broadcast %cst_60 : f32 to vector<2x32xf32>
    %274 = arith.addf %273, %272 : vector<2x32xf32>
    %275 = arith.divf %273, %274 : vector<2x32xf32>
    %276 = arith.mulf %267, %248 : vector<2x32xf32>
    %277 = arith.mulf %261, %269 : vector<2x32xf32>
    %278 = arith.addf %276, %277 : vector<2x32xf32>
    %279 = math.tanh %278 : vector<2x32xf32>
    %280 = arith.mulf %275, %279 : vector<2x32xf32>
    %c8_i32 = arith.constant 8 : i32
    %c0_61 = arith.constant 0 : index
    %c0_62 = arith.constant 0 : index
    %281 = vector.load %arg7[%c0_61, %c0_62] : memref<2x32xf32, #tpu.memory_space<vmem>>, vector<2x32xf32>
    tpu.vector_store %arg7[%c0_61, %c0_62], %280 {strides = array<i32>} : memref<2x32xf32, #tpu.memory_space<vmem>>, vector<2x32xf32>,
    return
  }
  func.func @transform_0(%arg0: i32) -> (i32, i32, i32) {
    %c0_i32 = arith.constant 0 : i32
    %c0_i32_0 = arith.constant 0 : i32
    %c0_i32_1 = arith.constant 0 : i32
    return %arg0, %c0_i32, %c0_i32_0 : i32, i32, i32
  }
  func.func @transform_1(%arg0: i32) -> (i32, i32) {
    %c0_i32 = arith.constant 0 : i32
    %c0_i32_0 = arith.constant 0 : i32
    %c0_i32_1 = arith.constant 0 : i32
    return %c0_i32, %c0_i32_0 : i32, i32
  }
  func.func @transform_2(%arg0: i32) -> (i32, i32) {
    %c0_i32 = arith.constant 0 : i32
    %c0_i32_0 = arith.constant 0 : i32
    %c0_i32_1 = arith.constant 0 : i32
    return %c0_i32, %c0_i32_0 : i32, i32
  }
  func.func @transform_3(%arg0: i32) -> (i32, i32) {
    %c0_i32 = arith.constant 0 : i32
    %c0_i32_0 = arith.constant 0 : i32
    %c0_i32_1 = arith.constant 0 : i32
    return %c0_i32, %c0_i32_0 : i32, i32
  }
  func.func @transform_4(%arg0: i32) -> (i32, i32) {
    %c0_i32 = arith.constant 0 : i32
    %c0_i32_0 = arith.constant 0 : i32
    %c0_i32_1 = arith.constant 0 : i32
    return %c0_i32, %c0_i32_0 : i32, i32
  }
  func.func @transform_5(%arg0: i32) -> (i32, i32) {
    %c0_i32 = arith.constant 0 : i32
    %c0_i32_0 = arith.constant 0 : i32
    %c0_i32_1 = arith.constant 0 : i32
    return %c0_i32, %c0_i32_0 : i32, i32
  }
  func.func @transform_6(%arg0: i32) -> (i32, i32) {
    %c0_i32 = arith.constant 0 : i32
    %c0_i32_0 = arith.constant 0 : i32
    return %arg0, %c0_i32 : i32, i32
  }
}

module attributes {stable_mosaic.version = 11 : i64} {
  func.func @_nsa_fused_kernel(%arg0: i32, %arg1: memref<2x8x32xf32, #tpu.memory_space<vmem>>, %arg2: memref<32x96xbf16, #tpu.memory_space<vmem>>, %arg3: memref<1x96xf32, #tpu.memory_space<vmem>>, %arg4: memref<32x128xbf16, #tpu.memory_space<vmem>>, %arg5: memref<32x128xbf16, #tpu.memory_space<vmem>>, %arg6: memref<1x128xf32, #tpu.memory_space<vmem>>, %arg7: memref<2x32xf32, #tpu.memory_space<vmem>>, %arg8: memref<16x128xf32, #tpu.memory_space<vmem>>) attributes {dimension_semantics = [#tpu.dimension_semantics<parallel>], iteration_bounds = array<i64: 1>, scalar_prefetch = 0 : i64, scratch_operands = 1 : i64, tpu.core_type = #tpu.core_type<tc>, window_params = [{transform_indices = @transform_0, window_bounds = array<i64: 2, 8, 32>}, {pipeline_mode = #tpu.pipeline_mode<synchronous>, transform_indices = @transform_1, window_bounds = array<i64: 32, 96>}, {pipeline_mode = #tpu.pipeline_mode<synchronous>, transform_indices = @transform_2, window_bounds = array<i64: 1, 96>}, {pipeline_mode = #tpu.pipeline_mode<synchronous>, transform_indices = @transform_3, window_bounds = array<i64: 32, 128>}, {pipeline_mode = #tpu.pipeline_mode<synchronous>, transform_indices = @transform_4, window_bounds = array<i64: 32, 128>}, {pipeline_mode = #tpu.pipeline_mode<synchronous>, transform_indices = @transform_5, window_bounds = array<i64: 1, 128>}, {transform_indices = @transform_6, window_bounds = array<i64: 2, 32>}]} {
    %c0 = arith.constant 0 : index
    %c0_0 = arith.constant 0 : index
    %c0_1 = arith.constant 0 : index
    %0 = vector.load %arg1[%c0, %c0_0, %c0_1] : memref<2x8x32xf32, #tpu.memory_space<vmem>>, vector<2x8x32xf32>
    %1 = vector.shape_cast %0 : vector<2x8x32xf32> to vector<16x32xf32>
    %2 = arith.truncf %1 : vector<16x32xf32> to vector<16x32xbf16>
    %c0_2 = arith.constant 0 : index
    %c0_3 = arith.constant 0 : index
    %3 = vector.load %arg2[%c0_2, %c0_3] : memref<32x96xbf16, #tpu.memory_space<vmem>>, vector<32x96xbf16>
    %cst = arith.constant dense<0.000000e+00> : vector<16x96xf32>
    %4 = tpu.matmul %2, %3, %cst {dimension_numbers = #tpu.dot_dimension_numbers<[1], [0], [0], [1], [0, 0, 1, 1], [], []>} : vector<16x32xbf16>, vector<32x96xbf16>, vector<16x96xf32> -> vector<16x96xf32>
    %c0_4 = arith.constant 0 : index
    %c0_5 = arith.constant 0 : index
    %5 = vector.load %arg3[%c0_4, %c0_5] : memref<1x96xf32, #tpu.memory_space<vmem>>, vector<1x96xf32>
    %6 = vector.broadcast %5 : vector<1x96xf32> to vector<16x96xf32>
    %7 = arith.addf %4, %6 : vector<16x96xf32>
    %8 = vector.extract_strided_slice %7 {offsets = [0, 0], sizes = [16, 32], strides = [1, 1]} : vector<16x96xf32> to vector<16x32xf32>
    %9 = vector.shape_cast %8 : vector<16x32xf32> to vector<2x8x32xf32>
    %10 = vector.extract_strided_slice %7 {offsets = [0, 32], sizes = [16, 32], strides = [1, 1]} : vector<16x96xf32> to vector<16x32xf32>
    %11 = vector.shape_cast %10 : vector<16x32xf32> to vector<2x8x32xf32>
    %12 = vector.extract_strided_slice %7 {offsets = [0, 64], sizes = [16, 32], strides = [1, 1]} : vector<16x96xf32> to vector<16x32xf32>
    %13 = vector.shape_cast %12 : vector<16x32xf32> to vector<2x8x32xf32>
    %14 = arith.truncf %9 : vector<2x8x32xf32> to vector<2x8x32xbf16>
    %15 = arith.truncf %11 : vector<2x8x32xf32> to vector<2x8x32xbf16>
    "tpu.trace_start"() <{level = 10 : i32, message = "bnd,bmd->bnm"}> : () -> ()
    %cst_6 = arith.constant dense<0.000000e+00> : vector<2x8x8xf32>
    %16 = tpu.matmul %14, %15, %cst_6 {dimension_numbers = #tpu.dot_dimension_numbers<[2], [2], [1], [1], [0, 0, 0, 1, 1, 1], [0], [0]>} : vector<2x8x32xbf16>, vector<2x8x32xbf16>, vector<2x8x8xf32> -> vector<2x8x8xf32>
    "tpu.trace_stop"() : () -> ()
    %cst_7 = arith.constant dense<0xFF800000> : vector<2x8xf32>
    %17 = vector.multi_reduction <maximumf>, %16, %cst_7 [2] : vector<2x8x8xf32> to vector<2x8xf32>
    %18 = vector.shape_cast %17 : vector<2x8xf32> to vector<2x8x1xf32>
    %19 = vector.broadcast %18 : vector<2x8x1xf32> to vector<2x8x8xf32>
    %20 = arith.subf %16, %19 : vector<2x8x8xf32>
    %21 = math.exp %20 : vector<2x8x8xf32>
    %cst_8 = arith.constant dense<0.000000e+00> : vector<2x8xf32>
    %22 = vector.multi_reduction <add>, %21, %cst_8 [2] : vector<2x8x8xf32> to vector<2x8xf32>
    %23 = vector.shape_cast %22 : vector<2x8xf32> to vector<2x8x1xf32>
    %24 = tpu.reciprocal %23 {approx = true} : vector<2x8x1xf32> -> vector<2x8x1xf32>
    %25 = vector.broadcast %24 : vector<2x8x1xf32> to vector<2x8x8xf32>
    %26 = arith.mulf %21, %25 : vector<2x8x8xf32>
    %27 = arith.truncf %26 : vector<2x8x8xf32> to vector<2x8x8xbf16>
    %28 = arith.truncf %13 : vector<2x8x32xf32> to vector<2x8x32xbf16>
    "tpu.trace_start"() <{level = 10 : i32, message = "bnm,bmd->bnd"}> : () -> ()
    %cst_9 = arith.constant dense<0.000000e+00> : vector<2x8x32xf32>
    %29 = tpu.matmul %27, %28, %cst_9 {dimension_numbers = #tpu.dot_dimension_numbers<[2], [1], [1], [2], [0, 0, 0, 1, 1, 2], [0], [0]>} : vector<2x8x8xbf16>, vector<2x8x32xbf16>, vector<2x8x32xf32> -> vector<2x8x32xf32>
    "tpu.trace_stop"() : () -> ()
    %30 = vector.shape_cast %29 : vector<2x8x32xf32> to vector<16x32xf32>
    %31 = arith.truncf %30 : vector<16x32xf32> to vector<16x32xbf16>
    %c0_10 = arith.constant 0 : index
    %c0_11 = arith.constant 0 : index
    %32 = vector.load %arg4[%c0_10, %c0_11] : memref<32x128xbf16, #tpu.memory_space<vmem>>, vector<32x128xbf16>
    %cst_12 = arith.constant dense<0.000000e+00> : vector<16x128xf32>
    %33 = tpu.matmul %31, %32, %cst_12 {dimension_numbers = #tpu.dot_dimension_numbers<[1], [0], [0], [1], [0, 0, 1, 1], [], []>} : vector<16x32xbf16>, vector<32x128xbf16>, vector<16x128xf32> -> vector<16x128xf32>
    %c0_13 = arith.constant 0 : index
    %c0_14 = arith.constant 0 : index
    %34 = vector.load %arg6[%c0_13, %c0_14] : memref<1x128xf32, #tpu.memory_space<vmem>>, vector<1x128xf32>
    %35 = vector.broadcast %34 : vector<1x128xf32> to vector<16x128xf32>
    %36 = arith.addf %33, %35 : vector<16x128xf32>
    %c0_15 = arith.constant 0 : index
    %c0_16 = arith.constant 0 : index
    %37 = vector.load %arg8[%c0_15, %c0_16] : memref<16x128xf32, #tpu.memory_space<vmem>>, vector<16x128xf32>
    tpu.vector_store %arg8[%c0_15, %c0_16], %36 {strides = array<i32>} : memref<16x128xf32, #tpu.memory_space<vmem>>, vector<16x128xf32>,
    %c0_17 = arith.constant 0 : index
    %c0_18 = arith.constant 0 : index
    %38 = vector.load %arg5[%c0_17, %c0_18] : memref<32x128xbf16, #tpu.memory_space<vmem>>, vector<32x128xbf16>
    %cst_19 = arith.constant 0.000000e+00 : f32
    %39 = vector.broadcast %cst_19 : f32 to vector<2x32xf32>
    %cst_20 = arith.constant 0.000000e+00 : f32
    %40 = vector.broadcast %cst_20 : f32 to vector<2x32xf32>
    %c0_i32 = arith.constant 0 : i32
    %41 = arith.index_cast %c0_i32 : i32 to index
    %c0_21 = arith.constant 0 : index
    %42 = tpu.strided_load %arg8[%41, %c0_21] {strides = array<i32: 8, 1>} : memref<16x128xf32, #tpu.memory_space<vmem>>, vector<2x128xf32>
    %43 = arith.truncf %39 : vector<2x32xf32> to vector<2x32xbf16>
    %cst_22 = arith.constant dense<0.000000e+00> : vector<2x128xf32>
    %44 = tpu.matmul %43, %38, %cst_22 {dimension_numbers = #tpu.dot_dimension_numbers<[1], [0], [0], [1], [0, 0, 1, 1], [], []>} : vector<2x32xbf16>, vector<32x128xbf16>, vector<2x128xf32> -> vector<2x128xf32>
    %45 = arith.addf %42, %44 : vector<2x128xf32>
    %46 = vector.extract_strided_slice %45 {offsets = [0, 0], sizes = [2, 32], strides = [1, 1]} : vector<2x128xf32> to vector<2x32xf32>
    %47 = arith.negf %46 : vector<2x32xf32>
    %48 = math.exp %47 : vector<2x32xf32>
    %cst_23 = arith.constant 1.000000e+00 : f32
    %49 = vector.broadcast %cst_23 : f32 to vector<2x32xf32>
    %50 = arith.addf %49, %48 : vector<2x32xf32>
    %51 = arith.divf %49, %50 : vector<2x32xf32>
    %52 = vector.extract_strided_slice %45 {offsets = [0, 32], sizes = [2, 32], strides = [1, 1]} : vector<2x128xf32> to vector<2x32xf32>
    %53 = arith.negf %52 : vector<2x32xf32>
    %54 = math.exp %53 : vector<2x32xf32>
    %cst_24 = arith.constant 1.000000e+00 : f32
    %55 = vector.broadcast %cst_24 : f32 to vector<2x32xf32>
    %56 = arith.addf %55, %54 : vector<2x32xf32>
    %57 = arith.divf %55, %56 : vector<2x32xf32>
    %58 = vector.extract_strided_slice %45 {offsets = [0, 64], sizes = [2, 32], strides = [1, 1]} : vector<2x128xf32> to vector<2x32xf32>
    %59 = math.tanh %58 : vector<2x32xf32>
    %60 = vector.extract_strided_slice %45 {offsets = [0, 96], sizes = [2, 32], strides = [1, 1]} : vector<2x128xf32> to vector<2x32xf32>
    %61 = arith.negf %60 : vector<2x32xf32>
    %62 = math.exp %61 : vector<2x32xf32>
    %cst_25 = arith.constant 1.000000e+00 : f32
    %63 = vector.broadcast %cst_25 : f32 to vector<2x32xf32>
    %64 = arith.addf %63, %62 : vector<2x32xf32>
    %65 = arith.divf %63, %64 : vector<2x32xf32>
    %66 = arith.mulf %57, %40 : vector<2x32xf32>
    %67 = arith.mulf %51, %59 : vector<2x32xf32>
    %68 = arith.addf %66, %67 : vector<2x32xf32>
    %69 = math.tanh %68 : vector<2x32xf32>
    %70 = arith.mulf %65, %69 : vector<2x32xf32>
    %c1_i32 = arith.constant 1 : i32
    %71 = arith.index_cast %c1_i32 : i32 to index
    %c0_26 = arith.constant 0 : index
    %72 = tpu.strided_load %arg8[%71, %c0_26] {strides = array<i32: 8, 1>} : memref<16x128xf32, #tpu.memory_space<vmem>>, vector<2x128xf32>
    %73 = arith.truncf %70 : vector<2x32xf32> to vector<2x32xbf16>
    %cst_27 = arith.constant dense<0.000000e+00> : vector<2x128xf32>
    %74 = tpu.matmul %73, %38, %cst_27 {dimension_numbers = #tpu.dot_dimension_numbers<[1], [0], [0], [1], [0, 0, 1, 1], [], []>} : vector<2x32xbf16>, vector<32x128xbf16>, vector<2x128xf32> -> vector<2x128xf32>
    %75 = arith.addf %72, %74 : vector<2x128xf32>
    %76 = vector.extract_strided_slice %75 {offsets = [0, 0], sizes = [2, 32], strides = [1, 1]} : vector<2x128xf32> to vector<2x32xf32>
    %77 = arith.negf %76 : vector<2x32xf32>
    %78 = math.exp %77 : vector<2x32xf32>
    %cst_28 = arith.constant 1.000000e+00 : f32
    %79 = vector.broadcast %cst_28 : f32 to vector<2x32xf32>
    %80 = arith.addf %79, %78 : vector<2x32xf32>
    %81 = arith.divf %79, %80 : vector<2x32xf32>
    %82 = vector.extract_strided_slice %75 {offsets = [0, 32], sizes = [2, 32], strides = [1, 1]} : vector<2x128xf32> to vector<2x32xf32>
    %83 = arith.negf %82 : vector<2x32xf32>
    %84 = math.exp %83 : vector<2x32xf32>
    %cst_29 = arith.constant 1.000000e+00 : f32
    %85 = vector.broadcast %cst_29 : f32 to vector<2x32xf32>
    %86 = arith.addf %85, %84 : vector<2x32xf32>
    %87 = arith.divf %85, %86 : vector<2x32xf32>
    %88 = vector.extract_strided_slice %75 {offsets = [0, 64], sizes = [2, 32], strides = [1, 1]} : vector<2x128xf32> to vector<2x32xf32>
    %89 = math.tanh %88 : vector<2x32xf32>
    %90 = vector.extract_strided_slice %75 {offsets = [0, 96], sizes = [2, 32], strides = [1, 1]} : vector<2x128xf32> to vector<2x32xf32>
    %91 = arith.negf %90 : vector<2x32xf32>
    %92 = math.exp %91 : vector<2x32xf32>
    %cst_30 = arith.constant 1.000000e+00 : f32
    %93 = vector.broadcast %cst_30 : f32 to vector<2x32xf32>
    %94 = arith.addf %93, %92 : vector<2x32xf32>
    %95 = arith.divf %93, %94 : vector<2x32xf32>
    %96 = arith.mulf %87, %68 : vector<2x32xf32>
    %97 = arith.mulf %81, %89 : vector<2x32xf32>
    %98 = arith.addf %96, %97 : vector<2x32xf32>
    %99 = math.tanh %98 : vector<2x32xf32>
    %100 = arith.mulf %95, %99 : vector<2x32xf32>
    %c2_i32 = arith.constant 2 : i32
    %101 = arith.index_cast %c2_i32 : i32 to index
    %c0_31 = arith.constant 0 : index
    %102 = tpu.strided_load %arg8[%101, %c0_31] {strides = array<i32: 8, 1>} : memref<16x128xf32, #tpu.memory_space<vmem>>, vector<2x128xf32>
    %103 = arith.truncf %100 : vector<2x32xf32> to vector<2x32xbf16>
    %cst_32 = arith.constant dense<0.000000e+00> : vector<2x128xf32>
    %104 = tpu.matmul %103, %38, %cst_32 {dimension_numbers = #tpu.dot_dimension_numbers<[1], [0], [0], [1], [0, 0, 1, 1], [], []>} : vector<2x32xbf16>, vector<32x128xbf16>, vector<2x128xf32> -> vector<2x128xf32>
    %105 = arith.addf %102, %104 : vector<2x128xf32>
    %106 = vector.extract_strided_slice %105 {offsets = [0, 0], sizes = [2, 32], strides = [1, 1]} : vector<2x128xf32> to vector<2x32xf32>
    %107 = arith.negf %106 : vector<2x32xf32>
    %108 = math.exp %107 : vector<2x32xf32>
    %cst_33 = arith.constant 1.000000e+00 : f32
    %109 = vector.broadcast %cst_33 : f32 to vector<2x32xf32>
    %110 = arith.addf %109, %108 : vector<2x32xf32>
    %111 = arith.divf %109, %110 : vector<2x32xf32>
    %112 = vector.extract_strided_slice %105 {offsets = [0, 32], sizes = [2, 32], strides = [1, 1]} : vector<2x128xf32> to vector<2x32xf32>
    %113 = arith.negf %112 : vector<2x32xf32>
    %114 = math.exp %113 : vector<2x32xf32>
    %cst_34 = arith.constant 1.000000e+00 : f32
    %115 = vector.broadcast %cst_34 : f32 to vector<2x32xf32>
    %116 = arith.addf %115, %114 : vector<2x32xf32>
    %117 = arith.divf %115, %116 : vector<2x32xf32>
    %118 = vector.extract_strided_slice %105 {offsets = [0, 64], sizes = [2, 32], strides = [1, 1]} : vector<2x128xf32> to vector<2x32xf32>
    %119 = math.tanh %118 : vector<2x32xf32>
    %120 = vector.extract_strided_slice %105 {offsets = [0, 96], sizes = [2, 32], strides = [1, 1]} : vector<2x128xf32> to vector<2x32xf32>
    %121 = arith.negf %120 : vector<2x32xf32>
    %122 = math.exp %121 : vector<2x32xf32>
    %cst_35 = arith.constant 1.000000e+00 : f32
    %123 = vector.broadcast %cst_35 : f32 to vector<2x32xf32>
    %124 = arith.addf %123, %122 : vector<2x32xf32>
    %125 = arith.divf %123, %124 : vector<2x32xf32>
    %126 = arith.mulf %117, %98 : vector<2x32xf32>
    %127 = arith.mulf %111, %119 : vector<2x32xf32>
    %128 = arith.addf %126, %127 : vector<2x32xf32>
    %129 = math.tanh %128 : vector<2x32xf32>
    %130 = arith.mulf %125, %129 : vector<2x32xf32>
    %c3_i32 = arith.constant 3 : i32
    %131 = arith.index_cast %c3_i32 : i32 to index
    %c0_36 = arith.constant 0 : index
    %132 = tpu.strided_load %arg8[%131, %c0_36] {strides = array<i32: 8, 1>} : memref<16x128xf32, #tpu.memory_space<vmem>>, vector<2x128xf32>
    %133 = arith.truncf %130 : vector<2x32xf32> to vector<2x32xbf16>
    %cst_37 = arith.constant dense<0.000000e+00> : vector<2x128xf32>
    %134 = tpu.matmul %133, %38, %cst_37 {dimension_numbers = #tpu.dot_dimension_numbers<[1], [0], [0], [1], [0, 0, 1, 1], [], []>} : vector<2x32xbf16>, vector<32x128xbf16>, vector<2x128xf32> -> vector<2x128xf32>
    %135 = arith.addf %132, %134 : vector<2x128xf32>
    %136 = vector.extract_strided_slice %135 {offsets = [0, 0], sizes = [2, 32], strides = [1, 1]} : vector<2x128xf32> to vector<2x32xf32>
    %137 = arith.negf %136 : vector<2x32xf32>
    %138 = math.exp %137 : vector<2x32xf32>
    %cst_38 = arith.constant 1.000000e+00 : f32
    %139 = vector.broadcast %cst_38 : f32 to vector<2x32xf32>
    %140 = arith.addf %139, %138 : vector<2x32xf32>
    %141 = arith.divf %139, %140 : vector<2x32xf32>
    %142 = vector.extract_strided_slice %135 {offsets = [0, 32], sizes = [2, 32], strides = [1, 1]} : vector<2x128xf32> to vector<2x32xf32>
    %143 = arith.negf %142 : vector<2x32xf32>
    %144 = math.exp %143 : vector<2x32xf32>
    %cst_39 = arith.constant 1.000000e+00 : f32
    %145 = vector.broadcast %cst_39 : f32 to vector<2x32xf32>
    %146 = arith.addf %145, %144 : vector<2x32xf32>
    %147 = arith.divf %145, %146 : vector<2x32xf32>
    %148 = vector.extract_strided_slice %135 {offsets = [0, 64], sizes = [2, 32], strides = [1, 1]} : vector<2x128xf32> to vector<2x32xf32>
    %149 = math.tanh %148 : vector<2x32xf32>
    %150 = vector.extract_strided_slice %135 {offsets = [0, 96], sizes = [2, 32], strides = [1, 1]} : vector<2x128xf32> to vector<2x32xf32>
    %151 = arith.negf %150 : vector<2x32xf32>
    %152 = math.exp %151 : vector<2x32xf32>
    %cst_40 = arith.constant 1.000000e+00 : f32
    %153 = vector.broadcast %cst_40 : f32 to vector<2x32xf32>
    %154 = arith.addf %153, %152 : vector<2x32xf32>
    %155 = arith.divf %153, %154 : vector<2x32xf32>
    %156 = arith.mulf %147, %128 : vector<2x32xf32>
    %157 = arith.mulf %141, %149 : vector<2x32xf32>
    %158 = arith.addf %156, %157 : vector<2x32xf32>
    %159 = math.tanh %158 : vector<2x32xf32>
    %160 = arith.mulf %155, %159 : vector<2x32xf32>
    %c4_i32 = arith.constant 4 : i32
    %161 = arith.index_cast %c4_i32 : i32 to index
    %c0_41 = arith.constant 0 : index
    %162 = tpu.strided_load %arg8[%161, %c0_41] {strides = array<i32: 8, 1>} : memref<16x128xf32, #tpu.memory_space<vmem>>, vector<2x128xf32>
    %163 = arith.truncf %160 : vector<2x32xf32> to vector<2x32xbf16>
    %cst_42 = arith.constant dense<0.000000e+00> : vector<2x128xf32>
    %164 = tpu.matmul %163, %38, %cst_42 {dimension_numbers = #tpu.dot_dimension_numbers<[1], [0], [0], [1], [0, 0, 1, 1], [], []>} : vector<2x32xbf16>, vector<32x128xbf16>, vector<2x128xf32> -> vector<2x128xf32>
    %165 = arith.addf %162, %164 : vector<2x128xf32>
    %166 = vector.extract_strided_slice %165 {offsets = [0, 0], sizes = [2, 32], strides = [1, 1]} : vector<2x128xf32> to vector<2x32xf32>
    %167 = arith.negf %166 : vector<2x32xf32>
    %168 = math.exp %167 : vector<2x32xf32>
    %cst_43 = arith.constant 1.000000e+00 : f32
    %169 = vector.broadcast %cst_43 : f32 to vector<2x32xf32>
    %170 = arith.addf %169, %168 : vector<2x32xf32>
    %171 = arith.divf %169, %170 : vector<2x32xf32>
    %172 = vector.extract_strided_slice %165 {offsets = [0, 32], sizes = [2, 32], strides = [1, 1]} : vector<2x128xf32> to vector<2x32xf32>
    %173 = arith.negf %172 : vector<2x32xf32>
    %174 = math.exp %173 : vector<2x32xf32>
    %cst_44 = arith.constant 1.000000e+00 : f32
    %175 = vector.broadcast %cst_44 : f32 to vector<2x32xf32>
    %176 = arith.addf %175, %174 : vector<2x32xf32>
    %177 = arith.divf %175, %176 : vector<2x32xf32>
    %178 = vector.extract_strided_slice %165 {offsets = [0, 64], sizes = [2, 32], strides = [1, 1]} : vector<2x128xf32> to vector<2x32xf32>
    %179 = math.tanh %178 : vector<2x32xf32>
    %180 = vector.extract_strided_slice %165 {offsets = [0, 96], sizes = [2, 32], strides = [1, 1]} : vector<2x128xf32> to vector<2x32xf32>
    %181 = arith.negf %180 : vector<2x32xf32>
    %182 = math.exp %181 : vector<2x32xf32>
    %cst_45 = arith.constant 1.000000e+00 : f32
    %183 = vector.broadcast %cst_45 : f32 to vector<2x32xf32>
    %184 = arith.addf %183, %182 : vector<2x32xf32>
    %185 = arith.divf %183, %184 : vector<2x32xf32>
    %186 = arith.mulf %177, %158 : vector<2x32xf32>
    %187 = arith.mulf %171, %179 : vector<2x32xf32>
    %188 = arith.addf %186, %187 : vector<2x32xf32>
    %189 = math.tanh %188 : vector<2x32xf32>
    %190 = arith.mulf %185, %189 : vector<2x32xf32>
    %c5_i32 = arith.constant 5 : i32
    %191 = arith.index_cast %c5_i32 : i32 to index
    %c0_46 = arith.constant 0 : index
    %192 = tpu.strided_load %arg8[%191, %c0_46] {strides = array<i32: 8, 1>} : memref<16x128xf32, #tpu.memory_space<vmem>>, vector<2x128xf32>
    %193 = arith.truncf %190 : vector<2x32xf32> to vector<2x32xbf16>
    %cst_47 = arith.constant dense<0.000000e+00> : vector<2x128xf32>
    %194 = tpu.matmul %193, %38, %cst_47 {dimension_numbers = #tpu.dot_dimension_numbers<[1], [0], [0], [1], [0, 0, 1, 1], [], []>} : vector<2x32xbf16>, vector<32x128xbf16>, vector<2x128xf32> -> vector<2x128xf32>
    %195 = arith.addf %192, %194 : vector<2x128xf32>
    %196 = vector.extract_strided_slice %195 {offsets = [0, 0], sizes = [2, 32], strides = [1, 1]} : vector<2x128xf32> to vector<2x32xf32>
    %197 = arith.negf %196 : vector<2x32xf32>
    %198 = math.exp %197 : vector<2x32xf32>
    %cst_48 = arith.constant 1.000000e+00 : f32
    %199 = vector.broadcast %cst_48 : f32 to vector<2x32xf32>
    %200 = arith.addf %199, %198 : vector<2x32xf32>
    %201 = arith.divf %199, %200 : vector<2x32xf32>
    %202 = vector.extract_strided_slice %195 {offsets = [0, 32], sizes = [2, 32], strides = [1, 1]} : vector<2x128xf32> to vector<2x32xf32>
    %203 = arith.negf %202 : vector<2x32xf32>
    %204 = math.exp %203 : vector<2x32xf32>
    %cst_49 = arith.constant 1.000000e+00 : f32
    %205 = vector.broadcast %cst_49 : f32 to vector<2x32xf32>
    %206 = arith.addf %205, %204 : vector<2x32xf32>
    %207 = arith.divf %205, %206 : vector<2x32xf32>
    %208 = vector.extract_strided_slice %195 {offsets = [0, 64], sizes = [2, 32], strides = [1, 1]} : vector<2x128xf32> to vector<2x32xf32>
    %209 = math.tanh %208 : vector<2x32xf32>
    %210 = vector.extract_strided_slice %195 {offsets = [0, 96], sizes = [2, 32], strides = [1, 1]} : vector<2x128xf32> to vector<2x32xf32>
    %211 = arith.negf %210 : vector<2x32xf32>
    %212 = math.exp %211 : vector<2x32xf32>
    %cst_50 = arith.constant 1.000000e+00 : f32
    %213 = vector.broadcast %cst_50 : f32 to vector<2x32xf32>
    %214 = arith.addf %213, %212 : vector<2x32xf32>
    %215 = arith.divf %213, %214 : vector<2x32xf32>
    %216 = arith.mulf %207, %188 : vector<2x32xf32>
    %217 = arith.mulf %201, %209 : vector<2x32xf32>
    %218 = arith.addf %216, %217 : vector<2x32xf32>
    %219 = math.tanh %218 : vector<2x32xf32>
    %220 = arith.mulf %215, %219 : vector<2x32xf32>
    %c6_i32 = arith.constant 6 : i32
    %221 = arith.index_cast %c6_i32 : i32 to index
    %c0_51 = arith.constant 0 : index
    %222 = tpu.strided_load %arg8[%221, %c0_51] {strides = array<i32: 8, 1>} : memref<16x128xf32, #tpu.memory_space<vmem>>, vector<2x128xf32>
    %223 = arith.truncf %220 : vector<2x32xf32> to vector<2x32xbf16>
    %cst_52 = arith.constant dense<0.000000e+00> : vector<2x128xf32>
    %224 = tpu.matmul %223, %38, %cst_52 {dimension_numbers = #tpu.dot_dimension_numbers<[1], [0], [0], [1], [0, 0, 1, 1], [], []>} : vector<2x32xbf16>, vector<32x128xbf16>, vector<2x128xf32> -> vector<2x128xf32>
    %225 = arith.addf %222, %224 : vector<2x128xf32>
    %226 = vector.extract_strided_slice %225 {offsets = [0, 0], sizes = [2, 32], strides = [1, 1]} : vector<2x128xf32> to vector<2x32xf32>
    %227 = arith.negf %226 : vector<2x32xf32>
    %228 = math.exp %227 : vector<2x32xf32>
    %cst_53 = arith.constant 1.000000e+00 : f32
    %229 = vector.broadcast %cst_53 : f32 to vector<2x32xf32>
    %230 = arith.addf %229, %228 : vector<2x32xf32>
    %231 = arith.divf %229, %230 : vector<2x32xf32>
    %232 = vector.extract_strided_slice %225 {offsets = [0, 32], sizes = [2, 32], strides = [1, 1]} : vector<2x128xf32> to vector<2x32xf32>
    %233 = arith.negf %232 : vector<2x32xf32>
    %234 = math.exp %233 : vector<2x32xf32>
    %cst_54 = arith.constant 1.000000e+00 : f32
    %235 = vector.broadcast %cst_54 : f32 to vector<2x32xf32>
    %236 = arith.addf %235, %234 : vector<2x32xf32>
    %237 = arith.divf %235, %236 : vector<2x32xf32>
    %238 = vector.extract_strided_slice %225 {offsets = [0, 64], sizes = [2, 32], strides = [1, 1]} : vector<2x128xf32> to vector<2x32xf32>
    %239 = math.tanh %238 : vector<2x32xf32>
    %240 = vector.extract_strided_slice %225 {offsets = [0, 96], sizes = [2, 32], strides = [1, 1]} : vector<2x128xf32> to vector<2x32xf32>
    %241 = arith.negf %240 : vector<2x32xf32>
    %242 = math.exp %241 : vector<2x32xf32>
    %cst_55 = arith.constant 1.000000e+00 : f32
    %243 = vector.broadcast %cst_55 : f32 to vector<2x32xf32>
    %244 = arith.addf %243, %242 : vector<2x32xf32>
    %245 = arith.divf %243, %244 : vector<2x32xf32>
    %246 = arith.mulf %237, %218 : vector<2x32xf32>
    %247 = arith.mulf %231, %239 : vector<2x32xf32>
    %248 = arith.addf %246, %247 : vector<2x32xf32>
    %249 = math.tanh %248 : vector<2x32xf32>
    %250 = arith.mulf %245, %249 : vector<2x32xf32>
    %c7_i32 = arith.constant 7 : i32
    %251 = arith.index_cast %c7_i32 : i32 to index
    %c0_56 = arith.constant 0 : index
    %252 = tpu.strided_load %arg8[%251, %c0_56] {strides = array<i32: 8, 1>} : memref<16x128xf32, #tpu.memory_space<vmem>>, vector<2x128xf32>
    %253 = arith.truncf %250 : vector<2x32xf32> to vector<2x32xbf16>
    %cst_57 = arith.constant dense<0.000000e+00> : vector<2x128xf32>
    %254 = tpu.matmul %253, %38, %cst_57 {dimension_numbers = #tpu.dot_dimension_numbers<[1], [0], [0], [1], [0, 0, 1, 1], [], []>} : vector<2x32xbf16>, vector<32x128xbf16>, vector<2x128xf32> -> vector<2x128xf32>
    %255 = arith.addf %252, %254 : vector<2x128xf32>
    %256 = vector.extract_strided_slice %255 {offsets = [0, 0], sizes = [2, 32], strides = [1, 1]} : vector<2x128xf32> to vector<2x32xf32>
    %257 = arith.negf %256 : vector<2x32xf32>
    %258 = math.exp %257 : vector<2x32xf32>
    %cst_58 = arith.constant 1.000000e+00 : f32
    %259 = vector.broadcast %cst_58 : f32 to vector<2x32xf32>
    %260 = arith.addf %259, %258 : vector<2x32xf32>
    %261 = arith.divf %259, %260 : vector<2x32xf32>
    %262 = vector.extract_strided_slice %255 {offsets = [0, 32], sizes = [2, 32], strides = [1, 1]} : vector<2x128xf32> to vector<2x32xf32>
    %263 = arith.negf %262 : vector<2x32xf32>
    %264 = math.exp %263 : vector<2x32xf32>
    %cst_59 = arith.constant 1.000000e+00 : f32
    %265 = vector.broadcast %cst_59 : f32 to vector<2x32xf32>
    %266 = arith.addf %265, %264 : vector<2x32xf32>
    %267 = arith.divf %265, %266 : vector<2x32xf32>
    %268 = vector.extract_strided_slice %255 {offsets = [0, 64], sizes = [2, 32], strides = [1, 1]} : vector<2x128xf32> to vector<2x32xf32>
    %269 = math.tanh %268 : vector<2x32xf32>
    %270 = vector.extract_strided_slice %255 {offsets = [0, 96], sizes = [2, 32], strides = [1, 1]} : vector<2x128xf32> to vector<2x32xf32>
    %271 = arith.negf %270 : vector<2x32xf32>
    %272 = math.exp %271 : vector<2x32xf32>
    %cst_60 = arith.constant 1.000000e+00 : f32
    %273 = vector.broadcast %cst_60 : f32 to vector<2x32xf32>
    %274 = arith.addf %273, %272 : vector<2x32xf32>
    %275 = arith.divf %273, %274 : vector<2x32xf32>
    %276 = arith.mulf %267, %248 : vector<2x32xf32>
    %277 = arith.mulf %261, %269 : vector<2x32xf32>
    %278 = arith.addf %276, %277 : vector<2x32xf32>
    %279 = math.tanh %278 : vector<2x32xf32>
    %280 = arith.mulf %275, %279 : vector<2x32xf32>
    %c8_i32 = arith.constant 8 : i32
    %c0_61 = arith.constant 0 : index
    %c0_62 = arith.constant 0 : index
    %281 = vector.load %arg7[%c0_61, %c0_62] : memref<2x32xf32, #tpu.memory_space<vmem>>, vector<2x32xf32>
    tpu.vector_store %arg7[%c0_61, %c0_62], %280 {strides = array<i32>} : memref<2x32xf32, #tpu.memory_space<vmem>>, vector<2x32xf32>,
    return
  }
  func.func @transform_0(%arg0: i32) -> (i32, i32, i32) {
    %c0_i32 = arith.constant 0 : i32
    %c0_i32_0 = arith.constant 0 : i32
    %c0_i32_1 = arith.constant 0 : i32
    return %arg0, %c0_i32, %c0_i32_0 : i32, i32, i32
  }
  func.func @transform_1(%arg0: i32) -> (i32, i32) {
    %c0_i32 = arith.constant 0 : i32
    %c0_i32_0 = arith.constant 0 : i32
    %c0_i32_1 = arith.constant 0 : i32
    return %c0_i32, %c0_i32_0 : i32, i32
  }
  func.func @transform_2(%arg0: i32) -> (i32, i32) {
    %c0_i32 = arith.constant 0 : i32
    %c0_i32_0 = arith.constant 0 : i32
    %c0_i32_1 = arith.constant 0 : i32
    return %c0_i32, %c0_i32_0 : i32, i32
  }
  func.func @transform_3(%arg0: i32) -> (i32, i32) {
    %c0_i32 = arith.constant 0 : i32
    %c0_i32_0 = arith.constant 0 : i32
    %c0_i32_1 = arith.constant 0 : i32
    return %c0_i32, %c0_i32_0 : i32, i32
  }
  func.func @transform_4(%arg0: i32) -> (i32, i32) {
    %c0_i32 = arith.constant 0 : i32
    %c0_i32_0 = arith.constant 0 : i32
    %c0_i32_1 = arith.constant 0 : i32
    return %c0_i32, %c0_i32_0 : i32, i32
  }
  func.func @transform_5(%arg0: i32) -> (i32, i32) {
    %c0_i32 = arith.constant 0 : i32
    %c0_i32_0 = arith.constant 0 : i32
    %c0_i32_1 = arith.constant 0 : i32
    return %c0_i32, %c0_i32_0 : i32, i32
  }
  func.func @transform_6(%arg0: i32) -> (i32, i32) {
    %c0_i32 = arith.constant 0 : i32
    %c0_i32_0 = arith.constant 0 : i32
    return %arg0, %c0_i32 : i32, i32
  }
}

</mosaic_0001>

<llo_original>
// kernel: tpu_custom_call.1
$region0: #{tpu_custom_call.1}
  #allocation0 [shape = 'u32[]', space=smem, size = 0x4, offset = 0x4, fixed_abs, tag = 'smem constant byte address 0x4 - core index']
  #allocation1 [shape = 'u32[144,128]{1,0:T(1,128)}', space=vmem, size = 0x12000, scoped, tag = 'internal scratch']
  #allocation2 [shape = 'f32[16,128]{1,0:T(8,128)}', space=vmem, size = 0x2000, scoped, tag = 'scratch operand']
  %s0 = inlined_call_operand.hbm [shape: f32[2,8,32], index: 0, kind: input, shape index: {}]
  %s1 = inlined_call_operand.hbm [shape: bf16[32,96], index: 1, kind: input, shape index: {}]
  %s2 = inlined_call_operand.vmem [shape: f32[1,96], index: 2, kind: input, shape index: {}]
  %s3 = inlined_call_operand.hbm [shape: bf16[32,128], index: 3, kind: input, shape index: {}]
  %s4 = inlined_call_operand.hbm [shape: bf16[32,128], index: 4, kind: input, shape index: {}]
  %s5 = inlined_call_operand.vmem [shape: f32[1,128], index: 5, kind: input, shape index: {}]
  %s6 = inlined_call_operand.hbm [shape: f32[2,32], index: 6, kind: output, shape index: {}]
  %s7 = sld [smem:[#allocation0]]
  $region50: #{tpu_custom_call.1} parent=0
    _
  %s9 = ssub.s32 1, %s7
  %s10 = scalar_select 0, %s9, %s7
  $region1: #{tpu_custom_call.1} parent=0
    #allocation3 [shape = 'u8[8192]{0}', space=vmem, size = 0x2000, scoped, tag = 'input window, operand 0, single buffered']
    #allocation4 [shape = 's32[1]{0}', space=sflag, size = 0x4, scoped, tag = 'scoped memory for tpu_custom_call.1']
    #allocation5 [shape = 's32[1]{0}', space=sflag, size = 0x4, scoped, tag = 'scoped memory for tpu_custom_call.1']
    #allocation6 [shape = 'u8[8192]{0}', space=vmem, size = 0x2000, scoped, tag = 'input window, operand 1, single buffered']
    #allocation7 [shape = 's32[1]{0}', space=sflag, size = 0x4, scoped, tag = 'scoped memory for tpu_custom_call.1']
    #allocation8 [shape = 'u8[8192]{0}', space=vmem, size = 0x2000, scoped, tag = 'input window, operand 3, single buffered']
    #allocation9 [shape = 'u8[8192]{0}', space=vmem, size = 0x2000, scoped, tag = 'input window, operand 4, single buffered']
    #allocation10 [shape = 's32[1]{0}', space=sflag, size = 0x4, scoped, tag = 'scoped memory for tpu_custom_call.1']
    #allocation11 [shape = 'u8[1024]{0}', space=vmem, size = 0x400, scoped, tag = 'output window, operand 0, single buffered']
    %11 = vsyncpa [#allocation4], 0
    %12 = vsyncpa [#allocation7], 0
    %13 = vsyncpa [#allocation10], 0
    %14 = vsyncpa [#allocation5], 0
    // Predicated region
    $region2: #{tpu_custom_call.1} parent=1 // pred_check
      _
    $region3: #{tpu_custom_call.1} parent=1 // pred_check_branch
      %16 = sbr.rel (0) target = $region5
    $region4: #{tpu_custom_call.1} parent=1 // pred_region
      %s18 = ssub.s32 256, 256
      %19 = vsyncadd [#allocation4], %s18
      %s20 = sshll.u32 [#allocation3], 4
      %s21 = int_to_ptr.vmem [resolvable:$true] %s20
      %26 = dma.hbm_to_vmem [thread:$0]  %s0, 256, %s21, [#allocation4], 128, 128, 8
    $region5: #{tpu_custom_call.1} parent=1 // pred_fallthru
      _
    // Predicated region
    $region6: #{tpu_custom_call.1} parent=1 // pred_check
      _
    $region7: #{tpu_custom_call.1} parent=1 // pred_check_branch
      %28 = sbr.rel (0) target = $region9
    $region8: #{tpu_custom_call.1} parent=1 // pred_region
      %s30 = ssub.s32 256, 256
      %31 = vsyncadd [#allocation7], %s30
      %s32 = sshll.u32 [#allocation6], 4
      %s33 = int_to_ptr.vmem [resolvable:$true] %s32
      %38 = dma.hbm_to_vmem [thread:$0]  %s1, 256, %s33, [#allocation7], 64, 64, 4
    $region9: #{tpu_custom_call.1} parent=1 // pred_fallthru
      _
    // Predicated region
    $region10: #{tpu_custom_call.1} parent=1 // pred_check
      _
    $region11: #{tpu_custom_call.1} parent=1 // pred_check_branch
      %40 = sbr.rel (0) target = $region13
    $region12: #{tpu_custom_call.1} parent=1 // pred_region
      _
    $region13: #{tpu_custom_call.1} parent=1 // pred_fallthru
      _
    // Predicated region
    $region14: #{tpu_custom_call.1} parent=1 // pred_check
      _
    $region15: #{tpu_custom_call.1} parent=1 // pred_check_branch
      %42 = sbr.rel (0) target = $region17
    $region16: #{tpu_custom_call.1} parent=1 // pred_region
      %s44 = ssub.s32 256, 256
      %45 = vsyncadd [#allocation7], %s44
      %s46 = sshll.u32 [#allocation8], 4
      %s47 = int_to_ptr.vmem [resolvable:$true] %s46
      %52 = dma.hbm_to_vmem [thread:$0]  %s3, 256, %s47, [#allocation7], 64, 64, 4
    $region17: #{tpu_custom_call.1} parent=1 // pred_fallthru
      _
    // Predicated region
    $region18: #{tpu_custom_call.1} parent=1 // pred_check
      _
    $region19: #{tpu_custom_call.1} parent=1 // pred_check_branch
      %54 = sbr.rel (0) target = $region21
    $region20: #{tpu_custom_call.1} parent=1 // pred_region
      %s56 = ssub.s32 256, 256
      %57 = vsyncadd [#allocation10], %s56
      %s58 = sshll.u32 [#allocation9], 4
      %s59 = int_to_ptr.vmem [resolvable:$true] %s58
      %64 = dma.hbm_to_vmem [thread:$0]  %s4, 256, %s59, [#allocation10], 64, 64, 4
    $region21: #{tpu_custom_call.1} parent=1 // pred_fallthru
      _
    // Predicated region
    $region22: #{tpu_custom_call.1} parent=1 // pred_check
      _
    $region23: #{tpu_custom_call.1} parent=1 // pred_check_branch
      %66 = sbr.rel (0) target = $region25
    $region24: #{tpu_custom_call.1} parent=1 // pred_region
      _
    $region25: #{tpu_custom_call.1} parent=1 // pred_fallthru
      _
    // Predicated region
    $region26: #{tpu_custom_call.1} parent=1 // pred_check
      _
    $region27: #{tpu_custom_call.1} parent=1 // pred_check_branch
      %68 = sbr.rel (0) target = $region29
    $region28: #{tpu_custom_call.1} parent=1 // pred_region
      %69 = dma.done [#allocation4], 256
    $region29: #{tpu_custom_call.1} parent=1 // pred_fallthru
      _
    // Predicated region
    $region30: #{tpu_custom_call.1} parent=1 // pred_check
      _
    $region31: #{tpu_custom_call.1} parent=1 // pred_check_branch
      %71 = sbr.rel (0) target = $region33
    $region32: #{tpu_custom_call.1} parent=1 // pred_region
      %72 = dma.done [#allocation7], 256
    $region33: #{tpu_custom_call.1} parent=1 // pred_fallthru
      _
    // Predicated region
    $region34: #{tpu_custom_call.1} parent=1 // pred_check
      _
    $region35: #{tpu_custom_call.1} parent=1 // pred_check_branch
      %74 = sbr.rel (0) target = $region37
    $region36: #{tpu_custom_call.1} parent=1 // pred_region
      %75 = dma.done [#allocation7], 256
    $region37: #{tpu_custom_call.1} parent=1 // pred_fallthru
      _
    // Predicated region
    $region38: #{tpu_custom_call.1} parent=1 // pred_check
      _
    $region39: #{tpu_custom_call.1} parent=1 // pred_check_branch
      %77 = sbr.rel (0) target = $region41
    $region40: #{tpu_custom_call.1} parent=1 // pred_region
      %78 = dma.done [#allocation10], 256
    $region41: #{tpu_custom_call.1} parent=1 // pred_fallthru
      _
    %v80 = vld [vmem:[#allocation3] sm:$0xff]
    %v81 = vld [vmem:[#allocation3 + $0x8] sm:$0xff]
    %v82 = vpack.c.bf16 %v81, %v80
    %v83 = vld [vmem:[#allocation6] sm:$0xf]
    %v84 = vld [vmem:[#allocation6 + $0x4] sm:$0xf]
    %v85 = vld [vmem:[#allocation6 + $0x8] sm:$0xf]
    %v86 = vld [vmem:[#allocation6 + $0xc] sm:$0xf]
    %v87 = vld [vmem:[%s2] sm:$0x1]
    %v89 = vlaneseq
    %v90 = vshrl.u32 %v89, 7
    %v91 = vsub.s32 0, %v90
    %v92 = vrot.slane %v87, %v91
    %v98 = vunpack.c.l.b16 %v83
    %v99 = vunpack.c.l.b16 %v84
    %v100 = vunpack.c.l.b16 %v85
    %v101 = vunpack.c.l.b16 %v86
    %v102 = vpack.c.b16 %v99, %v98
    %v103 = vpack.c.b16 %v101, %v100
    %vm106 = vcmask 261120
    %v108 = vsel %vm106, %v82, 0
    %110 = vmatprep.subr.bf16.mxu0 0
    %111 = vmatpush1.bf16.msra.mxu0 %v102
    %112 = vmatprep.subr.bf16.mxu0 0
    %113 = vmatpush1.bf16.msra.mxu0 %v103
    %114 = vmatprep.subr.bf16.mxu0 0
    %115 = vmatpush1.bf16.msra.mxu0 0
    %116 = vmatprep.subr.bf16.mxu0 0
    %117 = vmatpush1.bf16.msra.mxu0 0
    %118 = vmatprep.subr.bf16.mxu0 0
    %119 = vmatpush1.bf16.msra.mxu0 0
    %120 = vmatprep.subr.bf16.mxu0 0
    %121 = vmatpush1.bf16.msra.mxu0 0
    %122 = vmatprep.subr.bf16.mxu0 0
    %123 = vmatpush1.bf16.msra.mxu0 0
    %124 = vmatprep.subr.bf16.mxu0 0
    %125 = vmatpush1.bf16.msra.mxu0 0
    %126 = vmatprep.subr.bf16.mxu0 0
    %127 = vmatpush1.bf16.msra.mxu0 0
    %128 = vmatprep.subr.bf16.mxu0 0
    %129 = vmatpush1.bf16.msra.mxu0 0
    %130 = vmatprep.subr.bf16.mxu0 0
    %131 = vmatpush1.bf16.msra.mxu0 0
    %132 = vmatprep.subr.bf16.mxu0 0
    %133 = vmatpush1.bf16.msra.mxu0 0
    %134 = vmatprep.subr.bf16.mxu0 0
    %135 = vmatpush1.bf16.msra.mxu0 0
    %136 = vmatprep.subr.bf16.mxu0 0
    %137 = vmatpush1.bf16.msra.mxu0 0
    %138 = vmatprep.subr.bf16.mxu0 0
    %139 = vmatpush1.bf16.msra.mxu0 0
    %140 = vmatprep.subr.bf16.mxu0 0
    %141 = vmatpush1.bf16.msra.mxu0 0
    %142 = vmatprep.mubr.bf16.mxu0 0
    %143 = vmatmul.mubr.bf16.gmra.mrb[0].mxu0 %v108
    %v144 = vpop.f32.mrb[0].mxu0
    %v145 = vadd.f32 %v92, %v144
    %v146 = vpop.f32.mrb[0].mxu0
    %v147 = vpop.f32.mrb[0].mxu0
    %v148 = vadd.f32 %v92, %v147
    %v149 = vpop.f32.mrb[0].mxu0
    %150 = vdwg.mxu0
    %v151 = vpack.c.bf16 %v145, %v145
    %v152 = vpack.c.bf16 %v148, %v148
    %154 = vrot.lane.b32.xlu0 %v151, 96
    %v155 = vpop.permute.xlu0 %154
    %v157 = vsel %vm106, %v151, 0
    %v160 = vsel %vm106, %v155, 0
    %162 = vmatprep.subr.bf16.mxu0 0
    %163 = vmatpush1.bf16.xpose.msra.mxu0 %v160
    %164 = vmatprep.subr.bf16.mxu0 0
    %165 = vmatpush1.bf16.xpose.msra.mxu0 0
    %166 = vmatprep.subr.bf16.mxu0 0
    %167 = vmatpush1.bf16.xpose.msra.mxu0 0
    %168 = vmatprep.subr.bf16.mxu0 0
    %169 = vmatpush1.bf16.xpose.msra.mxu0 0
    %170 = vmatprep.subr.bf16.mxu0 0
    %171 = vmatpush1.bf16.xpose.msra.mxu0 0
    %172 = vmatprep.subr.bf16.mxu0 0
    %173 = vmatpush1.bf16.xpose.msra.mxu0 0
    %174 = vmatprep.subr.bf16.mxu0 0
    %175 = vmatpush1.bf16.xpose.msra.mxu0 0
    %176 = vmatprep.subr.bf16.mxu0 0
    %177 = vmatpush1.bf16.xpose.msra.mxu0 0
    %178 = vmatprep.subr.bf16.mxu0 0
    %179 = vmatpush1.bf16.xpose.msra.mxu0 0
    %180 = vmatprep.subr.bf16.mxu0 0
    %181 = vmatpush1.bf16.xpose.msra.mxu0 0
    %182 = vmatprep.subr.bf16.mxu0 0
    %183 = vmatpush1.bf16.xpose.msra.mxu0 0
    %184 = vmatprep.subr.bf16.mxu0 0
    %185 = vmatpush1.bf16.xpose.msra.mxu0 0
    %186 = vmatprep.subr.bf16.mxu0 0
    %187 = vmatpush1.bf16.xpose.msra.mxu0 0
    %188 = vmatprep.subr.bf16.mxu0 0
    %189 = vmatpush1.bf16.xpose.msra.mxu0 0
    %190 = vmatprep.subr.bf16.mxu0 0
    %191 = vmatpush1.bf16.xpose.msra.mxu0 0
    %192 = vmatprep.subr.bf16.mxu0 0
    %193 = vmatpush1.bf16.xpose.msra.mxu0 0
    %194 = vmatprep.mubr.bf16.mxu0 0
    %195 = vmatmul.mubr.bf16.gmra.mrb[0].mxu0 %v157
    %v196 = vpop.f32.mrb[0].mxu0
    %v197 = vadd.f32 0.0, %v196
    %v198 = vpop.f32.mrb[0].mxu0
    %v199 = vpop.f32.mrb[0].mxu0
    %v200 = vpop.f32.mrb[0].mxu0
    %201 = vdwg.mxu0
    %203 = vrot.lane.b32.xlu0 %v152, 96
    %v204 = vpop.permute.xlu0 %203
    %v206 = vsel %vm106, %v152, 0
    %v209 = vsel %vm106, %v204, 0
    %211 = vmatprep.subr.bf16.mxu0 0
    %212 = vmatpush1.bf16.xpose.msra.mxu0 %v209
    %213 = vmatprep.subr.bf16.mxu0 0
    %214 = vmatpush1.bf16.xpose.msra.mxu0 0
    %215 = vmatprep.subr.bf16.mxu0 0
    %216 = vmatpush1.bf16.xpose.msra.mxu0 0
    %217 = vmatprep.subr.bf16.mxu0 0
    %218 = vmatpush1.bf16.xpose.msra.mxu0 0
    %219 = vmatprep.subr.bf16.mxu0 0
    %220 = vmatpush1.bf16.xpose.msra.mxu0 0
    %221 = vmatprep.subr.bf16.mxu0 0
    %222 = vmatpush1.bf16.xpose.msra.mxu0 0
    %223 = vmatprep.subr.bf16.mxu0 0
    %224 = vmatpush1.bf16.xpose.msra.mxu0 0
    %225 = vmatprep.subr.bf16.mxu0 0
    %226 = vmatpush1.bf16.xpose.msra.mxu0 0
    %227 = vmatprep.subr.bf16.mxu0 0
    %228 = vmatpush1.bf16.xpose.msra.mxu0 0
    %229 = vmatprep.subr.bf16.mxu0 0
    %230 = vmatpush1.bf16.xpose.msra.mxu0 0
    %231 = vmatprep.subr.bf16.mxu0 0
    %232 = vmatpush1.bf16.xpose.msra.mxu0 0
    %233 = vmatprep.subr.bf16.mxu0 0
    %234 = vmatpush1.bf16.xpose.msra.mxu0 0
    %235 = vmatprep.subr.bf16.mxu0 0
    %236 = vmatpush1.bf16.xpose.msra.mxu0 0
    %237 = vmatprep.subr.bf16.mxu0 0
    %238 = vmatpush1.bf16.xpose.msra.mxu0 0
    %239 = vmatprep.subr.bf16.mxu0 0
    %240 = vmatpush1.bf16.xpose.msra.mxu0 0
    %241 = vmatprep.subr.bf16.mxu0 0
    %242 = vmatpush1.bf16.xpose.msra.mxu0 0
    %243 = vmatprep.mubr.bf16.mxu0 0
    %244 = vmatmul.mubr.bf16.gmra.mrb[0].mxu0 %v206
    %v245 = vpop.f32.mrb[0].mxu0
    %v246 = vadd.f32 0.0, %v245
    %v247 = vpop.f32.mrb[0].mxu0
    %v248 = vpop.f32.mrb[0].mxu0
    %v249 = vpop.f32.mrb[0].mxu0
    %250 = vdwg.mxu0
    %vm251 = vcmask 64512
    %v252 = vsel %vm251, %v197, -inf
    %253 = vmax.xlane.f32.xlu0 %v252
    %v254 = vpop.xlane.xlu0 %253
    %v255 = vsel %vm251, %v246, -inf
    %256 = vmax.xlane.f32.xlu0 %v255
    %v257 = vpop.xlane.xlu0 %256
    %v258 = vsub.f32 %v197, %v254
    %v259 = vsub.f32 %v246, %v257
    %v260 = vmul.f32 %v258, 1.442695
    %v261 = vpow.pop %v260
    %v262 = vmul.f32 %v259, 1.442695
    %v263 = vpow.pop %v262
    %v264 = vsel %vm251, %v261, 0.0
    %265 = vadd.xlane.f32.xlu0 %v264
    %v266 = vpop.xlane.xlu0 %265
    %v267 = vsel %vm251, %v263, 0.0
    %268 = vadd.xlane.f32.xlu0 %v267
    %v269 = vpop.xlane.xlu0 %268
    %v270 = vrcp.pop %v266
    %v271 = vrcp.pop %v269
    %v272 = vmul.f32 %v261, %v270
    %v273 = vmul.f32 %v263, %v271
    %v274 = vpack.c.bf16 %v272, %v272
    %v275 = vpack.c.bf16 %v273, %v273
    %276 = vrot.lane.b32.xlu0 %v151, 64
    %v277 = vpop.permute.xlu0 %276
    %v279 = vsel %vm251, %v274, 0
    %vm281 = vcmask 1043456
    %v283 = vsel %vm281, %v277, 0
    %285 = vmatprep.subr.bf16.mxu0 0
    %286 = vmatpush1.bf16.msra.mxu0 %v283
    %287 = vmatprep.subr.bf16.mxu0 0
    %288 = vmatpush1.bf16.msra.mxu0 0
    %289 = vmatprep.subr.bf16.mxu0 0
    %290 = vmatpush1.bf16.msra.mxu0 0
    %291 = vmatprep.subr.bf16.mxu0 0
    %292 = vmatpush1.bf16.msra.mxu0 0
    %293 = vmatprep.subr.bf16.mxu0 0
    %294 = vmatpush1.bf16.msra.mxu0 0
    %295 = vmatprep.subr.bf16.mxu0 0
    %296 = vmatpush1.bf16.msra.mxu0 0
    %297 = vmatprep.subr.bf16.mxu0 0
    %298 = vmatpush1.bf16.msra.mxu0 0
    %299 = vmatprep.subr.bf16.mxu0 0
    %300 = vmatpush1.bf16.msra.mxu0 0
    %301 = vmatprep.subr.bf16.mxu0 0
    %302 = vmatpush1.bf16.msra.mxu0 0
    %303 = vmatprep.subr.bf16.mxu0 0
    %304 = vmatpush1.bf16.msra.mxu0 0
    %305 = vmatprep.subr.bf16.mxu0 0
    %306 = vmatpush1.bf16.msra.mxu0 0
    %307 = vmatprep.subr.bf16.mxu0 0
    %308 = vmatpush1.bf16.msra.mxu0 0
    %309 = vmatprep.subr.bf16.mxu0 0
    %310 = vmatpush1.bf16.msra.mxu0 0
    %311 = vmatprep.subr.bf16.mxu0 0
    %312 = vmatpush1.bf16.msra.mxu0 0
    %313 = vmatprep.subr.bf16.mxu0 0
    %314 = vmatpush1.bf16.msra.mxu0 0
    %315 = vmatprep.subr.bf16.mxu0 0
    %316 = vmatpush1.bf16.msra.mxu0 0
    %317 = vmatprep.mubr.bf16.mxu0 0
    %318 = vmatmul.mubr.bf16.gmra.mrb[0].mxu0 %v279
    %v319 = vpop.f32.mrb[0].mxu0
    %v320 = vadd.f32 0.0, %v319
    %v321 = vpop.f32.mrb[0].mxu0
    %v322 = vpop.f32.mrb[0].mxu0
    %v323 = vpop.f32.mrb[0].mxu0
    %324 = vdwg.mxu0
    %325 = vrot.lane.b32.xlu0 %v152, 64
    %v326 = vpop.permute.xlu0 %325
    %v328 = vsel %vm251, %v275, 0
    %v331 = vsel %vm281, %v326, 0
    %333 = vmatprep.subr.bf16.mxu0 0
    %334 = vmatpush1.bf16.msra.mxu0 %v331
    %335 = vmatprep.subr.bf16.mxu0 0
    %336 = vmatpush1.bf16.msra.mxu0 0
    %337 = vmatprep.subr.bf16.mxu0 0
    %338 = vmatpush1.bf16.msra.mxu0 0
    %339 = vmatprep.subr.bf16.mxu0 0
    %340 = vmatpush1.bf16.msra.mxu0 0
    %341 = vmatprep.subr.bf16.mxu0 0
    %342 = vmatpush1.bf16.msra.mxu0 0
    %343 = vmatprep.subr.bf16.mxu0 0
    %344 = vmatpush1.bf16.msra.mxu0 0
    %345 = vmatprep.subr.bf16.mxu0 0
    %346 = vmatpush1.bf16.msra.mxu0 0
    %347 = vmatprep.subr.bf16.mxu0 0
    %348 = vmatpush1.bf16.msra.mxu0 0
    %349 = vmatprep.subr.bf16.mxu0 0
    %350 = vmatpush1.bf16.msra.mxu0 0
    %351 = vmatprep.subr.bf16.mxu0 0
    %352 = vmatpush1.bf16.msra.mxu0 0
    %353 = vmatprep.subr.bf16.mxu0 0
    %354 = vmatpush1.bf16.msra.mxu0 0
    %355 = vmatprep.subr.bf16.mxu0 0
    %356 = vmatpush1.bf16.msra.mxu0 0
    %357 = vmatprep.subr.bf16.mxu0 0
    %358 = vmatpush1.bf16.msra.mxu0 0
    %359 = vmatprep.subr.bf16.mxu0 0
    %360 = vmatpush1.bf16.msra.mxu0 0
    %361 = vmatprep.subr.bf16.mxu0 0
    %362 = vmatpush1.bf16.msra.mxu0 0
    %363 = vmatprep.subr.bf16.mxu0 0
    %364 = vmatpush1.bf16.msra.mxu0 0
    %365 = vmatprep.mubr.bf16.mxu0 0
    %366 = vmatmul.mubr.bf16.gmra.mrb[0].mxu0 %v328
    %v367 = vpop.f32.mrb[0].mxu0
    %v368 = vadd.f32 0.0, %v367
    %v369 = vpop.f32.mrb[0].mxu0
    %v370 = vpop.f32.mrb[0].mxu0
    %v371 = vpop.f32.mrb[0].mxu0
    %372 = vdwg.mxu0
    %v373 = vpack.c.bf16 %v368, %v320
    %v374 = vld [vmem:[#allocation8] sm:$0xf]
    %v375 = vld [vmem:[#allocation8 + $0x4] sm:$0xf]
    %v376 = vld [vmem:[#allocation8 + $0x8] sm:$0xf]
    %v377 = vld [vmem:[#allocation8 + $0xc] sm:$0xf]
    %v378 = vld [vmem:[%s5] sm:$0x1]
    %v380 = vlaneseq
    %v381 = vshrl.u32 %v380, 7
    %v382 = vsub.s32 0, %v381
    %v383 = vrot.slane %v378, %v382
    %v389 = vunpack.c.l.b16 %v374
    %v390 = vunpack.c.l.b16 %v375
    %v391 = vunpack.c.l.b16 %v376
    %v392 = vunpack.c.l.b16 %v377
    %v393 = vpack.c.b16 %v390, %v389
    %v394 = vpack.c.b16 %v392, %v391
    %v398 = vsel %vm106, %v373, 0
    %400 = vmatprep.subr.bf16.mxu0 0
    %401 = vmatpush1.bf16.msra.mxu0 %v393
    %402 = vmatprep.subr.bf16.mxu0 0
    %403 = vmatpush1.bf16.msra.mxu0 %v394
    %404 = vmatprep.subr.bf16.mxu0 0
    %405 = vmatpush1.bf16.msra.mxu0 0
    %406 = vmatprep.subr.bf16.mxu0 0
    %407 = vmatpush1.bf16.msra.mxu0 0
    %408 = vmatprep.subr.bf16.mxu0 0
    %409 = vmatpush1.bf16.msra.mxu0 0
    %410 = vmatprep.subr.bf16.mxu0 0
    %411 = vmatpush1.bf16.msra.mxu0 0
    %412 = vmatprep.subr.bf16.mxu0 0
    %413 = vmatpush1.bf16.msra.mxu0 0
    %414 = vmatprep.subr.bf16.mxu0 0
    %415 = vmatpush1.bf16.msra.mxu0 0
    %416 = vmatprep.subr.bf16.mxu0 0
    %417 = vmatpush1.bf16.msra.mxu0 0
    %418 = vmatprep.subr.bf16.mxu0 0
    %419 = vmatpush1.bf16.msra.mxu0 0
    %420 = vmatprep.subr.bf16.mxu0 0
    %421 = vmatpush1.bf16.msra.mxu0 0
    %422 = vmatprep.subr.bf16.mxu0 0
    %423 = vmatpush1.bf16.msra.mxu0 0
    %424 = vmatprep.subr.bf16.mxu0 0
    %425 = vmatpush1.bf16.msra.mxu0 0
    %426 = vmatprep.subr.bf16.mxu0 0
    %427 = vmatpush1.bf16.msra.mxu0 0
    %428 = vmatprep.subr.bf16.mxu0 0
    %429 = vmatpush1.bf16.msra.mxu0 0
    %430 = vmatprep.subr.bf16.mxu0 0
    %431 = vmatpush1.bf16.msra.mxu0 0
    %432 = vmatprep.mubr.bf16.mxu0 0
    %433 = vmatmul.mubr.bf16.gmra.mrb[0].mxu0 %v398
    %v434 = vpop.f32.mrb[0].mxu0
    %v435 = vadd.f32 %v383, %v434
    %v436 = vpop.f32.mrb[0].mxu0
    %v437 = vpop.f32.mrb[0].mxu0
    %v438 = vadd.f32 %v383, %v437
    %v439 = vpop.f32.mrb[0].mxu0
    %440 = vdwg.mxu0
    %441 = vst [vmem:[#allocation2] sm:$0xff] %v435
    %442 = vst [vmem:[#allocation2 + $0x8] sm:$0xff] %v438
    %v443 = vld [vmem:[#allocation9] sm:$0xf]
    %v444 = vld [vmem:[#allocation9 + $0x4] sm:$0xf]
    %v445 = vld [vmem:[#allocation9 + $0x8] sm:$0xf]
    %v446 = vld [vmem:[#allocation9 + $0xc] sm:$0xf]
    %v447 = vld [vmem:[#allocation2] ss:$8 sm:$0x3]
    %v452 = vunpack.c.l.b16 %v443
    %v453 = vunpack.c.l.b16 %v444
    %v454 = vunpack.c.l.b16 %v445
    %v455 = vunpack.c.l.b16 %v446
    %v456 = vpack.c.b16 %v453, %v452
    %v457 = vpack.c.b16 %v455, %v454
    %v461 = vsel %vm106, 0, 0
    %463 = vmatprep.subr.bf16.mxu0 0
    %464 = vmatpush1.bf16.msra.mxu0 %v456
    %465 = vmatprep.subr.bf16.mxu0 0
    %466 = vmatpush1.bf16.msra.mxu0 %v457
    %467 = vmatprep.subr.bf16.mxu0 0
    %468 = vmatpush1.bf16.msra.mxu0 0
    %469 = vmatprep.subr.bf16.mxu0 0
    %470 = vmatpush1.bf16.msra.mxu0 0
    %471 = vmatprep.subr.bf16.mxu0 0
    %472 = vmatpush1.bf16.msra.mxu0 0
    %473 = vmatprep.subr.bf16.mxu0 0
    %474 = vmatpush1.bf16.msra.mxu0 0
    %475 = vmatprep.subr.bf16.mxu0 0
    %476 = vmatpush1.bf16.msra.mxu0 0
    %477 = vmatprep.subr.bf16.mxu0 0
    %478 = vmatpush1.bf16.msra.mxu0 0
    %479 = vmatprep.subr.bf16.mxu0 0
    %480 = vmatpush1.bf16.msra.mxu0 0
    %481 = vmatprep.subr.bf16.mxu0 0
    %482 = vmatpush1.bf16.msra.mxu0 0
    %483 = vmatprep.subr.bf16.mxu0 0
    %484 = vmatpush1.bf16.msra.mxu0 0
    %485 = vmatprep.subr.bf16.mxu0 0
    %486 = vmatpush1.bf16.msra.mxu0 0
    %487 = vmatprep.subr.bf16.mxu0 0
    %488 = vmatpush1.bf16.msra.mxu0 0
    %489 = vmatprep.subr.bf16.mxu0 0
    %490 = vmatpush1.bf16.msra.mxu0 0
    %491 = vmatprep.subr.bf16.mxu0 0
    %492 = vmatpush1.bf16.msra.mxu0 0
    %493 = vmatprep.subr.bf16.mxu0 0
    %494 = vmatpush1.bf16.msra.mxu0 0
    %495 = vmatprep.mubr.bf16.mxu0 0
    %496 = vmatmul.mubr.bf16.gmra.mrb[0].mxu0 %v461
    %v497 = vpop.f32.mrb[0].mxu0
    %v498 = vadd.f32 0.0, %v497
    %v499 = vpop.f32.mrb[0].mxu0
    %v500 = vpop.f32.mrb[0].mxu0
    %v501 = vpop.f32.mrb[0].mxu0
    %502 = vdwg.mxu0
    %v503 = vadd.f32 %v447, %v498
    %v504 = vxor.u32 %v503, 2147483648
    %v505 = vmul.f32 %v504, 1.442695
    %v506 = vpow.pop %v505
    %v507 = vadd.f32 %v506, 1.0
    %v508 = vrcp.pop %v507
    %v509 = vmul.f32 1.0, %v508
    %v510 = vtanh.pop %v503
    %v511 = vmul.f32 %v509, 0.0
    %513 = vrot.lane.b32.xlu0 %v510, 64
    %v514 = vpop.permute.xlu0 %513
    %v516 = vmul.f32 %v509, %v514
    %518 = vrot.lane.b32.xlu0 %v516, 32
    %v519 = vpop.permute.xlu0 %518
    %v521 = vadd.f32 %v511, %v519
    %v522 = vtanh.pop %v521
    %524 = vrot.lane.b32.xlu0 %v522, 64
    %v525 = vpop.permute.xlu0 %524
    %v527 = vmul.f32 %v509, %v525
    %s528 = scalar_lea.vmem [#allocation2], 1
    %v529 = vld [vmem:[%s528] ss:$8 sm:$0x3]
    %v530 = vpack.c.bf16 %v527, %v527
    %532 = vrot.lane.b32.xlu0 %v530, 32
    %v533 = vpop.permute.xlu0 %532
    %v535 = vsel %vm106, %v533, 0
    %537 = vmatprep.subr.bf16.mxu0 0
    %538 = vmatpush1.bf16.msra.mxu0 %v456
    %539 = vmatprep.subr.bf16.mxu0 0
    %540 = vmatpush1.bf16.msra.mxu0 %v457
    %541 = vmatprep.subr.bf16.mxu0 0
    %542 = vmatpush1.bf16.msra.mxu0 0
    %543 = vmatprep.subr.bf16.mxu0 0
    %544 = vmatpush1.bf16.msra.mxu0 0
    %545 = vmatprep.subr.bf16.mxu0 0
    %546 = vmatpush1.bf16.msra.mxu0 0
    %547 = vmatprep.subr.bf16.mxu0 0
    %548 = vmatpush1.bf16.msra.mxu0 0
    %549 = vmatprep.subr.bf16.mxu0 0
    %550 = vmatpush1.bf16.msra.mxu0 0
    %551 = vmatprep.subr.bf16.mxu0 0
    %552 = vmatpush1.bf16.msra.mxu0 0
    %553 = vmatprep.subr.bf16.mxu0 0
    %554 = vmatpush1.bf16.msra.mxu0 0
    %555 = vmatprep.subr.bf16.mxu0 0
    %556 = vmatpush1.bf16.msra.mxu0 0
    %557 = vmatprep.subr.bf16.mxu0 0
    %558 = vmatpush1.bf16.msra.mxu0 0
    %559 = vmatprep.subr.bf16.mxu0 0
    %560 = vmatpush1.bf16.msra.mxu0 0
    %561 = vmatprep.subr.bf16.mxu0 0
    %562 = vmatpush1.bf16.msra.mxu0 0
    %563 = vmatprep.subr.bf16.mxu0 0
    %564 = vmatpush1.bf16.msra.mxu0 0
    %565 = vmatprep.subr.bf16.mxu0 0
    %566 = vmatpush1.bf16.msra.mxu0 0
    %567 = vmatprep.subr.bf16.mxu0 0
    %568 = vmatpush1.bf16.msra.mxu0 0
    %569 = vmatprep.mubr.bf16.mxu0 0
    %570 = vmatmul.mubr.bf16.gmra.mrb[0].mxu0 %v535
    %v571 = vpop.f32.mrb[0].mxu0
    %v572 = vadd.f32 0.0, %v571
    %v573 = vpop.f32.mrb[0].mxu0
    %v574 = vpop.f32.mrb[0].mxu0
    %v575 = vpop.f32.mrb[0].mxu0
    %576 = vdwg.mxu0
    %v577 = vadd.f32 %v529, %v572
    %v578 = vxor.u32 %v577, 2147483648
    %v579 = vmul.f32 %v578, 1.442695
    %v580 = vpow.pop %v579
    %v581 = vadd.f32 %v580, 1.0
    %v582 = vrcp.pop %v581
    %v583 = vmul.f32 1.0, %v582
    %v584 = vtanh.pop %v577
    %v585 = vmul.f32 %v583, %v521
    %587 = vrot.lane.b32.xlu0 %v584, 64
    %v588 = vpop.permute.xlu0 %587
    %v590 = vmul.f32 %v583, %v588
    %592 = vrot.lane.b32.xlu0 %v590, 32
    %v593 = vpop.permute.xlu0 %592
    %v595 = vadd.f32 %v585, %v593
    %v596 = vtanh.pop %v595
    %598 = vrot.lane.b32.xlu0 %v596, 64
    %v599 = vpop.permute.xlu0 %598
    %v601 = vmul.f32 %v583, %v599
    %s602 = scalar_lea.vmem [#allocation2], 2
    %v603 = vld [vmem:[%s602] ss:$8 sm:$0x3]
    %v604 = vpack.c.bf16 %v601, %v601
    %606 = vrot.lane.b32.xlu0 %v604, 32
    %v607 = vpop.permute.xlu0 %606
    %v609 = vsel %vm106, %v607, 0
    %611 = vmatprep.subr.bf16.mxu0 0
    %612 = vmatpush1.bf16.msra.mxu0 %v456
    %613 = vmatprep.subr.bf16.mxu0 0
    %614 = vmatpush1.bf16.msra.mxu0 %v457
    %615 = vmatprep.subr.bf16.mxu0 0
    %616 = vmatpush1.bf16.msra.mxu0 0
    %617 = vmatprep.subr.bf16.mxu0 0
    %618 = vmatpush1.bf16.msra.mxu0 0
    %619 = vmatprep.subr.bf16.mxu0 0
    %620 = vmatpush1.bf16.msra.mxu0 0
    %621 = vmatprep.subr.bf16.mxu0 0
    %622 = vmatpush1.bf16.msra.mxu0 0
    %623 = vmatprep.subr.bf16.mxu0 0
    %624 = vmatpush1.bf16.msra.mxu0 0
    %625 = vmatprep.subr.bf16.mxu0 0
    %626 = vmatpush1.bf16.msra.mxu0 0
    %627 = vmatprep.subr.bf16.mxu0 0
    %628 = vmatpush1.bf16.msra.mxu0 0
    %629 = vmatprep.subr.bf16.mxu0 0
    %630 = vmatpush1.bf16.msra.mxu0 0
    %631 = vmatprep.subr.bf16.mxu0 0
    %632 = vmatpush1.bf16.msra.mxu0 0
    %633 = vmatprep.subr.bf16.mxu0 0
    %634 = vmatpush1.bf16.msra.mxu0 0
    %635 = vmatprep.subr.bf16.mxu0 0
    %636 = vmatpush1.bf16.msra.mxu0 0
    %637 = vmatprep.subr.bf16.mxu0 0
    %638 = vmatpush1.bf16.msra.mxu0 0
    %639 = vmatprep.subr.bf16.mxu0 0
    %640 = vmatpush1.bf16.msra.mxu0 0
    %641 = vmatprep.subr.bf16.mxu0 0
    %642 = vmatpush1.bf16.msra.mxu0 0
    %643 = vmatprep.mubr.bf16.mxu0 0
    %644 = vmatmul.mubr.bf16.gmra.mrb[0].mxu0 %v609
    %v645 = vpop.f32.mrb[0].mxu0
    %v646 = vadd.f32 0.0, %v645
    %v647 = vpop.f32.mrb[0].mxu0
    %v648 = vpop.f32.mrb[0].mxu0
    %v649 = vpop.f32.mrb[0].mxu0
    %650 = vdwg.mxu0
    %v651 = vadd.f32 %v603, %v646
    %v652 = vxor.u32 %v651, 2147483648
    %v653 = vmul.f32 %v652, 1.442695
    %v654 = vpow.pop %v653
    %v655 = vadd.f32 %v654, 1.0
    %v656 = vrcp.pop %v655
    %v657 = vmul.f32 1.0, %v656
    %v658 = vtanh.pop %v651
    %v659 = vmul.f32 %v657, %v595
    %661 = vrot.lane.b32.xlu0 %v658, 64
    %v662 = vpop.permute.xlu0 %661
    %v664 = vmul.f32 %v657, %v662
    %666 = vrot.lane.b32.xlu0 %v664, 32
    %v667 = vpop.permute.xlu0 %666
    %v669 = vadd.f32 %v659, %v667
    %v670 = vtanh.pop %v669
    %672 = vrot.lane.b32.xlu0 %v670, 64
    %v673 = vpop.permute.xlu0 %672
    %v675 = vmul.f32 %v657, %v673
    %s676 = scalar_lea.vmem [#allocation2], 3
    %v677 = vld [vmem:[%s676] ss:$8 sm:$0x3]
    %v678 = vpack.c.bf16 %v675, %v675
    %680 = vrot.lane.b32.xlu0 %v678, 32
    %v681 = vpop.permute.xlu0 %680
    %v683 = vsel %vm106, %v681, 0
    %685 = vmatprep.subr.bf16.mxu0 0
    %686 = vmatpush1.bf16.msra.mxu0 %v456
    %687 = vmatprep.subr.bf16.mxu0 0
    %688 = vmatpush1.bf16.msra.mxu0 %v457
    %689 = vmatprep.subr.bf16.mxu0 0
    %690 = vmatpush1.bf16.msra.mxu0 0
    %691 = vmatprep.subr.bf16.mxu0 0
    %692 = vmatpush1.bf16.msra.mxu0 0
    %693 = vmatprep.subr.bf16.mxu0 0
    %694 = vmatpush1.bf16.msra.mxu0 0
    %695 = vmatprep.subr.bf16.mxu0 0
    %696 = vmatpush1.bf16.msra.mxu0 0
    %697 = vmatprep.subr.bf16.mxu0 0
    %698 = vmatpush1.bf16.msra.mxu0 0
    %699 = vmatprep.subr.bf16.mxu0 0
    %700 = vmatpush1.bf16.msra.mxu0 0
    %701 = vmatprep.subr.bf16.mxu0 0
    %702 = vmatpush1.bf16.msra.mxu0 0
    %703 = vmatprep.subr.bf16.mxu0 0
    %704 = vmatpush1.bf16.msra.mxu0 0
    %705 = vmatprep.subr.bf16.mxu0 0
    %706 = vmatpush1.bf16.msra.mxu0 0
    %707 = vmatprep.subr.bf16.mxu0 0
    %708 = vmatpush1.bf16.msra.mxu0 0
    %709 = vmatprep.subr.bf16.mxu0 0
    %710 = vmatpush1.bf16.msra.mxu0 0
    %711 = vmatprep.subr.bf16.mxu0 0
    %712 = vmatpush1.bf16.msra.mxu0 0
    %713 = vmatprep.subr.bf16.mxu0 0
    %714 = vmatpush1.bf16.msra.mxu0 0
    %715 = vmatprep.subr.bf16.mxu0 0
    %716 = vmatpush1.bf16.msra.mxu0 0
    %717 = vmatprep.mubr.bf16.mxu0 0
    %718 = vmatmul.mubr.bf16.gmra.mrb[0].mxu0 %v683
    %v719 = vpop.f32.mrb[0].mxu0
    %v720 = vadd.f32 0.0, %v719
    %v721 = vpop.f32.mrb[0].mxu0
    %v722 = vpop.f32.mrb[0].mxu0
    %v723 = vpop.f32.mrb[0].mxu0
    %724 = vdwg.mxu0
    %v725 = vadd.f32 %v677, %v720
    %v726 = vxor.u32 %v725, 2147483648
    %v727 = vmul.f32 %v726, 1.442695
    %v728 = vpow.pop %v727
    %v729 = vadd.f32 %v728, 1.0
    %v730 = vrcp.pop %v729
    %v731 = vmul.f32 1.0, %v730
    %v732 = vtanh.pop %v725
    %v733 = vmul.f32 %v731, %v669
    %735 = vrot.lane.b32.xlu0 %v732, 64
    %v736 = vpop.permute.xlu0 %735
    %v738 = vmul.f32 %v731, %v736
    %740 = vrot.lane.b32.xlu0 %v738, 32
    %v741 = vpop.permute.xlu0 %740
    %v743 = vadd.f32 %v733, %v741
    %v744 = vtanh.pop %v743
    %746 = vrot.lane.b32.xlu0 %v744, 64
    %v747 = vpop.permute.xlu0 %746
    %v749 = vmul.f32 %v731, %v747
    %s750 = scalar_lea.vmem [#allocation2], 4
    %v751 = vld [vmem:[%s750] ss:$8 sm:$0x3]
    %v752 = vpack.c.bf16 %v749, %v749
    %754 = vrot.lane.b32.xlu0 %v752, 32
    %v755 = vpop.permute.xlu0 %754
    %v757 = vsel %vm106, %v755, 0
    %759 = vmatprep.subr.bf16.mxu0 0
    %760 = vmatpush1.bf16.msra.mxu0 %v456
    %761 = vmatprep.subr.bf16.mxu0 0
    %762 = vmatpush1.bf16.msra.mxu0 %v457
    %763 = vmatprep.subr.bf16.mxu0 0
    %764 = vmatpush1.bf16.msra.mxu0 0
    %765 = vmatprep.subr.bf16.mxu0 0
    %766 = vmatpush1.bf16.msra.mxu0 0
    %767 = vmatprep.subr.bf16.mxu0 0
    %768 = vmatpush1.bf16.msra.mxu0 0
    %769 = vmatprep.subr.bf16.mxu0 0
    %770 = vmatpush1.bf16.msra.mxu0 0
    %771 = vmatprep.subr.bf16.mxu0 0
    %772 = vmatpush1.bf16.msra.mxu0 0
    %773 = vmatprep.subr.bf16.mxu0 0
    %774 = vmatpush1.bf16.msra.mxu0 0
    %775 = vmatprep.subr.bf16.mxu0 0
    %776 = vmatpush1.bf16.msra.mxu0 0
    %777 = vmatprep.subr.bf16.mxu0 0
    %778 = vmatpush1.bf16.msra.mxu0 0
    %779 = vmatprep.subr.bf16.mxu0 0
    %780 = vmatpush1.bf16.msra.mxu0 0
    %781 = vmatprep.subr.bf16.mxu0 0
    %782 = vmatpush1.bf16.msra.mxu0 0
    %783 = vmatprep.subr.bf16.mxu0 0
    %784 = vmatpush1.bf16.msra.mxu0 0
    %785 = vmatprep.subr.bf16.mxu0 0
    %786 = vmatpush1.bf16.msra.mxu0 0
    %787 = vmatprep.subr.bf16.mxu0 0
    %788 = vmatpush1.bf16.msra.mxu0 0
    %789 = vmatprep.subr.bf16.mxu0 0
    %790 = vmatpush1.bf16.msra.mxu0 0
    %791 = vmatprep.mubr.bf16.mxu0 0
    %792 = vmatmul.mubr.bf16.gmra.mrb[0].mxu0 %v757
    %v793 = vpop.f32.mrb[0].mxu0
    %v794 = vadd.f32 0.0, %v793
    %v795 = vpop.f32.mrb[0].mxu0
    %v796 = vpop.f32.mrb[0].mxu0
    %v797 = vpop.f32.mrb[0].mxu0
    %798 = vdwg.mxu0
    %v799 = vadd.f32 %v751, %v794
    %v800 = vxor.u32 %v799, 2147483648
    %v801 = vmul.f32 %v800, 1.442695
    %v802 = vpow.pop %v801
    %v803 = vadd.f32 %v802, 1.0
    %v804 = vrcp.pop %v803
    %v805 = vmul.f32 1.0, %v804
    %v806 = vtanh.pop %v799
    %v807 = vmul.f32 %v805, %v743
    %809 = vrot.lane.b32.xlu0 %v806, 64
    %v810 = vpop.permute.xlu0 %809
    %v812 = vmul.f32 %v805, %v810
    %814 = vrot.lane.b32.xlu0 %v812, 32
    %v815 = vpop.permute.xlu0 %814
    %v817 = vadd.f32 %v807, %v815
    %v818 = vtanh.pop %v817
    %820 = vrot.lane.b32.xlu0 %v818, 64
    %v821 = vpop.permute.xlu0 %820
    %v823 = vmul.f32 %v805, %v821
    %s824 = scalar_lea.vmem [#allocation2], 5
    %v825 = vld [vmem:[%s824] ss:$8 sm:$0x3]
    %v826 = vpack.c.bf16 %v823, %v823
    %828 = vrot.lane.b32.xlu0 %v826, 32
    %v829 = vpop.permute.xlu0 %828
    %v831 = vsel %vm106, %v829, 0
    %833 = vmatprep.subr.bf16.mxu0 0
    %834 = vmatpush1.bf16.msra.mxu0 %v456
    %835 = vmatprep.subr.bf16.mxu0 0
    %836 = vmatpush1.bf16.msra.mxu0 %v457
    %837 = vmatprep.subr.bf16.mxu0 0
    %838 = vmatpush1.bf16.msra.mxu0 0
    %839 = vmatprep.subr.bf16.mxu0 0
    %840 = vmatpush1.bf16.msra.mxu0 0
    %841 = vmatprep.subr.bf16.mxu0 0
    %842 = vmatpush1.bf16.msra.mxu0 0
    %843 = vmatprep.subr.bf16.mxu0 0
    %844 = vmatpush1.bf16.msra.mxu0 0
    %845 = vmatprep.subr.bf16.mxu0 0
    %846 = vmatpush1.bf16.msra.mxu0 0
    %847 = vmatprep.subr.bf16.mxu0 0
    %848 = vmatpush1.bf16.msra.mxu0 0
    %849 = vmatprep.subr.bf16.mxu0 0
    %850 = vmatpush1.bf16.msra.mxu0 0
    %851 = vmatprep.subr.bf16.mxu0 0
    %852 = vmatpush1.bf16.msra.mxu0 0
    %853 = vmatprep.subr.bf16.mxu0 0
    %854 = vmatpush1.bf16.msra.mxu0 0
    %855 = vmatprep.subr.bf16.mxu0 0
    %856 = vmatpush1.bf16.msra.mxu0 0
    %857 = vmatprep.subr.bf16.mxu0 0
    %858 = vmatpush1.bf16.msra.mxu0 0
    %859 = vmatprep.subr.bf16.mxu0 0
    %860 = vmatpush1.bf16.msra.mxu0 0
    %861 = vmatprep.subr.bf16.mxu0 0
    %862 = vmatpush1.bf16.msra.mxu0 0
    %863 = vmatprep.subr.bf16.mxu0 0
    %864 = vmatpush1.bf16.msra.mxu0 0
    %865 = vmatprep.mubr.bf16.mxu0 0
    %866 = vmatmul.mubr.bf16.gmra.mrb[0].mxu0 %v831
    %v867 = vpop.f32.mrb[0].mxu0
    %v868 = vadd.f32 0.0, %v867
    %v869 = vpop.f32.mrb[0].mxu0
    %v870 = vpop.f32.mrb[0].mxu0
    %v871 = vpop.f32.mrb[0].mxu0
    %872 = vdwg.mxu0
    %v873 = vadd.f32 %v825, %v868
    %v874 = vxor.u32 %v873, 2147483648
    %v875 = vmul.f32 %v874, 1.442695
    %v876 = vpow.pop %v875
    %v877 = vadd.f32 %v876, 1.0
    %v878 = vrcp.pop %v877
    %v879 = vmul.f32 1.0, %v878
    %v880 = vtanh.pop %v873
    %v881 = vmul.f32 %v879, %v817
    %883 = vrot.lane.b32.xlu0 %v880, 64
    %v884 = vpop.permute.xlu0 %883
    %v886 = vmul.f32 %v879, %v884
    %888 = vrot.lane.b32.xlu0 %v886, 32
    %v889 = vpop.permute.xlu0 %888
    %v891 = vadd.f32 %v881, %v889
    %v892 = vtanh.pop %v891
    %894 = vrot.lane.b32.xlu0 %v892, 64
    %v895 = vpop.permute.xlu0 %894
    %v897 = vmul.f32 %v879, %v895
    %s898 = scalar_lea.vmem [#allocation2], 6
    %v899 = vld [vmem:[%s898] ss:$8 sm:$0x3]
    %v900 = vpack.c.bf16 %v897, %v897
    %902 = vrot.lane.b32.xlu0 %v900, 32
    %v903 = vpop.permute.xlu0 %902
    %v905 = vsel %vm106, %v903, 0
    %907 = vmatprep.subr.bf16.mxu0 0
    %908 = vmatpush1.bf16.msra.mxu0 %v456
    %909 = vmatprep.subr.bf16.mxu0 0
    %910 = vmatpush1.bf16.msra.mxu0 %v457
    %911 = vmatprep.subr.bf16.mxu0 0
    %912 = vmatpush1.bf16.msra.mxu0 0
    %913 = vmatprep.subr.bf16.mxu0 0
    %914 = vmatpush1.bf16.msra.mxu0 0
    %915 = vmatprep.subr.bf16.mxu0 0
    %916 = vmatpush1.bf16.msra.mxu0 0
    %917 = vmatprep.subr.bf16.mxu0 0
    %918 = vmatpush1.bf16.msra.mxu0 0
    %919 = vmatprep.subr.bf16.mxu0 0
    %920 = vmatpush1.bf16.msra.mxu0 0
    %921 = vmatprep.subr.bf16.mxu0 0
    %922 = vmatpush1.bf16.msra.mxu0 0
    %923 = vmatprep.subr.bf16.mxu0 0
    %924 = vmatpush1.bf16.msra.mxu0 0
    %925 = vmatprep.subr.bf16.mxu0 0
    %926 = vmatpush1.bf16.msra.mxu0 0
    %927 = vmatprep.subr.bf16.mxu0 0
    %928 = vmatpush1.bf16.msra.mxu0 0
    %929 = vmatprep.subr.bf16.mxu0 0
    %930 = vmatpush1.bf16.msra.mxu0 0
    %931 = vmatprep.subr.bf16.mxu0 0
    %932 = vmatpush1.bf16.msra.mxu0 0
    %933 = vmatprep.subr.bf16.mxu0 0
    %934 = vmatpush1.bf16.msra.mxu0 0
    %935 = vmatprep.subr.bf16.mxu0 0
    %936 = vmatpush1.bf16.msra.mxu0 0
    %937 = vmatprep.subr.bf16.mxu0 0
    %938 = vmatpush1.bf16.msra.mxu0 0
    %939 = vmatprep.mubr.bf16.mxu0 0
    %940 = vmatmul.mubr.bf16.gmra.mrb[0].mxu0 %v905
    %v941 = vpop.f32.mrb[0].mxu0
    %v942 = vadd.f32 0.0, %v941
    %v943 = vpop.f32.mrb[0].mxu0
    %v944 = vpop.f32.mrb[0].mxu0
    %v945 = vpop.f32.mrb[0].mxu0
    %946 = vdwg.mxu0
    %v947 = vadd.f32 %v899, %v942
    %v948 = vxor.u32 %v947, 2147483648
    %v949 = vmul.f32 %v948, 1.442695
    %v950 = vpow.pop %v949
    %v951 = vadd.f32 %v950, 1.0
    %v952 = vrcp.pop %v951
    %v953 = vmul.f32 1.0, %v952
    %v954 = vtanh.pop %v947
    %v955 = vmul.f32 %v953, %v891
    %957 = vrot.lane.b32.xlu0 %v954, 64
    %v958 = vpop.permute.xlu0 %957
    %v960 = vmul.f32 %v953, %v958
    %962 = vrot.lane.b32.xlu0 %v960, 32
    %v963 = vpop.permute.xlu0 %962
    %v965 = vadd.f32 %v955, %v963
    %v966 = vtanh.pop %v965
    %968 = vrot.lane.b32.xlu0 %v966, 64
    %v969 = vpop.permute.xlu0 %968
    %v971 = vmul.f32 %v953, %v969
    %s972 = scalar_lea.vmem [#allocation2], 7
    %v973 = vld [vmem:[%s972] ss:$8 sm:$0x3]
    %v974 = vpack.c.bf16 %v971, %v971
    %976 = vrot.lane.b32.xlu0 %v974, 32
    %v977 = vpop.permute.xlu0 %976
    %v979 = vsel %vm106, %v977, 0
    %981 = vmatprep.subr.bf16.mxu0 0
    %982 = vmatpush1.bf16.msra.mxu0 %v456
    %983 = vmatprep.subr.bf16.mxu0 0
    %984 = vmatpush1.bf16.msra.mxu0 %v457
    %985 = vmatprep.subr.bf16.mxu0 0
    %986 = vmatpush1.bf16.msra.mxu0 0
    %987 = vmatprep.subr.bf16.mxu0 0
    %988 = vmatpush1.bf16.msra.mxu0 0
    %989 = vmatprep.subr.bf16.mxu0 0
    %990 = vmatpush1.bf16.msra.mxu0 0
    %991 = vmatprep.subr.bf16.mxu0 0
    %992 = vmatpush1.bf16.msra.mxu0 0
    %993 = vmatprep.subr.bf16.mxu0 0
    %994 = vmatpush1.bf16.msra.mxu0 0
    %995 = vmatprep.subr.bf16.mxu0 0
    %996 = vmatpush1.bf16.msra.mxu0 0
    %997 = vmatprep.subr.bf16.mxu0 0
    %998 = vmatpush1.bf16.msra.mxu0 0
    %999 = vmatprep.subr.bf16.mxu0 0
    %1000 = vmatpush1.bf16.msra.mxu0 0
    %1001 = vmatprep.subr.bf16.mxu0 0
    %1002 = vmatpush1.bf16.msra.mxu0 0
    %1003 = vmatprep.subr.bf16.mxu0 0
    %1004 = vmatpush1.bf16.msra.mxu0 0
    %1005 = vmatprep.subr.bf16.mxu0 0
    %1006 = vmatpush1.bf16.msra.mxu0 0
    %1007 = vmatprep.subr.bf16.mxu0 0
    %1008 = vmatpush1.bf16.msra.mxu0 0
    %1009 = vmatprep.subr.bf16.mxu0 0
    %1010 = vmatpush1.bf16.msra.mxu0 0
    %1011 = vmatprep.subr.bf16.mxu0 0
    %1012 = vmatpush1.bf16.msra.mxu0 0
    %1013 = vmatprep.mubr.bf16.mxu0 0
    %1014 = vmatmul.mubr.bf16.gmra.mrb[0].mxu0 %v979
    %v1015 = vpop.f32.mrb[0].mxu0
    %v1016 = vadd.f32 0.0, %v1015
    %v1017 = vpop.f32.mrb[0].mxu0
    %v1018 = vpop.f32.mrb[0].mxu0
    %v1019 = vpop.f32.mrb[0].mxu0
    %1020 = vdwg.mxu0
    %v1021 = vadd.f32 %v973, %v1016
    %v1022 = vxor.u32 %v1021, 2147483648
    %v1023 = vmul.f32 %v1022, 1.442695
    %v1024 = vpow.pop %v1023
    %v1025 = vadd.f32 %v1024, 1.0
    %v1026 = vrcp.pop %v1025
    %v1027 = vmul.f32 1.0, %v1026
    %v1028 = vtanh.pop %v1021
    %v1029 = vmul.f32 %v1027, %v965
    %1031 = vrot.lane.b32.xlu0 %v1028, 64
    %v1032 = vpop.permute.xlu0 %1031
    %v1034 = vmul.f32 %v1027, %v1032
    %1036 = vrot.lane.b32.xlu0 %v1034, 32
    %v1037 = vpop.permute.xlu0 %1036
    %v1039 = vadd.f32 %v1029, %v1037
    %v1040 = vtanh.pop %v1039
    %1042 = vrot.lane.b32.xlu0 %v1040, 64
    %v1043 = vpop.permute.xlu0 %1042
    %v1045 = vmul.f32 %v1027, %v1043
    %1047 = vrot.lane.b32.xlu0 %v1045, 32
    %v1048 = vpop.permute.xlu0 %1047
    %vm1050 = vcmask 254976
    %1051 = vst.msk [vmem:[#allocation11] sm:$0x3] %vm1050, %v1048
    // Predicated region
    $region42: #{tpu_custom_call.1} parent=1 // pred_check
      _
    $region43: #{tpu_custom_call.1} parent=1 // pred_check_branch
      %1053 = sbr.rel (0) target = $region45
    $region44: #{tpu_custom_call.1} parent=1 // pred_region
      %s1055 = ssub.s32 32, 32
      %1056 = vsyncadd [#allocation5], %s1055
      %s1058 = sshll.u32 [#allocation11], 4
      %s1059 = int_to_ptr.vmem [resolvable:$true] %s1058
      %1061 = dma.vmem_to_hbm [thread:$0]  %s1059, 32, %s6, [#allocation5]
    $region45: #{tpu_custom_call.1} parent=1 // pred_fallthru
      _
    // Predicated region
    $region46: #{tpu_custom_call.1} parent=1 // pred_check
      _
    $region47: #{tpu_custom_call.1} parent=1 // pred_check_branch
      %1063 = sbr.rel (0) target = $region49
    $region48: #{tpu_custom_call.1} parent=1 // pred_region
      %1064 = dma.done [#allocation5], 32
    $region49: #{tpu_custom_call.1} parent=1 // pred_fallthru
      _
    %1065 = vsyncpa [#allocation4], 1
    %1066 = vsyncpa [#allocation7], 1
    %1067 = vsyncpa [#allocation10], 1
    %1068 = vsyncpa [#allocation5], 1

// kernel: tpu_custom_call.1
$region0: #{tpu_custom_call.1}
  #allocation0 [shape = 'u32[]', space=smem, size = 0x4, offset = 0x4, fixed_abs, tag = 'smem constant byte address 0x4 - core index']
  #allocation1 [shape = 'u32[144,128]{1,0:T(1,128)}', space=vmem, size = 0x12000, scoped, tag = 'internal scratch']
  #allocation2 [shape = 'f32[16,128]{1,0:T(8,128)}', space=vmem, size = 0x2000, scoped, tag = 'scratch operand']
  %s0 = inlined_call_operand.hbm [shape: f32[2,8,32], index: 0, kind: input, shape index: {}]
  %s1 = inlined_call_operand.hbm [shape: bf16[32,96], index: 1, kind: input, shape index: {}]
  %s2 = inlined_call_operand.vmem [shape: f32[1,96], index: 2, kind: input, shape index: {}]
  %s3 = inlined_call_operand.hbm [shape: bf16[32,128], index: 3, kind: input, shape index: {}]
  %s4 = inlined_call_operand.hbm [shape: bf16[32,128], index: 4, kind: input, shape index: {}]
  %s5 = inlined_call_operand.vmem [shape: f32[1,128], index: 5, kind: input, shape index: {}]
  %s6 = inlined_call_operand.hbm [shape: f32[2,32], index: 6, kind: output, shape index: {}]
  %s7 = sld [smem:[#allocation0]]
  $region50: #{tpu_custom_call.1} parent=0
    _
  %s9 = ssub.s32 1, %s7
  %s10 = scalar_select 0, %s9, %s7
  $region1: #{tpu_custom_call.1} parent=0
    #allocation3 [shape = 'u8[8192]{0}', space=vmem, size = 0x2000, scoped, tag = 'input window, operand 0, single buffered']
    #allocation4 [shape = 's32[1]{0}', space=sflag, size = 0x4, scoped, tag = 'scoped memory for tpu_custom_call.1']
    #allocation5 [shape = 's32[1]{0}', space=sflag, size = 0x4, scoped, tag = 'scoped memory for tpu_custom_call.1']
    #allocation6 [shape = 'u8[8192]{0}', space=vmem, size = 0x2000, scoped, tag = 'input window, operand 1, single buffered']
    #allocation7 [shape = 's32[1]{0}', space=sflag, size = 0x4, scoped, tag = 'scoped memory for tpu_custom_call.1']
    #allocation8 [shape = 'u8[8192]{0}', space=vmem, size = 0x2000, scoped, tag = 'input window, operand 3, single buffered']
    #allocation9 [shape = 'u8[8192]{0}', space=vmem, size = 0x2000, scoped, tag = 'input window, operand 4, single buffered']
    #allocation10 [shape = 's32[1]{0}', space=sflag, size = 0x4, scoped, tag = 'scoped memory for tpu_custom_call.1']
    #allocation11 [shape = 'u8[1024]{0}', space=vmem, size = 0x400, scoped, tag = 'output window, operand 0, single buffered']
    %11 = vsyncpa [#allocation4], 0
    %12 = vsyncpa [#allocation7], 0
    %13 = vsyncpa [#allocation10], 0
    %14 = vsyncpa [#allocation5], 0
    // Predicated region
    $region2: #{tpu_custom_call.1} parent=1 // pred_check
      _
    $region3: #{tpu_custom_call.1} parent=1 // pred_check_branch
      %16 = sbr.rel (0) target = $region5
    $region4: #{tpu_custom_call.1} parent=1 // pred_region
      %s18 = ssub.s32 256, 256
      %19 = vsyncadd [#allocation4], %s18
      %s20 = sshll.u32 [#allocation3], 4
      %s21 = int_to_ptr.vmem [resolvable:$true] %s20
      %26 = dma.hbm_to_vmem [thread:$0]  %s0, 256, %s21, [#allocation4], 128, 128, 8
    $region5: #{tpu_custom_call.1} parent=1 // pred_fallthru
      _
    // Predicated region
    $region6: #{tpu_custom_call.1} parent=1 // pred_check
      _
    $region7: #{tpu_custom_call.1} parent=1 // pred_check_branch
      %28 = sbr.rel (0) target = $region9
    $region8: #{tpu_custom_call.1} parent=1 // pred_region
      %s30 = ssub.s32 256, 256
      %31 = vsyncadd [#allocation7], %s30
      %s32 = sshll.u32 [#allocation6], 4
      %s33 = int_to_ptr.vmem [resolvable:$true] %s32
      %38 = dma.hbm_to_vmem [thread:$0]  %s1, 256, %s33, [#allocation7], 64, 64, 4
    $region9: #{tpu_custom_call.1} parent=1 // pred_fallthru
      _
    // Predicated region
    $region10: #{tpu_custom_call.1} parent=1 // pred_check
      _
    $region11: #{tpu_custom_call.1} parent=1 // pred_check_branch
      %40 = sbr.rel (0) target = $region13
    $region12: #{tpu_custom_call.1} parent=1 // pred_region
      _
    $region13: #{tpu_custom_call.1} parent=1 // pred_fallthru
      _
    // Predicated region
    $region14: #{tpu_custom_call.1} parent=1 // pred_check
      _
    $region15: #{tpu_custom_call.1} parent=1 // pred_check_branch
      %42 = sbr.rel (0) target = $region17
    $region16: #{tpu_custom_call.1} parent=1 // pred_region
      %s44 = ssub.s32 256, 256
      %45 = vsyncadd [#allocation7], %s44
      %s46 = sshll.u32 [#allocation8], 4
      %s47 = int_to_ptr.vmem [resolvable:$true] %s46
      %52 = dma.hbm_to_vmem [thread:$0]  %s3, 256, %s47, [#allocation7], 64, 64, 4
    $region17: #{tpu_custom_call.1} parent=1 // pred_fallthru
      _
    // Predicated region
    $region18: #{tpu_custom_call.1} parent=1 // pred_check
      _
    $region19: #{tpu_custom_call.1} parent=1 // pred_check_branch
      %54 = sbr.rel (0) target = $region21
    $region20: #{tpu_custom_call.1} parent=1 // pred_region
      %s56 = ssub.s32 256, 256
      %57 = vsyncadd [#allocation10], %s56
      %s58 = sshll.u32 [#allocation9], 4
      %s59 = int_to_ptr.vmem [resolvable:$true] %s58
      %64 = dma.hbm_to_vmem [thread:$0]  %s4, 256, %s59, [#allocation10], 64, 64, 4
    $region21: #{tpu_custom_call.1} parent=1 // pred_fallthru
      _
    // Predicated region
    $region22: #{tpu_custom_call.1} parent=1 // pred_check
      _
    $region23: #{tpu_custom_call.1} parent=1 // pred_check_branch
      %66 = sbr.rel (0) target = $region25
    $region24: #{tpu_custom_call.1} parent=1 // pred_region
      _
    $region25: #{tpu_custom_call.1} parent=1 // pred_fallthru
      _
    // Predicated region
    $region26: #{tpu_custom_call.1} parent=1 // pred_check
      _
    $region27: #{tpu_custom_call.1} parent=1 // pred_check_branch
      %68 = sbr.rel (0) target = $region29
    $region28: #{tpu_custom_call.1} parent=1 // pred_region
      %69 = dma.done [#allocation4], 256
    $region29: #{tpu_custom_call.1} parent=1 // pred_fallthru
      _
    // Predicated region
    $region30: #{tpu_custom_call.1} parent=1 // pred_check
      _
    $region31: #{tpu_custom_call.1} parent=1 // pred_check_branch
      %71 = sbr.rel (0) target = $region33
    $region32: #{tpu_custom_call.1} parent=1 // pred_region
      %72 = dma.done [#allocation7], 256
    $region33: #{tpu_custom_call.1} parent=1 // pred_fallthru
      _
    // Predicated region
    $region34: #{tpu_custom_call.1} parent=1 // pred_check
      _
    $region35: #{tpu_custom_call.1} parent=1 // pred_check_branch
      %74 = sbr.rel (0) target = $region37
    $region36: #{tpu_custom_call.1} parent=1 // pred_region
      %75 = dma.done [#allocation7], 256
    $region37: #{tpu_custom_call.1} parent=1 // pred_fallthru
      _
    // Predicated region
    $region38: #{tpu_custom_call.1} parent=1 // pred_check
      _
    $region39: #{tpu_custom_call.1} parent=1 // pred_check_branch
      %77 = sbr.rel (0) target = $region41
    $region40: #{tpu_custom_call.1} parent=1 // pred_region
      %78 = dma.done [#allocation10], 256
    $region41: #{tpu_custom_call.1} parent=1 // pred_fallthru
      _
    %v80 = vld [vmem:[#allocation3] sm:$0xff]
    %v81 = vld [vmem:[#allocation3 + $0x8] sm:$0xff]
    %v82 = vpack.c.bf16 %v81, %v80
    %v83 = vld [vmem:[#allocation6] sm:$0xf]
    %v84 = vld [vmem:[#allocation6 + $0x4] sm:$0xf]
    %v85 = vld [vmem:[#allocation6 + $0x8] sm:$0xf]
    %v86 = vld [vmem:[#allocation6 + $0xc] sm:$0xf]
    %v87 = vld [vmem:[%s2] sm:$0x1]
    %v89 = vlaneseq
    %v90 = vshrl.u32 %v89, 7
    %v91 = vsub.s32 0, %v90
    %v92 = vrot.slane %v87, %v91
    %v98 = vunpack.c.l.b16 %v83
    %v99 = vunpack.c.l.b16 %v84
    %v100 = vunpack.c.l.b16 %v85
    %v101 = vunpack.c.l.b16 %v86
    %v102 = vpack.c.b16 %v99, %v98
    %v103 = vpack.c.b16 %v101, %v100
    %vm106 = vcmask 261120
    %v108 = vsel %vm106, %v82, 0
    %110 = vmatprep.subr.bf16.mxu0 0
    %111 = vmatpush1.bf16.msra.mxu0 %v102
    %112 = vmatprep.subr.bf16.mxu0 0
    %113 = vmatpush1.bf16.msra.mxu0 %v103
    %114 = vmatprep.subr.bf16.mxu0 0
    %115 = vmatpush1.bf16.msra.mxu0 0
    %116 = vmatprep.subr.bf16.mxu0 0
    %117 = vmatpush1.bf16.msra.mxu0 0
    %118 = vmatprep.subr.bf16.mxu0 0
    %119 = vmatpush1.bf16.msra.mxu0 0
    %120 = vmatprep.subr.bf16.mxu0 0
    %121 = vmatpush1.bf16.msra.mxu0 0
    %122 = vmatprep.subr.bf16.mxu0 0
    %123 = vmatpush1.bf16.msra.mxu0 0
    %124 = vmatprep.subr.bf16.mxu0 0
    %125 = vmatpush1.bf16.msra.mxu0 0
    %126 = vmatprep.subr.bf16.mxu0 0
    %127 = vmatpush1.bf16.msra.mxu0 0
    %128 = vmatprep.subr.bf16.mxu0 0
    %129 = vmatpush1.bf16.msra.mxu0 0
    %130 = vmatprep.subr.bf16.mxu0 0
    %131 = vmatpush1.bf16.msra.mxu0 0
    %132 = vmatprep.subr.bf16.mxu0 0
    %133 = vmatpush1.bf16.msra.mxu0 0
    %134 = vmatprep.subr.bf16.mxu0 0
    %135 = vmatpush1.bf16.msra.mxu0 0
    %136 = vmatprep.subr.bf16.mxu0 0
    %137 = vmatpush1.bf16.msra.mxu0 0
    %138 = vmatprep.subr.bf16.mxu0 0
    %139 = vmatpush1.bf16.msra.mxu0 0
    %140 = vmatprep.subr.bf16.mxu0 0
    %141 = vmatpush1.bf16.msra.mxu0 0
    %142 = vmatprep.mubr.bf16.mxu0 0
    %143 = vmatmul.mubr.bf16.gmra.mrb[0].mxu0 %v108
    %v144 = vpop.f32.mrb[0].mxu0
    %v145 = vadd.f32 %v92, %v144
    %v146 = vpop.f32.mrb[0].mxu0
    %v147 = vpop.f32.mrb[0].mxu0
    %v148 = vadd.f32 %v92, %v147
    %v149 = vpop.f32.mrb[0].mxu0
    %150 = vdwg.mxu0
    %v151 = vpack.c.bf16 %v145, %v145
    %v152 = vpack.c.bf16 %v148, %v148
    %154 = vrot.lane.b32.xlu0 %v151, 96
    %v155 = vpop.permute.xlu0 %154
    %v157 = vsel %vm106, %v151, 0
    %v160 = vsel %vm106, %v155, 0
    %162 = vmatprep.subr.bf16.mxu0 0
    %163 = vmatpush1.bf16.xpose.msra.mxu0 %v160
    %164 = vmatprep.subr.bf16.mxu0 0
    %165 = vmatpush1.bf16.xpose.msra.mxu0 0
    %166 = vmatprep.subr.bf16.mxu0 0
    %167 = vmatpush1.bf16.xpose.msra.mxu0 0
    %168 = vmatprep.subr.bf16.mxu0 0
    %169 = vmatpush1.bf16.xpose.msra.mxu0 0
    %170 = vmatprep.subr.bf16.mxu0 0
    %171 = vmatpush1.bf16.xpose.msra.mxu0 0
    %172 = vmatprep.subr.bf16.mxu0 0
    %173 = vmatpush1.bf16.xpose.msra.mxu0 0
    %174 = vmatprep.subr.bf16.mxu0 0
    %175 = vmatpush1.bf16.xpose.msra.mxu0 0
    %176 = vmatprep.subr.bf16.mxu0 0
    %177 = vmatpush1.bf16.xpose.msra.mxu0 0
    %178 = vmatprep.subr.bf16.mxu0 0
    %179 = vmatpush1.bf16.xpose.msra.mxu0 0
    %180 = vmatprep.subr.bf16.mxu0 0
    %181 = vmatpush1.bf16.xpose.msra.mxu0 0
    %182 = vmatprep.subr.bf16.mxu0 0
    %183 = vmatpush1.bf16.xpose.msra.mxu0 0
    %184 = vmatprep.subr.bf16.mxu0 0
    %185 = vmatpush1.bf16.xpose.msra.mxu0 0
    %186 = vmatprep.subr.bf16.mxu0 0
    %187 = vmatpush1.bf16.xpose.msra.mxu0 0
    %188 = vmatprep.subr.bf16.mxu0 0
    %189 = vmatpush1.bf16.xpose.msra.mxu0 0
    %190 = vmatprep.subr.bf16.mxu0 0
    %191 = vmatpush1.bf16.xpose.msra.mxu0 0
    %192 = vmatprep.subr.bf16.mxu0 0
    %193 = vmatpush1.bf16.xpose.msra.mxu0 0
    %194 = vmatprep.mubr.bf16.mxu0 0
    %195 = vmatmul.mubr.bf16.gmra.mrb[0].mxu0 %v157
    %v196 = vpop.f32.mrb[0].mxu0
    %v197 = vadd.f32 0.0, %v196
    %v198 = vpop.f32.mrb[0].mxu0
    %v199 = vpop.f32.mrb[0].mxu0
    %v200 = vpop.f32.mrb[0].mxu0
    %201 = vdwg.mxu0
    %203 = vrot.lane.b32.xlu0 %v152, 96
    %v204 = vpop.permute.xlu0 %203
    %v206 = vsel %vm106, %v152, 0
    %v209 = vsel %vm106, %v204, 0
    %211 = vmatprep.subr.bf16.mxu0 0
    %212 = vmatpush1.bf16.xpose.msra.mxu0 %v209
    %213 = vmatprep.subr.bf16.mxu0 0
    %214 = vmatpush1.bf16.xpose.msra.mxu0 0
    %215 = vmatprep.subr.bf16.mxu0 0
    %216 = vmatpush1.bf16.xpose.msra.mxu0 0
    %217 = vmatprep.subr.bf16.mxu0 0
    %218 = vmatpush1.bf16.xpose.msra.mxu0 0
    %219 = vmatprep.subr.bf16.mxu0 0
    %220 = vmatpush1.bf16.xpose.msra.mxu0 0
    %221 = vmatprep.subr.bf16.mxu0 0
    %222 = vmatpush1.bf16.xpose.msra.mxu0 0
    %223 = vmatprep.subr.bf16.mxu0 0
    %224 = vmatpush1.bf16.xpose.msra.mxu0 0
    %225 = vmatprep.subr.bf16.mxu0 0
    %226 = vmatpush1.bf16.xpose.msra.mxu0 0
    %227 = vmatprep.subr.bf16.mxu0 0
    %228 = vmatpush1.bf16.xpose.msra.mxu0 0
    %229 = vmatprep.subr.bf16.mxu0 0
    %230 = vmatpush1.bf16.xpose.msra.mxu0 0
    %231 = vmatprep.subr.bf16.mxu0 0
    %232 = vmatpush1.bf16.xpose.msra.mxu0 0
    %233 = vmatprep.subr.bf16.mxu0 0
    %234 = vmatpush1.bf16.xpose.msra.mxu0 0
    %235 = vmatprep.subr.bf16.mxu0 0
    %236 = vmatpush1.bf16.xpose.msra.mxu0 0
    %237 = vmatprep.subr.bf16.mxu0 0
    %238 = vmatpush1.bf16.xpose.msra.mxu0 0
    %239 = vmatprep.subr.bf16.mxu0 0
    %240 = vmatpush1.bf16.xpose.msra.mxu0 0
    %241 = vmatprep.subr.bf16.mxu0 0
    %242 = vmatpush1.bf16.xpose.msra.mxu0 0
    %243 = vmatprep.mubr.bf16.mxu0 0
    %244 = vmatmul.mubr.bf16.gmra.mrb[0].mxu0 %v206
    %v245 = vpop.f32.mrb[0].mxu0
    %v246 = vadd.f32 0.0, %v245
    %v247 = vpop.f32.mrb[0].mxu0
    %v248 = vpop.f32.mrb[0].mxu0
    %v249 = vpop.f32.mrb[0].mxu0
    %250 = vdwg.mxu0
    %vm251 = vcmask 64512
    %v252 = vsel %vm251, %v197, -inf
    %253 = vmax.xlane.f32.xlu0 %v252
    %v254 = vpop.xlane.xlu0 %253
    %v255 = vsel %vm251, %v246, -inf
    %256 = vmax.xlane.f32.xlu0 %v255
    %v257 = vpop.xlane.xlu0 %256
    %v258 = vsub.f32 %v197, %v254
    %v259 = vsub.f32 %v246, %v257
    %v260 = vmul.f32 %v258, 1.442695
    %v261 = vpow.pop %v260
    %v262 = vmul.f32 %v259, 1.442695
    %v263 = vpow.pop %v262
    %v264 = vsel %vm251, %v261, 0.0
    %265 = vadd.xlane.f32.xlu0 %v264
    %v266 = vpop.xlane.xlu0 %265
    %v267 = vsel %vm251, %v263, 0.0
    %268 = vadd.xlane.f32.xlu0 %v267
    %v269 = vpop.xlane.xlu0 %268
    %v270 = vrcp.pop %v266
    %v271 = vrcp.pop %v269
    %v272 = vmul.f32 %v261, %v270
    %v273 = vmul.f32 %v263, %v271
    %v274 = vpack.c.bf16 %v272, %v272
    %v275 = vpack.c.bf16 %v273, %v273
    %276 = vrot.lane.b32.xlu0 %v151, 64
    %v277 = vpop.permute.xlu0 %276
    %v279 = vsel %vm251, %v274, 0
    %vm281 = vcmask 1043456
    %v283 = vsel %vm281, %v277, 0
    %285 = vmatprep.subr.bf16.mxu0 0
    %286 = vmatpush1.bf16.msra.mxu0 %v283
    %287 = vmatprep.subr.bf16.mxu0 0
    %288 = vmatpush1.bf16.msra.mxu0 0
    %289 = vmatprep.subr.bf16.mxu0 0
    %290 = vmatpush1.bf16.msra.mxu0 0
    %291 = vmatprep.subr.bf16.mxu0 0
    %292 = vmatpush1.bf16.msra.mxu0 0
    %293 = vmatprep.subr.bf16.mxu0 0
    %294 = vmatpush1.bf16.msra.mxu0 0
    %295 = vmatprep.subr.bf16.mxu0 0
    %296 = vmatpush1.bf16.msra.mxu0 0
    %297 = vmatprep.subr.bf16.mxu0 0
    %298 = vmatpush1.bf16.msra.mxu0 0
    %299 = vmatprep.subr.bf16.mxu0 0
    %300 = vmatpush1.bf16.msra.mxu0 0
    %301 = vmatprep.subr.bf16.mxu0 0
    %302 = vmatpush1.bf16.msra.mxu0 0
    %303 = vmatprep.subr.bf16.mxu0 0
    %304 = vmatpush1.bf16.msra.mxu0 0
    %305 = vmatprep.subr.bf16.mxu0 0
    %306 = vmatpush1.bf16.msra.mxu0 0
    %307 = vmatprep.subr.bf16.mxu0 0
    %308 = vmatpush1.bf16.msra.mxu0 0
    %309 = vmatprep.subr.bf16.mxu0 0
    %310 = vmatpush1.bf16.msra.mxu0 0
    %311 = vmatprep.subr.bf16.mxu0 0
    %312 = vmatpush1.bf16.msra.mxu0 0
    %313 = vmatprep.subr.bf16.mxu0 0
    %314 = vmatpush1.bf16.msra.mxu0 0
    %315 = vmatprep.subr.bf16.mxu0 0
    %316 = vmatpush1.bf16.msra.mxu0 0
    %317 = vmatprep.mubr.bf16.mxu0 0
    %318 = vmatmul.mubr.bf16.gmra.mrb[0].mxu0 %v279
    %v319 = vpop.f32.mrb[0].mxu0
    %v320 = vadd.f32 0.0, %v319
    %v321 = vpop.f32.mrb[0].mxu0
    %v322 = vpop.f32.mrb[0].mxu0
    %v323 = vpop.f32.mrb[0].mxu0
    %324 = vdwg.mxu0
    %325 = vrot.lane.b32.xlu0 %v152, 64
    %v326 = vpop.permute.xlu0 %325
    %v328 = vsel %vm251, %v275, 0
    %v331 = vsel %vm281, %v326, 0
    %333 = vmatprep.subr.bf16.mxu0 0
    %334 = vmatpush1.bf16.msra.mxu0 %v331
    %335 = vmatprep.subr.bf16.mxu0 0
    %336 = vmatpush1.bf16.msra.mxu0 0
    %337 = vmatprep.subr.bf16.mxu0 0
    %338 = vmatpush1.bf16.msra.mxu0 0
    %339 = vmatprep.subr.bf16.mxu0 0
    %340 = vmatpush1.bf16.msra.mxu0 0
    %341 = vmatprep.subr.bf16.mxu0 0
    %342 = vmatpush1.bf16.msra.mxu0 0
    %343 = vmatprep.subr.bf16.mxu0 0
    %344 = vmatpush1.bf16.msra.mxu0 0
    %345 = vmatprep.subr.bf16.mxu0 0
    %346 = vmatpush1.bf16.msra.mxu0 0
    %347 = vmatprep.subr.bf16.mxu0 0
    %348 = vmatpush1.bf16.msra.mxu0 0
    %349 = vmatprep.subr.bf16.mxu0 0
    %350 = vmatpush1.bf16.msra.mxu0 0
    %351 = vmatprep.subr.bf16.mxu0 0
    %352 = vmatpush1.bf16.msra.mxu0 0
    %353 = vmatprep.subr.bf16.mxu0 0
    %354 = vmatpush1.bf16.msra.mxu0 0
    %355 = vmatprep.subr.bf16.mxu0 0
    %356 = vmatpush1.bf16.msra.mxu0 0
    %357 = vmatprep.subr.bf16.mxu0 0
    %358 = vmatpush1.bf16.msra.mxu0 0
    %359 = vmatprep.subr.bf16.mxu0 0
    %360 = vmatpush1.bf16.msra.mxu0 0
    %361 = vmatprep.subr.bf16.mxu0 0
    %362 = vmatpush1.bf16.msra.mxu0 0
    %363 = vmatprep.subr.bf16.mxu0 0
    %364 = vmatpush1.bf16.msra.mxu0 0
    %365 = vmatprep.mubr.bf16.mxu0 0
    %366 = vmatmul.mubr.bf16.gmra.mrb[0].mxu0 %v328
    %v367 = vpop.f32.mrb[0].mxu0
    %v368 = vadd.f32 0.0, %v367
    %v369 = vpop.f32.mrb[0].mxu0
    %v370 = vpop.f32.mrb[0].mxu0
    %v371 = vpop.f32.mrb[0].mxu0
    %372 = vdwg.mxu0
    %v373 = vpack.c.bf16 %v368, %v320
    %v374 = vld [vmem:[#allocation8] sm:$0xf]
    %v375 = vld [vmem:[#allocation8 + $0x4] sm:$0xf]
    %v376 = vld [vmem:[#allocation8 + $0x8] sm:$0xf]
    %v377 = vld [vmem:[#allocation8 + $0xc] sm:$0xf]
    %v378 = vld [vmem:[%s5] sm:$0x1]
    %v380 = vlaneseq
    %v381 = vshrl.u32 %v380, 7
    %v382 = vsub.s32 0, %v381
    %v383 = vrot.slane %v378, %v382
    %v389 = vunpack.c.l.b16 %v374
    %v390 = vunpack.c.l.b16 %v375
    %v391 = vunpack.c.l.b16 %v376
    %v392 = vunpack.c.l.b16 %v377
    %v393 = vpack.c.b16 %v390, %v389
    %v394 = vpack.c.b16 %v392, %v391
    %v398 = vsel %vm106, %v373, 0
    %400 = vmatprep.subr.bf16.mxu0 0
    %401 = vmatpush1.bf16.msra.mxu0 %v393
    %402 = vmatprep.subr.bf16.mxu0 0
    %403 = vmatpush1.bf16.msra.mxu0 %v394
    %404 = vmatprep.subr.bf16.mxu0 0
    %405 = vmatpush1.bf16.msra.mxu0 0
    %406 = vmatprep.subr.bf16.mxu0 0
    %407 = vmatpush1.bf16.msra.mxu0 0
    %408 = vmatprep.subr.bf16.mxu0 0
    %409 = vmatpush1.bf16.msra.mxu0 0
    %410 = vmatprep.subr.bf16.mxu0 0
    %411 = vmatpush1.bf16.msra.mxu0 0
    %412 = vmatprep.subr.bf16.mxu0 0
    %413 = vmatpush1.bf16.msra.mxu0 0
    %414 = vmatprep.subr.bf16.mxu0 0
    %415 = vmatpush1.bf16.msra.mxu0 0
    %416 = vmatprep.subr.bf16.mxu0 0
    %417 = vmatpush1.bf16.msra.mxu0 0
    %418 = vmatprep.subr.bf16.mxu0 0
    %419 = vmatpush1.bf16.msra.mxu0 0
    %420 = vmatprep.subr.bf16.mxu0 0
    %421 = vmatpush1.bf16.msra.mxu0 0
    %422 = vmatprep.subr.bf16.mxu0 0
    %423 = vmatpush1.bf16.msra.mxu0 0
    %424 = vmatprep.subr.bf16.mxu0 0
    %425 = vmatpush1.bf16.msra.mxu0 0
    %426 = vmatprep.subr.bf16.mxu0 0
    %427 = vmatpush1.bf16.msra.mxu0 0
    %428 = vmatprep.subr.bf16.mxu0 0
    %429 = vmatpush1.bf16.msra.mxu0 0
    %430 = vmatprep.subr.bf16.mxu0 0
    %431 = vmatpush1.bf16.msra.mxu0 0
    %432 = vmatprep.mubr.bf16.mxu0 0
    %433 = vmatmul.mubr.bf16.gmra.mrb[0].mxu0 %v398
    %v434 = vpop.f32.mrb[0].mxu0
    %v435 = vadd.f32 %v383, %v434
    %v436 = vpop.f32.mrb[0].mxu0
    %v437 = vpop.f32.mrb[0].mxu0
    %v438 = vadd.f32 %v383, %v437
    %v439 = vpop.f32.mrb[0].mxu0
    %440 = vdwg.mxu0
    %441 = vst [vmem:[#allocation2] sm:$0xff] %v435
    %442 = vst [vmem:[#allocation2 + $0x8] sm:$0xff] %v438
    %v443 = vld [vmem:[#allocation9] sm:$0xf]
    %v444 = vld [vmem:[#allocation9 + $0x4] sm:$0xf]
    %v445 = vld [vmem:[#allocation9 + $0x8] sm:$0xf]
    %v446 = vld [vmem:[#allocation9 + $0xc] sm:$0xf]
    %v447 = vld [vmem:[#allocation2] ss:$8 sm:$0x3]
    %v452 = vunpack.c.l.b16 %v443
    %v453 = vunpack.c.l.b16 %v444
    %v454 = vunpack.c.l.b16 %v445
    %v455 = vunpack.c.l.b16 %v446
    %v456 = vpack.c.b16 %v453, %v452
    %v457 = vpack.c.b16 %v455, %v454
    %v461 = vsel %vm106, 0, 0
    %463 = vmatprep.subr.bf16.mxu0 0
    %464 = vmatpush1.bf16.msra.mxu0 %v456
    %465 = vmatprep.subr.bf16.mxu0 0
    %466 = vmatpush1.bf16.msra.mxu0 %v457
    %467 = vmatprep.subr.bf16.mxu0 0
    %468 = vmatpush1.bf16.msra.mxu0 0
    %469 = vmatprep.subr.bf16.mxu0 0
    %470 = vmatpush1.bf16.msra.mxu0 0
    %471 = vmatprep.subr.bf16.mxu0 0
    %472 = vmatpush1.bf16.msra.mxu0 0
    %473 = vmatprep.subr.bf16.mxu0 0
    %474 = vmatpush1.bf16.msra.mxu0 0
    %475 = vmatprep.subr.bf16.mxu0 0
    %476 = vmatpush1.bf16.msra.mxu0 0
    %477 = vmatprep.subr.bf16.mxu0 0
    %478 = vmatpush1.bf16.msra.mxu0 0
    %479 = vmatprep.subr.bf16.mxu0 0
    %480 = vmatpush1.bf16.msra.mxu0 0
    %481 = vmatprep.subr.bf16.mxu0 0
    %482 = vmatpush1.bf16.msra.mxu0 0
    %483 = vmatprep.subr.bf16.mxu0 0
    %484 = vmatpush1.bf16.msra.mxu0 0
    %485 = vmatprep.subr.bf16.mxu0 0
    %486 = vmatpush1.bf16.msra.mxu0 0
    %487 = vmatprep.subr.bf16.mxu0 0
    %488 = vmatpush1.bf16.msra.mxu0 0
    %489 = vmatprep.subr.bf16.mxu0 0
    %490 = vmatpush1.bf16.msra.mxu0 0
    %491 = vmatprep.subr.bf16.mxu0 0
    %492 = vmatpush1.bf16.msra.mxu0 0
    %493 = vmatprep.subr.bf16.mxu0 0
    %494 = vmatpush1.bf16.msra.mxu0 0
    %495 = vmatprep.mubr.bf16.mxu0 0
    %496 = vmatmul.mubr.bf16.gmra.mrb[0].mxu0 %v461
    %v497 = vpop.f32.mrb[0].mxu0
    %v498 = vadd.f32 0.0, %v497
    %v499 = vpop.f32.mrb[0].mxu0
    %v500 = vpop.f32.mrb[0].mxu0
    %v501 = vpop.f32.mrb[0].mxu0
    %502 = vdwg.mxu0
    %v503 = vadd.f32 %v447, %v498
    %v504 = vxor.u32 %v503, 2147483648
    %v505 = vmul.f32 %v504, 1.442695
    %v506 = vpow.pop %v505
    %v507 = vadd.f32 %v506, 1.0
    %v508 = vrcp.pop %v507
    %v509 = vmul.f32 1.0, %v508
    %v510 = vtanh.pop %v503
    %v511 = vmul.f32 %v509, 0.0
    %513 = vrot.lane.b32.xlu0 %v510, 64
    %v514 = vpop.permute.xlu0 %513
    %v516 = vmul.f32 %v509, %v514
    %518 = vrot.lane.b32.xlu0 %v516, 32
    %v519 = vpop.permute.xlu0 %518
    %v521 = vadd.f32 %v511, %v519
    %v522 = vtanh.pop %v521
    %524 = vrot.lane.b32.xlu0 %v522, 64
    %v525 = vpop.permute.xlu0 %524
    %v527 = vmul.f32 %v509, %v525
    %s528 = scalar_lea.vmem [#allocation2], 1
    %v529 = vld [vmem:[%s528] ss:$8 sm:$0x3]
    %v530 = vpack.c.bf16 %v527, %v527
    %532 = vrot.lane.b32.xlu0 %v530, 32
    %v533 = vpop.permute.xlu0 %532
    %v535 = vsel %vm106, %v533, 0
    %537 = vmatprep.subr.bf16.mxu0 0
    %538 = vmatpush1.bf16.msra.mxu0 %v456
    %539 = vmatprep.subr.bf16.mxu0 0
    %540 = vmatpush1.bf16.msra.mxu0 %v457
    %541 = vmatprep.subr.bf16.mxu0 0
    %542 = vmatpush1.bf16.msra.mxu0 0
    %543 = vmatprep.subr.bf16.mxu0 0
    %544 = vmatpush1.bf16.msra.mxu0 0
    %545 = vmatprep.subr.bf16.mxu0 0
    %546 = vmatpush1.bf16.msra.mxu0 0
    %547 = vmatprep.subr.bf16.mxu0 0
    %548 = vmatpush1.bf16.msra.mxu0 0
    %549 = vmatprep.subr.bf16.mxu0 0
    %550 = vmatpush1.bf16.msra.mxu0 0
    %551 = vmatprep.subr.bf16.mxu0 0
    %552 = vmatpush1.bf16.msra.mxu0 0
    %553 = vmatprep.subr.bf16.mxu0 0
    %554 = vmatpush1.bf16.msra.mxu0 0
    %555 = vmatprep.subr.bf16.mxu0 0
    %556 = vmatpush1.bf16.msra.mxu0 0
    %557 = vmatprep.subr.bf16.mxu0 0
    %558 = vmatpush1.bf16.msra.mxu0 0
    %559 = vmatprep.subr.bf16.mxu0 0
    %560 = vmatpush1.bf16.msra.mxu0 0
    %561 = vmatprep.subr.bf16.mxu0 0
    %562 = vmatpush1.bf16.msra.mxu0 0
    %563 = vmatprep.subr.bf16.mxu0 0
    %564 = vmatpush1.bf16.msra.mxu0 0
    %565 = vmatprep.subr.bf16.mxu0 0
    %566 = vmatpush1.bf16.msra.mxu0 0
    %567 = vmatprep.subr.bf16.mxu0 0
    %568 = vmatpush1.bf16.msra.mxu0 0
    %569 = vmatprep.mubr.bf16.mxu0 0
    %570 = vmatmul.mubr.bf16.gmra.mrb[0].mxu0 %v535
    %v571 = vpop.f32.mrb[0].mxu0
    %v572 = vadd.f32 0.0, %v571
    %v573 = vpop.f32.mrb[0].mxu0
    %v574 = vpop.f32.mrb[0].mxu0
    %v575 = vpop.f32.mrb[0].mxu0
    %576 = vdwg.mxu0
    %v577 = vadd.f32 %v529, %v572
    %v578 = vxor.u32 %v577, 2147483648
    %v579 = vmul.f32 %v578, 1.442695
    %v580 = vpow.pop %v579
    %v581 = vadd.f32 %v580, 1.0
    %v582 = vrcp.pop %v581
    %v583 = vmul.f32 1.0, %v582
    %v584 = vtanh.pop %v577
    %v585 = vmul.f32 %v583, %v521
    %587 = vrot.lane.b32.xlu0 %v584, 64
    %v588 = vpop.permute.xlu0 %587
    %v590 = vmul.f32 %v583, %v588
    %592 = vrot.lane.b32.xlu0 %v590, 32
    %v593 = vpop.permute.xlu0 %592
    %v595 = vadd.f32 %v585, %v593
    %v596 = vtanh.pop %v595
    %598 = vrot.lane.b32.xlu0 %v596, 64
    %v599 = vpop.permute.xlu0 %598
    %v601 = vmul.f32 %v583, %v599
    %s602 = scalar_lea.vmem [#allocation2], 2
    %v603 = vld [vmem:[%s602] ss:$8 sm:$0x3]
    %v604 = vpack.c.bf16 %v601, %v601
    %606 = vrot.lane.b32.xlu0 %v604, 32
    %v607 = vpop.permute.xlu0 %606
    %v609 = vsel %vm106, %v607, 0
    %611 = vmatprep.subr.bf16.mxu0 0
    %612 = vmatpush1.bf16.msra.mxu0 %v456
    %613 = vmatprep.subr.bf16.mxu0 0
    %614 = vmatpush1.bf16.msra.mxu0 %v457
    %615 = vmatprep.subr.bf16.mxu0 0
    %616 = vmatpush1.bf16.msra.mxu0 0
    %617 = vmatprep.subr.bf16.mxu0 0
    %618 = vmatpush1.bf16.msra.mxu0 0
    %619 = vmatprep.subr.bf16.mxu0 0
    %620 = vmatpush1.bf16.msra.mxu0 0
    %621 = vmatprep.subr.bf16.mxu0 0
    %622 = vmatpush1.bf16.msra.mxu0 0
    %623 = vmatprep.subr.bf16.mxu0 0
    %624 = vmatpush1.bf16.msra.mxu0 0
    %625 = vmatprep.subr.bf16.mxu0 0
    %626 = vmatpush1.bf16.msra.mxu0 0
    %627 = vmatprep.subr.bf16.mxu0 0
    %628 = vmatpush1.bf16.msra.mxu0 0
    %629 = vmatprep.subr.bf16.mxu0 0
    %630 = vmatpush1.bf16.msra.mxu0 0
    %631 = vmatprep.subr.bf16.mxu0 0
    %632 = vmatpush1.bf16.msra.mxu0 0
    %633 = vmatprep.subr.bf16.mxu0 0
    %634 = vmatpush1.bf16.msra.mxu0 0
    %635 = vmatprep.subr.bf16.mxu0 0
    %636 = vmatpush1.bf16.msra.mxu0 0
    %637 = vmatprep.subr.bf16.mxu0 0
    %638 = vmatpush1.bf16.msra.mxu0 0
    %639 = vmatprep.subr.bf16.mxu0 0
    %640 = vmatpush1.bf16.msra.mxu0 0
    %641 = vmatprep.subr.bf16.mxu0 0
    %642 = vmatpush1.bf16.msra.mxu0 0
    %643 = vmatprep.mubr.bf16.mxu0 0
    %644 = vmatmul.mubr.bf16.gmra.mrb[0].mxu0 %v609
    %v645 = vpop.f32.mrb[0].mxu0
    %v646 = vadd.f32 0.0, %v645
    %v647 = vpop.f32.mrb[0].mxu0
    %v648 = vpop.f32.mrb[0].mxu0
    %v649 = vpop.f32.mrb[0].mxu0
    %650 = vdwg.mxu0
    %v651 = vadd.f32 %v603, %v646
    %v652 = vxor.u32 %v651, 2147483648
    %v653 = vmul.f32 %v652, 1.442695
    %v654 = vpow.pop %v653
    %v655 = vadd.f32 %v654, 1.0
    %v656 = vrcp.pop %v655
    %v657 = vmul.f32 1.0, %v656
    %v658 = vtanh.pop %v651
    %v659 = vmul.f32 %v657, %v595
    %661 = vrot.lane.b32.xlu0 %v658, 64
    %v662 = vpop.permute.xlu0 %661
    %v664 = vmul.f32 %v657, %v662
    %666 = vrot.lane.b32.xlu0 %v664, 32
    %v667 = vpop.permute.xlu0 %666
    %v669 = vadd.f32 %v659, %v667
    %v670 = vtanh.pop %v669
    %672 = vrot.lane.b32.xlu0 %v670, 64
    %v673 = vpop.permute.xlu0 %672
    %v675 = vmul.f32 %v657, %v673
    %s676 = scalar_lea.vmem [#allocation2], 3
    %v677 = vld [vmem:[%s676] ss:$8 sm:$0x3]
    %v678 = vpack.c.bf16 %v675, %v675
    %680 = vrot.lane.b32.xlu0 %v678, 32
    %v681 = vpop.permute.xlu0 %680
    %v683 = vsel %vm106, %v681, 0
    %685 = vmatprep.subr.bf16.mxu0 0
    %686 = vmatpush1.bf16.msra.mxu0 %v456
    %687 = vmatprep.subr.bf16.mxu0 0
    %688 = vmatpush1.bf16.msra.mxu0 %v457
    %689 = vmatprep.subr.bf16.mxu0 0
    %690 = vmatpush1.bf16.msra.mxu0 0
    %691 = vmatprep.subr.bf16.mxu0 0
    %692 = vmatpush1.bf16.msra.mxu0 0
    %693 = vmatprep.subr.bf16.mxu0 0
    %694 = vmatpush1.bf16.msra.mxu0 0
    %695 = vmatprep.subr.bf16.mxu0 0
    %696 = vmatpush1.bf16.msra.mxu0 0
    %697 = vmatprep.subr.bf16.mxu0 0
    %698 = vmatpush1.bf16.msra.mxu0 0
    %699 = vmatprep.subr.bf16.mxu0 0
    %700 = vmatpush1.bf16.msra.mxu0 0
    %701 = vmatprep.subr.bf16.mxu0 0
    %702 = vmatpush1.bf16.msra.mxu0 0
    %703 = vmatprep.subr.bf16.mxu0 0
    %704 = vmatpush1.bf16.msra.mxu0 0
    %705 = vmatprep.subr.bf16.mxu0 0
    %706 = vmatpush1.bf16.msra.mxu0 0
    %707 = vmatprep.subr.bf16.mxu0 0
    %708 = vmatpush1.bf16.msra.mxu0 0
    %709 = vmatprep.subr.bf16.mxu0 0
    %710 = vmatpush1.bf16.msra.mxu0 0
    %711 = vmatprep.subr.bf16.mxu0 0
    %712 = vmatpush1.bf16.msra.mxu0 0
    %713 = vmatprep.subr.bf16.mxu0 0
    %714 = vmatpush1.bf16.msra.mxu0 0
    %715 = vmatprep.subr.bf16.mxu0 0
    %716 = vmatpush1.bf16.msra.mxu0 0
    %717 = vmatprep.mubr.bf16.mxu0 0
    %718 = vmatmul.mubr.bf16.gmra.mrb[0].mxu0 %v683
    %v719 = vpop.f32.mrb[0].mxu0
    %v720 = vadd.f32 0.0, %v719
    %v721 = vpop.f32.mrb[0].mxu0
    %v722 = vpop.f32.mrb[0].mxu0
    %v723 = vpop.f32.mrb[0].mxu0
    %724 = vdwg.mxu0
    %v725 = vadd.f32 %v677, %v720
    %v726 = vxor.u32 %v725, 2147483648
    %v727 = vmul.f32 %v726, 1.442695
    %v728 = vpow.pop %v727
    %v729 = vadd.f32 %v728, 1.0
    %v730 = vrcp.pop %v729
    %v731 = vmul.f32 1.0, %v730
    %v732 = vtanh.pop %v725
    %v733 = vmul.f32 %v731, %v669
    %735 = vrot.lane.b32.xlu0 %v732, 64
    %v736 = vpop.permute.xlu0 %735
    %v738 = vmul.f32 %v731, %v736
    %740 = vrot.lane.b32.xlu0 %v738, 32
    %v741 = vpop.permute.xlu0 %740
    %v743 = vadd.f32 %v733, %v741
    %v744 = vtanh.pop %v743
    %746 = vrot.lane.b32.xlu0 %v744, 64
    %v747 = vpop.permute.xlu0 %746
    %v749 = vmul.f32 %v731, %v747
    %s750 = scalar_lea.vmem [#allocation2], 4
    %v751 = vld [vmem:[%s750] ss:$8 sm:$0x3]
    %v752 = vpack.c.bf16 %v749, %v749
    %754 = vrot.lane.b32.xlu0 %v752, 32
    %v755 = vpop.permute.xlu0 %754
    %v757 = vsel %vm106, %v755, 0
    %759 = vmatprep.subr.bf16.mxu0 0
    %760 = vmatpush1.bf16.msra.mxu0 %v456
    %761 = vmatprep.subr.bf16.mxu0 0
    %762 = vmatpush1.bf16.msra.mxu0 %v457
    %763 = vmatprep.subr.bf16.mxu0 0
    %764 = vmatpush1.bf16.msra.mxu0 0
    %765 = vmatprep.subr.bf16.mxu0 0
    %766 = vmatpush1.bf16.msra.mxu0 0
    %767 = vmatprep.subr.bf16.mxu0 0
    %768 = vmatpush1.bf16.msra.mxu0 0
    %769 = vmatprep.subr.bf16.mxu0 0
    %770 = vmatpush1.bf16.msra.mxu0 0
    %771 = vmatprep.subr.bf16.mxu0 0
    %772 = vmatpush1.bf16.msra.mxu0 0
    %773 = vmatprep.subr.bf16.mxu0 0
    %774 = vmatpush1.bf16.msra.mxu0 0
    %775 = vmatprep.subr.bf16.mxu0 0
    %776 = vmatpush1.bf16.msra.mxu0 0
    %777 = vmatprep.subr.bf16.mxu0 0
    %778 = vmatpush1.bf16.msra.mxu0 0
    %779 = vmatprep.subr.bf16.mxu0 0
    %780 = vmatpush1.bf16.msra.mxu0 0
    %781 = vmatprep.subr.bf16.mxu0 0
    %782 = vmatpush1.bf16.msra.mxu0 0
    %783 = vmatprep.subr.bf16.mxu0 0
    %784 = vmatpush1.bf16.msra.mxu0 0
    %785 = vmatprep.subr.bf16.mxu0 0
    %786 = vmatpush1.bf16.msra.mxu0 0
    %787 = vmatprep.subr.bf16.mxu0 0
    %788 = vmatpush1.bf16.msra.mxu0 0
    %789 = vmatprep.subr.bf16.mxu0 0
    %790 = vmatpush1.bf16.msra.mxu0 0
    %791 = vmatprep.mubr.bf16.mxu0 0
    %792 = vmatmul.mubr.bf16.gmra.mrb[0].mxu0 %v757
    %v793 = vpop.f32.mrb[0].mxu0
    %v794 = vadd.f32 0.0, %v793
    %v795 = vpop.f32.mrb[0].mxu0
    %v796 = vpop.f32.mrb[0].mxu0
    %v797 = vpop.f32.mrb[0].mxu0
    %798 = vdwg.mxu0
    %v799 = vadd.f32 %v751, %v794
    %v800 = vxor.u32 %v799, 2147483648
    %v801 = vmul.f32 %v800, 1.442695
    %v802 = vpow.pop %v801
    %v803 = vadd.f32 %v802, 1.0
    %v804 = vrcp.pop %v803
    %v805 = vmul.f32 1.0, %v804
    %v806 = vtanh.pop %v799
    %v807 = vmul.f32 %v805, %v743
    %809 = vrot.lane.b32.xlu0 %v806, 64
    %v810 = vpop.permute.xlu0 %809
    %v812 = vmul.f32 %v805, %v810
    %814 = vrot.lane.b32.xlu0 %v812, 32
    %v815 = vpop.permute.xlu0 %814
    %v817 = vadd.f32 %v807, %v815
    %v818 = vtanh.pop %v817
    %820 = vrot.lane.b32.xlu0 %v818, 64
    %v821 = vpop.permute.xlu0 %820
    %v823 = vmul.f32 %v805, %v821
    %s824 = scalar_lea.vmem [#allocation2], 5
    %v825 = vld [vmem:[%s824] ss:$8 sm:$0x3]
    %v826 = vpack.c.bf16 %v823, %v823
    %828 = vrot.lane.b32.xlu0 %v826, 32
    %v829 = vpop.permute.xlu0 %828
    %v831 = vsel %vm106, %v829, 0
    %833 = vmatprep.subr.bf16.mxu0 0
    %834 = vmatpush1.bf16.msra.mxu0 %v456
    %835 = vmatprep.subr.bf16.mxu0 0
    %836 = vmatpush1.bf16.msra.mxu0 %v457
    %837 = vmatprep.subr.bf16.mxu0 0
    %838 = vmatpush1.bf16.msra.mxu0 0
    %839 = vmatprep.subr.bf16.mxu0 0
    %840 = vmatpush1.bf16.msra.mxu0 0
    %841 = vmatprep.subr.bf16.mxu0 0
    %842 = vmatpush1.bf16.msra.mxu0 0
    %843 = vmatprep.subr.bf16.mxu0 0
    %844 = vmatpush1.bf16.msra.mxu0 0
    %845 = vmatprep.subr.bf16.mxu0 0
    %846 = vmatpush1.bf16.msra.mxu0 0
    %847 = vmatprep.subr.bf16.mxu0 0
    %848 = vmatpush1.bf16.msra.mxu0 0
    %849 = vmatprep.subr.bf16.mxu0 0
    %850 = vmatpush1.bf16.msra.mxu0 0
    %851 = vmatprep.subr.bf16.mxu0 0
    %852 = vmatpush1.bf16.msra.mxu0 0
    %853 = vmatprep.subr.bf16.mxu0 0
    %854 = vmatpush1.bf16.msra.mxu0 0
    %855 = vmatprep.subr.bf16.mxu0 0
    %856 = vmatpush1.bf16.msra.mxu0 0
    %857 = vmatprep.subr.bf16.mxu0 0
    %858 = vmatpush1.bf16.msra.mxu0 0
    %859 = vmatprep.subr.bf16.mxu0 0
    %860 = vmatpush1.bf16.msra.mxu0 0
    %861 = vmatprep.subr.bf16.mxu0 0
    %862 = vmatpush1.bf16.msra.mxu0 0
    %863 = vmatprep.subr.bf16.mxu0 0
    %864 = vmatpush1.bf16.msra.mxu0 0
    %865 = vmatprep.mubr.bf16.mxu0 0
    %866 = vmatmul.mubr.bf16.gmra.mrb[0].mxu0 %v831
    %v867 = vpop.f32.mrb[0].mxu0
    %v868 = vadd.f32 0.0, %v867
    %v869 = vpop.f32.mrb[0].mxu0
    %v870 = vpop.f32.mrb[0].mxu0
    %v871 = vpop.f32.mrb[0].mxu0
    %872 = vdwg.mxu0
    %v873 = vadd.f32 %v825, %v868
    %v874 = vxor.u32 %v873, 2147483648
    %v875 = vmul.f32 %v874, 1.442695
    %v876 = vpow.pop %v875
    %v877 = vadd.f32 %v876, 1.0
    %v878 = vrcp.pop %v877
    %v879 = vmul.f32 1.0, %v878
    %v880 = vtanh.pop %v873
    %v881 = vmul.f32 %v879, %v817
    %883 = vrot.lane.b32.xlu0 %v880, 64
    %v884 = vpop.permute.xlu0 %883
    %v886 = vmul.f32 %v879, %v884
    %888 = vrot.lane.b32.xlu0 %v886, 32
    %v889 = vpop.permute.xlu0 %888
    %v891 = vadd.f32 %v881, %v889
    %v892 = vtanh.pop %v891
    %894 = vrot.lane.b32.xlu0 %v892, 64
    %v895 = vpop.permute.xlu0 %894
    %v897 = vmul.f32 %v879, %v895
    %s898 = scalar_lea.vmem [#allocation2], 6
    %v899 = vld [vmem:[%s898] ss:$8 sm:$0x3]
    %v900 = vpack.c.bf16 %v897, %v897
    %902 = vrot.lane.b32.xlu0 %v900, 32
    %v903 = vpop.permute.xlu0 %902
    %v905 = vsel %vm106, %v903, 0
    %907 = vmatprep.subr.bf16.mxu0 0
    %908 = vmatpush1.bf16.msra.mxu0 %v456
    %909 = vmatprep.subr.bf16.mxu0 0
    %910 = vmatpush1.bf16.msra.mxu0 %v457
    %911 = vmatprep.subr.bf16.mxu0 0
    %912 = vmatpush1.bf16.msra.mxu0 0
    %913 = vmatprep.subr.bf16.mxu0 0
    %914 = vmatpush1.bf16.msra.mxu0 0
    %915 = vmatprep.subr.bf16.mxu0 0
    %916 = vmatpush1.bf16.msra.mxu0 0
    %917 = vmatprep.subr.bf16.mxu0 0
    %918 = vmatpush1.bf16.msra.mxu0 0
    %919 = vmatprep.subr.bf16.mxu0 0
    %920 = vmatpush1.bf16.msra.mxu0 0
    %921 = vmatprep.subr.bf16.mxu0 0
    %922 = vmatpush1.bf16.msra.mxu0 0
    %923 = vmatprep.subr.bf16.mxu0 0
    %924 = vmatpush1.bf16.msra.mxu0 0
    %925 = vmatprep.subr.bf16.mxu0 0
    %926 = vmatpush1.bf16.msra.mxu0 0
    %927 = vmatprep.subr.bf16.mxu0 0
    %928 = vmatpush1.bf16.msra.mxu0 0
    %929 = vmatprep.subr.bf16.mxu0 0
    %930 = vmatpush1.bf16.msra.mxu0 0
    %931 = vmatprep.subr.bf16.mxu0 0
    %932 = vmatpush1.bf16.msra.mxu0 0
    %933 = vmatprep.subr.bf16.mxu0 0
    %934 = vmatpush1.bf16.msra.mxu0 0
    %935 = vmatprep.subr.bf16.mxu0 0
    %936 = vmatpush1.bf16.msra.mxu0 0
    %937 = vmatprep.subr.bf16.mxu0 0
    %938 = vmatpush1.bf16.msra.mxu0 0
    %939 = vmatprep.mubr.bf16.mxu0 0
    %940 = vmatmul.mubr.bf16.gmra.mrb[0].mxu0 %v905
    %v941 = vpop.f32.mrb[0].mxu0
    %v942 = vadd.f32 0.0, %v941
    %v943 = vpop.f32.mrb[0].mxu0
    %v944 = vpop.f32.mrb[0].mxu0
    %v945 = vpop.f32.mrb[0].mxu0
    %946 = vdwg.mxu0
    %v947 = vadd.f32 %v899, %v942
    %v948 = vxor.u32 %v947, 2147483648
    %v949 = vmul.f32 %v948, 1.442695
    %v950 = vpow.pop %v949
    %v951 = vadd.f32 %v950, 1.0
    %v952 = vrcp.pop %v951
    %v953 = vmul.f32 1.0, %v952
    %v954 = vtanh.pop %v947
    %v955 = vmul.f32 %v953, %v891
    %957 = vrot.lane.b32.xlu0 %v954, 64
    %v958 = vpop.permute.xlu0 %957
    %v960 = vmul.f32 %v953, %v958
    %962 = vrot.lane.b32.xlu0 %v960, 32
    %v963 = vpop.permute.xlu0 %962
    %v965 = vadd.f32 %v955, %v963
    %v966 = vtanh.pop %v965
    %968 = vrot.lane.b32.xlu0 %v966, 64
    %v969 = vpop.permute.xlu0 %968
    %v971 = vmul.f32 %v953, %v969
    %s972 = scalar_lea.vmem [#allocation2], 7
    %v973 = vld [vmem:[%s972] ss:$8 sm:$0x3]
    %v974 = vpack.c.bf16 %v971, %v971
    %976 = vrot.lane.b32.xlu0 %v974, 32
    %v977 = vpop.permute.xlu0 %976
    %v979 = vsel %vm106, %v977, 0
    %981 = vmatprep.subr.bf16.mxu0 0
    %982 = vmatpush1.bf16.msra.mxu0 %v456
    %983 = vmatprep.subr.bf16.mxu0 0
    %984 = vmatpush1.bf16.msra.mxu0 %v457
    %985 = vmatprep.subr.bf16.mxu0 0
    %986 = vmatpush1.bf16.msra.mxu0 0
    %987 = vmatprep.subr.bf16.mxu0 0
    %988 = vmatpush1.bf16.msra.mxu0 0
    %989 = vmatprep.subr.bf16.mxu0 0
    %990 = vmatpush1.bf16.msra.mxu0 0
    %991 = vmatprep.subr.bf16.mxu0 0
    %992 = vmatpush1.bf16.msra.mxu0 0
    %993 = vmatprep.subr.bf16.mxu0 0
    %994 = vmatpush1.bf16.msra.mxu0 0
    %995 = vmatprep.subr.bf16.mxu0 0
    %996 = vmatpush1.bf16.msra.mxu0 0
    %997 = vmatprep.subr.bf16.mxu0 0
    %998 = vmatpush1.bf16.msra.mxu0 0
    %999 = vmatprep.subr.bf16.mxu0 0
    %1000 = vmatpush1.bf16.msra.mxu0 0
    %1001 = vmatprep.subr.bf16.mxu0 0
    %1002 = vmatpush1.bf16.msra.mxu0 0
    %1003 = vmatprep.subr.bf16.mxu0 0
    %1004 = vmatpush1.bf16.msra.mxu0 0
    %1005 = vmatprep.subr.bf16.mxu0 0
    %1006 = vmatpush1.bf16.msra.mxu0 0
    %1007 = vmatprep.subr.bf16.mxu0 0
    %1008 = vmatpush1.bf16.msra.mxu0 0
    %1009 = vmatprep.subr.bf16.mxu0 0
    %1010 = vmatpush1.bf16.msra.mxu0 0
    %1011 = vmatprep.subr.bf16.mxu0 0
    %1012 = vmatpush1.bf16.msra.mxu0 0
    %1013 = vmatprep.mubr.bf16.mxu0 0
    %1014 = vmatmul.mubr.bf16.gmra.mrb[0].mxu0 %v979
    %v1015 = vpop.f32.mrb[0].mxu0
    %v1016 = vadd.f32 0.0, %v1015
    %v1017 = vpop.f32.mrb[0].mxu0
    %v1018 = vpop.f32.mrb[0].mxu0
    %v1019 = vpop.f32.mrb[0].mxu0
    %1020 = vdwg.mxu0
    %v1021 = vadd.f32 %v973, %v1016
    %v1022 = vxor.u32 %v1021, 2147483648
    %v1023 = vmul.f32 %v1022, 1.442695
    %v1024 = vpow.pop %v1023
    %v1025 = vadd.f32 %v1024, 1.0
    %v1026 = vrcp.pop %v1025
    %v1027 = vmul.f32 1.0, %v1026
    %v1028 = vtanh.pop %v1021
    %v1029 = vmul.f32 %v1027, %v965
    %1031 = vrot.lane.b32.xlu0 %v1028, 64
    %v1032 = vpop.permute.xlu0 %1031
    %v1034 = vmul.f32 %v1027, %v1032
    %1036 = vrot.lane.b32.xlu0 %v1034, 32
    %v1037 = vpop.permute.xlu0 %1036
    %v1039 = vadd.f32 %v1029, %v1037
    %v1040 = vtanh.pop %v1039
    %1042 = vrot.lane.b32.xlu0 %v1040, 64
    %v1043 = vpop.permute.xlu0 %1042
    %v1045 = vmul.f32 %v1027, %v1043
    %1047 = vrot.lane.b32.xlu0 %v1045, 32
    %v1048 = vpop.permute.xlu0 %1047
    %vm1050 = vcmask 254976
    %1051 = vst.msk [vmem:[#allocation11] sm:$0x3] %vm1050, %v1048
    // Predicated region
    $region42: #{tpu_custom_call.1} parent=1 // pred_check
      _
    $region43: #{tpu_custom_call.1} parent=1 // pred_check_branch
      %1053 = sbr.rel (0) target = $region45
    $region44: #{tpu_custom_call.1} parent=1 // pred_region
      %s1055 = ssub.s32 32, 32
      %1056 = vsyncadd [#allocation5], %s1055
      %s1058 = sshll.u32 [#allocation11], 4
      %s1059 = int_to_ptr.vmem [resolvable:$true] %s1058
      %1061 = dma.vmem_to_hbm [thread:$0]  %s1059, 32, %s6, [#allocation5]
    $region45: #{tpu_custom_call.1} parent=1 // pred_fallthru
      _
    // Predicated region
    $region46: #{tpu_custom_call.1} parent=1 // pred_check
      _
    $region47: #{tpu_custom_call.1} parent=1 // pred_check_branch
      %1063 = sbr.rel (0) target = $region49
    $region48: #{tpu_custom_call.1} parent=1 // pred_region
      %1064 = dma.done [#allocation5], 32
    $region49: #{tpu_custom_call.1} parent=1 // pred_fallthru
      _
    %1065 = vsyncpa [#allocation4], 1
    %1066 = vsyncpa [#allocation7], 1
    %1067 = vsyncpa [#allocation10], 1
    %1068 = vsyncpa [#allocation5], 1

</llo_original>
